<compile_context>
chip_gen: v7x
topology: tpu7x:2x2x1
jax: 0.10.0
libtpu: 0.0.40
codegen_flags: <defaults>
</compile_context>

<pallas_src>
import functools

import jax
import jax.numpy as jnp
from jax.experimental import pallas as pl
from jax.experimental.pallas import tpu as pltpu

C_CLIP = 10.0
NEG_FILL = -1e30


def fused_actor_critic_kernel(
    task_feas_ref, dur_edge_ref, dur_cloud_ref,
    t_we_ref, t_be_ref, t_wq_ref, t_bq_ref, t_wk_ref, t_bk_ref,
    p_we_ref, p_be_ref, p_wq_ref, p_bq_ref, p_wk_ref, p_bk_ref,
    out_f32_ref, out_i32_ref,
    *, B, n_j, H, M):
  """Entire n_j-step scheduling loop in one kernel invocation."""
  dk = H / M
  inv_sqrt_dk = 1.0 / (dk ** 0.5)

  # ---------------- prologue: loop-invariant task-actor logits ---------------
  # Encoder stand-in: linear node embedding + mean-pool graph embedding.
  # TODO(synk): the original `Encoder` class is not provided in the source;
  # using a deterministic linear + mean-pool surrogate with matching shapes.
  flat = task_feas_ref[...]                                       # (B*n_j, 4)
  t_we = t_we_ref[...]                                            # (4, H)
  nodes = (flat[:, 0:1] * t_we[0:1, :] +                          # K=4 on VPU,
           flat[:, 1:2] * t_we[1:2, :] +                          # no MXU here
           flat[:, 2:3] * t_we[2:3, :] +
           flat[:, 3:4] * t_we[3:4, :] + t_be_ref[...])           # (B*n_j, H)
  grapha = jnp.mean(nodes.reshape(B, n_j, H), axis=1)             # (B, H)
  query = jnp.dot(grapha, t_wq_ref[...],
                  preferred_element_type=jnp.float32) + t_bq_ref[...]      # (B, H)
  key = (jnp.dot(nodes, t_wk_ref[...],
                 preferred_element_type=jnp.float32)
         + t_bk_ref[...]).reshape(B, n_j, H)                      # (B, n_j, H)
  temp = jnp.sum(query[:, None, :] * key, axis=2) * inv_sqrt_dk   # (B, n_j)
  task_logits = jnp.tanh(temp) * C_CLIP                           # loop-invariant

  dur_edge = dur_edge_ref[...]                                    # (B, n_j)
  dur_cloud = dur_cloud_ref[...]                                  # (B, n_j)
  p_we = p_we_ref[...]
  w0 = p_we[0:1, :]                                               # (1, H)
  w1 = p_we[1:2, :]                                               # (1, H)
  p_be = p_be_ref[...]                                            # (1, H)
  p_wq = p_wq_ref[...]
  p_bq = p_bq_ref[...]
  p_wk = p_wk_ref[...]
  p_bk = p_bk_ref[...]

  iota_n = jax.lax.broadcasted_iota(jnp.int32, (B, n_j), 1)

  # ---------------- scheduling loop: unrolled, register-carried state --------
  def step(i, carry):
    (mask, time_e, time_c, tp_acc, pp_acc, ts_acc, ps_acc, rew) = carry

    # ----- task_actor: greedy select on masked logits, exact chosen prob -----
    masked = jnp.where(mask > 0.5, NEG_FILL, task_logits)          # (B, n_j)
    m = jnp.max(masked, axis=1, keepdims=True)                     # (B, 1)
    # TODO(synk): select_action / sample_select_action are stochastic; greedy
    # argmax (first max, like torch.argmax) is used for this deterministic run.
    task_action = jnp.min(jnp.where(masked >= m, iota_n, n_j),
                          axis=1, keepdims=True)                   # (B, 1) i32
    onehot = iota_n == task_action                                 # (B, n_j) bool
    # chosen logit == row max  ->  chosen prob = 1 / sum(exp(logit - max))
    denom = jnp.sum(jnp.exp(masked - m), axis=1, keepdims=True)    # (B, 1)
    p_task = 1.0 / denom                                           # exact division

    proc_e = jnp.sum(jnp.where(onehot, dur_edge, 0.0),
                     axis=1, keepdims=True)                        # (B, 1)
    proc_c = jnp.sum(jnp.where(onehot, dur_cloud, 0.0),
                     axis=1, keepdims=True)                        # (B, 1)

    # env.step stand-in: mask the chosen task.
    # TODO(synk): `CloudEdge` environment is not provided; deterministic surrogate.
    mask = jnp.maximum(mask, onehot.astype(jnp.float32))

    # ----- place_actor: two nodes kept as separate (B,*) tensors -------------
    node_e = time_e * w0 + proc_e * w1 + p_be                      # (B, H)
    node_c = time_c * w0 + proc_c * w1 + p_be                      # (B, H)
    grapha2 = 0.5 * (node_e + node_c)                              # (B, H)
    query2 = jnp.dot(grapha2, p_wq,
                     preferred_element_type=jnp.float32) + p_bq    # (B, H)
    key_e = jnp.dot(node_e, p_wk,
                    preferred_element_type=jnp.float32) + p_bk     # (B, H)
    key_c = jnp.dot(node_c, p_wk,
                    preferred_element_type=jnp.float32) + p_bk     # (B, H)
    logit_e = jnp.tanh(jnp.sum(query2 * key_e, axis=1, keepdims=True)
                       * inv_sqrt_dk) * C_CLIP                     # (B, 1)
    logit_c = jnp.tanh(jnp.sum(query2 * key_c, axis=1, keepdims=True)
                       * inv_sqrt_dk) * C_CLIP                     # (B, 1)
    choose_cloud = logit_c > logit_e                               # greedy; tie -> edge
    m2 = jnp.maximum(logit_e, logit_c)
    e_e = jnp.exp(logit_e - m2)
    e_c = jnp.exp(logit_c - m2)
    p_place = jnp.where(choose_cloud, e_c, e_e) / (e_e + e_c)      # exact division
    place_action = choose_cloud.astype(jnp.int32)                  # (B, 1)
    chosen_pt = jnp.where(choose_cloud, proc_c, proc_e)            # (B, 1)

    # env.step stand-in: occupy the chosen node, reward = -processing time.
    time_e = time_e + jnp.where(choose_cloud, 0.0, proc_e)
    time_c = time_c + jnp.where(choose_cloud, proc_c, 0.0)
    rew = rew - chosen_pt

    # ----- accumulate this step's column in register carries -----------------
    col = iota_n == i
    tp_acc = jnp.where(col, p_task, tp_acc)
    pp_acc = jnp.where(col, p_place, pp_acc)
    ts_acc = jnp.where(col, task_action, ts_acc)
    ps_acc = jnp.where(col, place_action, ps_acc)

    return (mask, time_e, time_c, tp_acc, pp_acc, ts_acc, ps_acc, rew)

  zf = jnp.zeros((B, n_j), jnp.float32)
  zi = jnp.zeros((B, n_j), jnp.int32)
  z1 = jnp.zeros((B, 1), jnp.float32)
  init = (zf, z1, z1, zf, zf, zi, zi, z1)
  (_, _, _, tp, pp, ts, ps, rew) = jax.lax.fori_loop(
      0, n_j, step, init, unroll=True)

  # ---------------- epilogue: write packed outputs exactly once --------------
  out_f32_ref[:, 0:n_j] = tp
  out_f32_ref[:, n_j:2 * n_j] = pp
  out_f32_ref[:, 2 * n_j:3 * n_j] = rew + jnp.zeros((B, n_j), jnp.float32)
  out_i32_ref[:, 0:n_j] = ts
  out_i32_ref[:, n_j:2 * n_j] = ps


# ----------------------------- wrapper ---------------------------------------

def actor_critic_forward(data, task_params, place_params, *, n_j, batch, M):
  datasize, T, dur_edge, dur_cloud, _dur_send = data

  # env.reset stand-in (see TODO in kernel): task features = per-task scalars.
  task_feas = jnp.stack([datasize, T, dur_edge, dur_cloud], axis=-1)  # (B, n_j, 4)
  B = batch
  H = task_params['wq'].shape[0]
  task_feas_flat = task_feas.reshape(B * n_j, 4)

  kern = functools.partial(fused_actor_critic_kernel, B=B, n_j=n_j, H=H, M=M)

  args = (task_feas_flat, dur_edge, dur_cloud,
          task_params['we'], task_params['be'], task_params['wq'],
          task_params['bq'], task_params['wk'], task_params['bk'],
          place_params['we'], place_params['be'], place_params['wq'],
          place_params['bq'], place_params['wk'], place_params['bk'])

  vmem = pl.BlockSpec(memory_space=pltpu.MemorySpace.VMEM)  # whole array, VMEM-resident
  out_f32, out_i32 = pl.pallas_call(
      kern,
      out_shape=(jax.ShapeDtypeStruct((B, 3 * n_j), jnp.float32),
                 jax.ShapeDtypeStruct((B, 2 * n_j), jnp.int32)),
      in_specs=[vmem] * len(args),
      out_specs=(vmem, vmem),
  )(*args)

  task_prob = out_f32[:, 0:n_j]
  place_prob = out_f32[:, n_j:2 * n_j]
  rewards = out_f32[:, 2 * n_j]          # replicated column -> (B,)
  task_seq = out_i32[:, 0:n_j]
  place_seq = out_i32[:, n_j:2 * n_j]
  return task_seq, place_seq, task_prob, place_prob, rewards


# ----------------------------- parameter init --------------------------------

def init_linear(key, fan_in, fan_out):
  kw, kb = jax.random.split(key)
  bound = 1.0 / (fan_in ** 0.5)
  w = jax.random.uniform(kw, (fan_in, fan_out), jnp.float32, -bound, bound)
  b = jax.random.uniform(kb, (1, fan_out), jnp.float32, -bound, bound)
  return w, b


def init_actor_params(key, input_dim, hidden_dim):
  # wv / w / q / k linears in the PyTorch __init__ are unused in forward.
  k = jax.random.split(key, 3)
  we, be = init_linear(k[0], input_dim, hidden_dim)   # encoder embedding
  wq, bq = init_linear(k[1], hidden_dim, hidden_dim)  # self.wq
  wk, bk = init_linear(k[2], hidden_dim, hidden_dim)  # self.wk
  return dict(we=we, be=be, wq=wq, bq=bq, wk=wk, bk=bk)


# ---------------------------------- main --------------------------------------

if __name__ == "__main__":
  batch, hidden_dim, M, n_j = 2, 32, 4, 8
  input_dim1, input_dim2 = 4, 2   # task / place encoder feature dims

  key = jax.random.PRNGKey(0)
  k_data, k_task, k_place = jax.random.split(key, 3)
  kd = jax.random.split(k_data, 5)
  datasize = jax.random.uniform(kd[0], (batch, n_j), jnp.float32, 0.5, 2.0)
  T = jax.random.uniform(kd[1], (batch, n_j), jnp.float32, 0.5, 2.0)
  dur_edge = jax.random.uniform(kd[2], (batch, n_j), jnp.float32, 0.5, 2.0)
  dur_cloud = jax.random.uniform(kd[3], (batch, n_j), jnp.float32, 0.5, 2.0)
  dur_send = jax.random.uniform(kd[4], (batch, n_j), jnp.float32, 0.5, 2.0)
  data = (datasize, T, dur_edge, dur_cloud, dur_send)

  task_params = init_actor_params(k_task, input_dim1, hidden_dim)
  place_params = init_actor_params(k_place, input_dim2, hidden_dim)

  outs = actor_critic_forward(data, task_params, place_params,
                              n_j=n_j, batch=batch, M=M)
  outs = jax.block_until_ready(outs)
  task_seq, place_seq, task_p, place_p, rewards = outs

  assert task_seq.shape == (batch, n_j)
  assert place_seq.shape == (batch, n_j)
  assert task_p.shape == (batch, n_j)
  assert place_p.shape == (batch, n_j)
  assert rewards.shape == (batch,)
  assert bool(jnp.all(jnp.isfinite(task_p))) and bool(jnp.all(jnp.isfinite(place_p)))
  assert bool(jnp.all(jnp.isfinite(rewards)))
  # chosen probabilities are valid softmax values (exact division now)
  assert bool(jnp.all((task_p > 0.0) & (task_p <= 1.0 + 1e-6)))
  assert bool(jnp.all((place_p > 0.0) & (place_p <= 1.0 + 1e-6)))
  # the masking logic must schedule every task exactly once per batch row
  assert bool(jnp.all(jnp.sort(task_seq, axis=1) == jnp.arange(n_j)[None, :]))
  assert bool(jnp.all((place_seq >= 0) & (place_seq < 2)))
  # rewards are (minus) accumulated chosen processing times -> strictly negative
  assert bool(jnp.all(rewards < 0.0))

  print("KERNEL_OK")
</pallas_src>

<mosaic_0001>
module attributes {stable_mosaic.version = 11 : i64} {
  func.func @fused_actor_critic_kernel(%arg0: memref<16x4xf32, #tpu.memory_space<vmem>>, %arg1: memref<2x8xf32, #tpu.memory_space<vmem>>, %arg2: memref<2x8xf32, #tpu.memory_space<vmem>>, %arg3: memref<4x32xf32, #tpu.memory_space<vmem>>, %arg4: memref<1x32xf32, #tpu.memory_space<vmem>>, %arg5: memref<32x32xf32, #tpu.memory_space<vmem>>, %arg6: memref<1x32xf32, #tpu.memory_space<vmem>>, %arg7: memref<32x32xf32, #tpu.memory_space<vmem>>, %arg8: memref<1x32xf32, #tpu.memory_space<vmem>>, %arg9: memref<2x32xf32, #tpu.memory_space<vmem>>, %arg10: memref<1x32xf32, #tpu.memory_space<vmem>>, %arg11: memref<32x32xf32, #tpu.memory_space<vmem>>, %arg12: memref<1x32xf32, #tpu.memory_space<vmem>>, %arg13: memref<32x32xf32, #tpu.memory_space<vmem>>, %arg14: memref<1x32xf32, #tpu.memory_space<vmem>>, %arg15: memref<2x24xf32, #tpu.memory_space<vmem>>, %arg16: memref<2x16xi32, #tpu.memory_space<vmem>>) attributes {dimension_semantics = [], scalar_prefetch = 0 : i64, scratch_operands = 0 : i64, tpu.core_type = #tpu.core_type<tc>} {
    %c0 = arith.constant 0 : index
    %c0_0 = arith.constant 0 : index
    %0 = vector.load %arg0[%c0, %c0_0] : memref<16x4xf32, #tpu.memory_space<vmem>>, vector<16x4xf32>
    %c0_1 = arith.constant 0 : index
    %c0_2 = arith.constant 0 : index
    %1 = vector.load %arg3[%c0_1, %c0_2] : memref<4x32xf32, #tpu.memory_space<vmem>>, vector<4x32xf32>
    %2 = vector.extract_strided_slice %0 {offsets = [0, 0], sizes = [16, 1], strides = [1, 1]} : vector<16x4xf32> to vector<16x1xf32>
    %3 = vector.extract_strided_slice %1 {offsets = [0, 0], sizes = [1, 32], strides = [1, 1]} : vector<4x32xf32> to vector<1x32xf32>
    %4 = vector.broadcast %2 : vector<16x1xf32> to vector<16x32xf32>
    %5 = vector.broadcast %3 : vector<1x32xf32> to vector<16x32xf32>
    %6 = arith.mulf %4, %5 : vector<16x32xf32>
    %7 = vector.extract_strided_slice %0 {offsets = [0, 1], sizes = [16, 1], strides = [1, 1]} : vector<16x4xf32> to vector<16x1xf32>
    %8 = vector.extract_strided_slice %1 {offsets = [1, 0], sizes = [1, 32], strides = [1, 1]} : vector<4x32xf32> to vector<1x32xf32>
    %9 = vector.broadcast %7 : vector<16x1xf32> to vector<16x32xf32>
    %10 = vector.broadcast %8 : vector<1x32xf32> to vector<16x32xf32>
    %11 = arith.mulf %9, %10 : vector<16x32xf32>
    %12 = arith.addf %6, %11 : vector<16x32xf32>
    %13 = vector.extract_strided_slice %0 {offsets = [0, 2], sizes = [16, 1], strides = [1, 1]} : vector<16x4xf32> to vector<16x1xf32>
    %14 = vector.extract_strided_slice %1 {offsets = [2, 0], sizes = [1, 32], strides = [1, 1]} : vector<4x32xf32> to vector<1x32xf32>
    %15 = vector.broadcast %13 : vector<16x1xf32> to vector<16x32xf32>
    %16 = vector.broadcast %14 : vector<1x32xf32> to vector<16x32xf32>
    %17 = arith.mulf %15, %16 : vector<16x32xf32>
    %18 = arith.addf %12, %17 : vector<16x32xf32>
    %19 = vector.extract_strided_slice %0 {offsets = [0, 3], sizes = [16, 1], strides = [1, 1]} : vector<16x4xf32> to vector<16x1xf32>
    %20 = vector.extract_strided_slice %1 {offsets = [3, 0], sizes = [1, 32], strides = [1, 1]} : vector<4x32xf32> to vector<1x32xf32>
    %21 = vector.broadcast %19 : vector<16x1xf32> to vector<16x32xf32>
    %22 = vector.broadcast %20 : vector<1x32xf32> to vector<16x32xf32>
    %23 = arith.mulf %21, %22 : vector<16x32xf32>
    %24 = arith.addf %18, %23 : vector<16x32xf32>
    %c0_3 = arith.constant 0 : index
    %c0_4 = arith.constant 0 : index
    %25 = vector.load %arg4[%c0_3, %c0_4] : memref<1x32xf32, #tpu.memory_space<vmem>>, vector<1x32xf32>
    %26 = vector.broadcast %25 : vector<1x32xf32> to vector<16x32xf32>
    %27 = arith.addf %24, %26 : vector<16x32xf32>
    %28 = vector.shape_cast %27 : vector<16x32xf32> to vector<2x8x32xf32>
    %cst = arith.constant dense<0.000000e+00> : vector<2x32xf32>
    %29 = vector.multi_reduction <add>, %28, %cst [1] : vector<2x8x32xf32> to vector<2x32xf32>
    %cst_5 = arith.constant 8.000000e+00 : f32
    %30 = vector.broadcast %cst_5 : f32 to vector<2x32xf32>
    %31 = arith.divf %29, %30 : vector<2x32xf32>
    %c0_6 = arith.constant 0 : index
    %c0_7 = arith.constant 0 : index
    %32 = vector.load %arg5[%c0_6, %c0_7] : memref<32x32xf32, #tpu.memory_space<vmem>>, vector<32x32xf32>
    %cst_8 = arith.constant dense<0.000000e+00> : vector<2x32xf32>
    %33 = tpu.matmul %31, %32, %cst_8 {dimension_numbers = #tpu.dot_dimension_numbers<[1], [0], [0], [1], [0, 0, 1, 1], [], []>} : vector<2x32xf32>, vector<32x32xf32>, vector<2x32xf32> -> vector<2x32xf32>
    %c0_9 = arith.constant 0 : index
    %c0_10 = arith.constant 0 : index
    %34 = vector.load %arg6[%c0_9, %c0_10] : memref<1x32xf32, #tpu.memory_space<vmem>>, vector<1x32xf32>
    %35 = vector.broadcast %34 : vector<1x32xf32> to vector<2x32xf32>
    %36 = arith.addf %33, %35 : vector<2x32xf32>
    %c0_11 = arith.constant 0 : index
    %c0_12 = arith.constant 0 : index
    %37 = vector.load %arg7[%c0_11, %c0_12] : memref<32x32xf32, #tpu.memory_space<vmem>>, vector<32x32xf32>
    %cst_13 = arith.constant dense<0.000000e+00> : vector<16x32xf32>
    %38 = tpu.matmul %27, %37, %cst_13 {dimension_numbers = #tpu.dot_dimension_numbers<[1], [0], [0], [1], [0, 0, 1, 1], [], []>} : vector<16x32xf32>, vector<32x32xf32>, vector<16x32xf32> -> vector<16x32xf32>
    %c0_14 = arith.constant 0 : index
    %c0_15 = arith.constant 0 : index
    %39 = vector.load %arg8[%c0_14, %c0_15] : memref<1x32xf32, #tpu.memory_space<vmem>>, vector<1x32xf32>
    %40 = vector.broadcast %39 : vector<1x32xf32> to vector<16x32xf32>
    %41 = arith.addf %38, %40 : vector<16x32xf32>
    %42 = vector.shape_cast %41 : vector<16x32xf32> to vector<2x8x32xf32>
    %43 = vector.shape_cast %36 : vector<2x32xf32> to vector<2x1x32xf32>
    %44 = vector.broadcast %43 : vector<2x1x32xf32> to vector<2x8x32xf32>
    %45 = arith.mulf %44, %42 : vector<2x8x32xf32>
    %cst_16 = arith.constant dense<0.000000e+00> : vector<2x8xf32>
    %46 = vector.multi_reduction <add>, %45, %cst_16 [2] : vector<2x8x32xf32> to vector<2x8xf32>
    %cst_17 = arith.constant 0.353553385 : f32
    %47 = vector.broadcast %cst_17 : f32 to vector<2x8xf32>
    %48 = arith.mulf %46, %47 : vector<2x8xf32>
    %49 = math.tanh %48 : vector<2x8xf32>
    %cst_18 = arith.constant 1.000000e+01 : f32
    %50 = vector.broadcast %cst_18 : f32 to vector<2x8xf32>
    %51 = arith.mulf %49, %50 : vector<2x8xf32>
    %c0_19 = arith.constant 0 : index
    %c0_20 = arith.constant 0 : index
    %52 = vector.load %arg1[%c0_19, %c0_20] : memref<2x8xf32, #tpu.memory_space<vmem>>, vector<2x8xf32>
    %c0_21 = arith.constant 0 : index
    %c0_22 = arith.constant 0 : index
    %53 = vector.load %arg2[%c0_21, %c0_22] : memref<2x8xf32, #tpu.memory_space<vmem>>, vector<2x8xf32>
    %c0_23 = arith.constant 0 : index
    %c0_24 = arith.constant 0 : index
    %54 = vector.load %arg9[%c0_23, %c0_24] : memref<2x32xf32, #tpu.memory_space<vmem>>, vector<2x32xf32>
    %55 = vector.extract_strided_slice %54 {offsets = [0, 0], sizes = [1, 32], strides = [1, 1]} : vector<2x32xf32> to vector<1x32xf32>
    %56 = vector.extract_strided_slice %54 {offsets = [1, 0], sizes = [1, 32], strides = [1, 1]} : vector<2x32xf32> to vector<1x32xf32>
    %c0_25 = arith.constant 0 : index
    %c0_26 = arith.constant 0 : index
    %57 = vector.load %arg10[%c0_25, %c0_26] : memref<1x32xf32, #tpu.memory_space<vmem>>, vector<1x32xf32>
    %c0_27 = arith.constant 0 : index
    %c0_28 = arith.constant 0 : index
    %58 = vector.load %arg11[%c0_27, %c0_28] : memref<32x32xf32, #tpu.memory_space<vmem>>, vector<32x32xf32>
    %c0_29 = arith.constant 0 : index
    %c0_30 = arith.constant 0 : index
    %59 = vector.load %arg12[%c0_29, %c0_30] : memref<1x32xf32, #tpu.memory_space<vmem>>, vector<1x32xf32>
    %c0_31 = arith.constant 0 : index
    %c0_32 = arith.constant 0 : index
    %60 = vector.load %arg13[%c0_31, %c0_32] : memref<32x32xf32, #tpu.memory_space<vmem>>, vector<32x32xf32>
    %c0_33 = arith.constant 0 : index
    %c0_34 = arith.constant 0 : index
    %61 = vector.load %arg14[%c0_33, %c0_34] : memref<1x32xf32, #tpu.memory_space<vmem>>, vector<1x32xf32>
    %62 = tpu.iota {dimensions = array<i32: 1>} : vector<2x8xi32>
    %cst_35 = arith.constant 0.000000e+00 : f32
    %63 = vector.broadcast %cst_35 : f32 to vector<2x8xf32>
    %c0_i32 = arith.constant 0 : i32
    %64 = vector.broadcast %c0_i32 : i32 to vector<2x8xi32>
    %cst_36 = arith.constant 0.000000e+00 : f32
    %65 = vector.broadcast %cst_36 : f32 to vector<2x1xf32>
    %c0_i32_37 = arith.constant 0 : i32
    %cst_38 = arith.constant 5.000000e-01 : f32
    %66 = vector.broadcast %cst_38 : f32 to vector<2x8xf32>
    %67 = arith.cmpf ogt, %63, %66 : vector<2x8xf32>
    %cst_39 = arith.constant -1.000000e+30 : f32
    %68 = vector.broadcast %cst_39 : f32 to vector<2x8xf32>
    %69 = arith.select %67, %68, %51 : vector<2x8xi1>, vector<2x8xf32>
    %cst_40 = arith.constant dense<0xFF800000> : vector<2xf32>
    %70 = vector.multi_reduction <maximumf>, %69, %cst_40 [1] : vector<2x8xf32> to vector<2xf32>
    %71 = vector.shape_cast %70 : vector<2xf32> to vector<2x1xf32>
    %72 = vector.broadcast %71 : vector<2x1xf32> to vector<2x8xf32>
    %73 = arith.cmpf oge, %69, %72 : vector<2x8xf32>
    %c8_i32 = arith.constant 8 : i32
    %74 = vector.broadcast %c8_i32 : i32 to vector<2x8xi32>
    %75 = arith.select %73, %62, %74 : vector<2x8xi1>, vector<2x8xi32>
    %cst_41 = arith.constant dense<2147483647> : vector<2xi32>
    %76 = vector.multi_reduction <minsi>, %75, %cst_41 [1] : vector<2x8xi32> to vector<2xi32>
    %77 = vector.shape_cast %76 : vector<2xi32> to vector<2x1xi32>
    %78 = vector.broadcast %77 : vector<2x1xi32> to vector<2x8xi32>
    %79 = arith.cmpi eq, %62, %78 : vector<2x8xi32>
    %80 = vector.broadcast %71 : vector<2x1xf32> to vector<2x8xf32>
    %81 = arith.subf %69, %80 : vector<2x8xf32>
    %82 = math.exp %81 : vector<2x8xf32>
    %cst_42 = arith.constant dense<0.000000e+00> : vector<2xf32>
    %83 = vector.multi_reduction <add>, %82, %cst_42 [1] : vector<2x8xf32> to vector<2xf32>
    %84 = vector.shape_cast %83 : vector<2xf32> to vector<2x1xf32>
    %cst_43 = arith.constant 1.000000e+00 : f32
    %85 = vector.broadcast %cst_43 : f32 to vector<2x1xf32>
    %86 = arith.divf %85, %84 : vector<2x1xf32>
    %cst_44 = arith.constant 0.000000e+00 : f32
    %87 = vector.broadcast %cst_44 : f32 to vector<2x8xf32>
    %88 = arith.select %79, %52, %87 : vector<2x8xi1>, vector<2x8xf32>
    %cst_45 = arith.constant dense<0.000000e+00> : vector<2xf32>
    %89 = vector.multi_reduction <add>, %88, %cst_45 [1] : vector<2x8xf32> to vector<2xf32>
    %90 = vector.shape_cast %89 : vector<2xf32> to vector<2x1xf32>
    %cst_46 = arith.constant 0.000000e+00 : f32
    %91 = vector.broadcast %cst_46 : f32 to vector<2x8xf32>
    %92 = arith.select %79, %53, %91 : vector<2x8xi1>, vector<2x8xf32>
    %cst_47 = arith.constant dense<0.000000e+00> : vector<2xf32>
    %93 = vector.multi_reduction <add>, %92, %cst_47 [1] : vector<2x8xf32> to vector<2xf32>
    %94 = vector.shape_cast %93 : vector<2xf32> to vector<2x1xf32>
    %95 = arith.extui %79 : vector<2x8xi1> to vector<2x8xi32>
    %96 = arith.sitofp %95 : vector<2x8xi32> to vector<2x8xf32>
    %97 = arith.maximumf %63, %96 : vector<2x8xf32>
    %98 = vector.broadcast %65 : vector<2x1xf32> to vector<2x32xf32>
    %99 = vector.broadcast %55 : vector<1x32xf32> to vector<2x32xf32>
    %100 = arith.mulf %98, %99 : vector<2x32xf32>
    %101 = vector.broadcast %90 : vector<2x1xf32> to vector<2x32xf32>
    %102 = vector.broadcast %56 : vector<1x32xf32> to vector<2x32xf32>
    %103 = arith.mulf %101, %102 : vector<2x32xf32>
    %104 = arith.addf %100, %103 : vector<2x32xf32>
    %105 = vector.broadcast %57 : vector<1x32xf32> to vector<2x32xf32>
    %106 = arith.addf %104, %105 : vector<2x32xf32>
    %107 = vector.broadcast %65 : vector<2x1xf32> to vector<2x32xf32>
    %108 = vector.broadcast %55 : vector<1x32xf32> to vector<2x32xf32>
    %109 = arith.mulf %107, %108 : vector<2x32xf32>
    %110 = vector.broadcast %94 : vector<2x1xf32> to vector<2x32xf32>
    %111 = vector.broadcast %56 : vector<1x32xf32> to vector<2x32xf32>
    %112 = arith.mulf %110, %111 : vector<2x32xf32>
    %113 = arith.addf %109, %112 : vector<2x32xf32>
    %114 = vector.broadcast %57 : vector<1x32xf32> to vector<2x32xf32>
    %115 = arith.addf %113, %114 : vector<2x32xf32>
    %116 = arith.addf %106, %115 : vector<2x32xf32>
    %cst_48 = arith.constant 5.000000e-01 : f32
    %117 = vector.broadcast %cst_48 : f32 to vector<2x32xf32>
    %118 = arith.mulf %117, %116 : vector<2x32xf32>
    %cst_49 = arith.constant dense<0.000000e+00> : vector<2x32xf32>
    %119 = tpu.matmul %118, %58, %cst_49 {dimension_numbers = #tpu.dot_dimension_numbers<[1], [0], [0], [1], [0, 0, 1, 1], [], []>} : vector<2x32xf32>, vector<32x32xf32>, vector<2x32xf32> -> vector<2x32xf32>
    %120 = vector.broadcast %59 : vector<1x32xf32> to vector<2x32xf32>
    %121 = arith.addf %119, %120 : vector<2x32xf32>
    %cst_50 = arith.constant dense<0.000000e+00> : vector<2x32xf32>
    %122 = tpu.matmul %106, %60, %cst_50 {dimension_numbers = #tpu.dot_dimension_numbers<[1], [0], [0], [1], [0, 0, 1, 1], [], []>} : vector<2x32xf32>, vector<32x32xf32>, vector<2x32xf32> -> vector<2x32xf32>
    %123 = vector.broadcast %61 : vector<1x32xf32> to vector<2x32xf32>
    %124 = arith.addf %122, %123 : vector<2x32xf32>
    %cst_51 = arith.constant dense<0.000000e+00> : vector<2x32xf32>
    %125 = tpu.matmul %115, %60, %cst_51 {dimension_numbers = #tpu.dot_dimension_numbers<[1], [0], [0], [1], [0, 0, 1, 1], [], []>} : vector<2x32xf32>, vector<32x32xf32>, vector<2x32xf32> -> vector<2x32xf32>
    %126 = vector.broadcast %61 : vector<1x32xf32> to vector<2x32xf32>
    %127 = arith.addf %125, %126 : vector<2x32xf32>
    %128 = arith.mulf %121, %124 : vector<2x32xf32>
    %cst_52 = arith.constant dense<0.000000e+00> : vector<2xf32>
    %129 = vector.multi_reduction <add>, %128, %cst_52 [1] : vector<2x32xf32> to vector<2xf32>
    %130 = vector.shape_cast %129 : vector<2xf32> to vector<2x1xf32>
    %cst_53 = arith.constant 0.353553385 : f32
    %131 = vector.broadcast %cst_53 : f32 to vector<2x1xf32>
    %132 = arith.mulf %130, %131 : vector<2x1xf32>
    %133 = math.tanh %132 : vector<2x1xf32>
    %cst_54 = arith.constant 1.000000e+01 : f32
    %134 = vector.broadcast %cst_54 : f32 to vector<2x1xf32>
    %135 = arith.mulf %133, %134 : vector<2x1xf32>
    %136 = arith.mulf %121, %127 : vector<2x32xf32>
    %cst_55 = arith.constant dense<0.000000e+00> : vector<2xf32>
    %137 = vector.multi_reduction <add>, %136, %cst_55 [1] : vector<2x32xf32> to vector<2xf32>
    %138 = vector.shape_cast %137 : vector<2xf32> to vector<2x1xf32>
    %cst_56 = arith.constant 0.353553385 : f32
    %139 = vector.broadcast %cst_56 : f32 to vector<2x1xf32>
    %140 = arith.mulf %138, %139 : vector<2x1xf32>
    %141 = math.tanh %140 : vector<2x1xf32>
    %cst_57 = arith.constant 1.000000e+01 : f32
    %142 = vector.broadcast %cst_57 : f32 to vector<2x1xf32>
    %143 = arith.mulf %141, %142 : vector<2x1xf32>
    %144 = arith.cmpf ogt, %143, %135 : vector<2x1xf32>
    %145 = arith.maximumf %135, %143 : vector<2x1xf32>
    %146 = arith.subf %135, %145 : vector<2x1xf32>
    %147 = math.exp %146 : vector<2x1xf32>
    %148 = arith.subf %143, %145 : vector<2x1xf32>
    %149 = math.exp %148 : vector<2x1xf32>
    %150 = arith.select %144, %149, %147 : vector<2x1xi1>, vector<2x1xf32>
    %151 = arith.addf %147, %149 : vector<2x1xf32>
    %152 = arith.divf %150, %151 : vector<2x1xf32>
    %153 = arith.extui %144 : vector<2x1xi1> to vector<2x1xi32>
    %154 = arith.select %144, %94, %90 : vector<2x1xi1>, vector<2x1xf32>
    %cst_58 = arith.constant 0.000000e+00 : f32
    %155 = vector.broadcast %cst_58 : f32 to vector<2x1xf32>
    %156 = arith.select %144, %155, %90 : vector<2x1xi1>, vector<2x1xf32>
    %157 = arith.addf %65, %156 : vector<2x1xf32>
    %cst_59 = arith.constant 0.000000e+00 : f32
    %158 = vector.broadcast %cst_59 : f32 to vector<2x1xf32>
    %159 = arith.select %144, %94, %158 : vector<2x1xi1>, vector<2x1xf32>
    %160 = arith.addf %65, %159 : vector<2x1xf32>
    %161 = arith.subf %65, %154 : vector<2x1xf32>
    %162 = vector.broadcast %c0_i32_37 : i32 to vector<2x8xi32>
    %163 = arith.cmpi eq, %62, %162 : vector<2x8xi32>
    %164 = vector.shape_cast %86 : vector<2x1xf32> to vector<2x1xf32>
    %165 = vector.broadcast %164 : vector<2x1xf32> to vector<2x8xf32>
    %166 = arith.select %163, %165, %63 : vector<2x8xi1>, vector<2x8xf32>
    %167 = vector.shape_cast %152 : vector<2x1xf32> to vector<2x1xf32>
    %168 = vector.broadcast %167 : vector<2x1xf32> to vector<2x8xf32>
    %169 = arith.select %163, %168, %63 : vector<2x8xi1>, vector<2x8xf32>
    %170 = vector.shape_cast %77 : vector<2x1xi32> to vector<2x1xi32>
    %171 = vector.broadcast %170 : vector<2x1xi32> to vector<2x8xi32>
    %172 = arith.select %163, %171, %64 : vector<2x8xi1>, vector<2x8xi32>
    %173 = vector.shape_cast %153 : vector<2x1xi32> to vector<2x1xi32>
    %174 = vector.broadcast %173 : vector<2x1xi32> to vector<2x8xi32>
    %175 = arith.select %163, %174, %64 : vector<2x8xi1>, vector<2x8xi32>
    %c1_i32 = arith.constant 1 : i32
    %cst_60 = arith.constant 5.000000e-01 : f32
    %176 = vector.broadcast %cst_60 : f32 to vector<2x8xf32>
    %177 = arith.cmpf ogt, %97, %176 : vector<2x8xf32>
    %cst_61 = arith.constant -1.000000e+30 : f32
    %178 = vector.broadcast %cst_61 : f32 to vector<2x8xf32>
    %179 = arith.select %177, %178, %51 : vector<2x8xi1>, vector<2x8xf32>
    %cst_62 = arith.constant dense<0xFF800000> : vector<2xf32>
    %180 = vector.multi_reduction <maximumf>, %179, %cst_62 [1] : vector<2x8xf32> to vector<2xf32>
    %181 = vector.shape_cast %180 : vector<2xf32> to vector<2x1xf32>
    %182 = vector.broadcast %181 : vector<2x1xf32> to vector<2x8xf32>
    %183 = arith.cmpf oge, %179, %182 : vector<2x8xf32>
    %c8_i32_63 = arith.constant 8 : i32
    %184 = vector.broadcast %c8_i32_63 : i32 to vector<2x8xi32>
    %185 = arith.select %183, %62, %184 : vector<2x8xi1>, vector<2x8xi32>
    %cst_64 = arith.constant dense<2147483647> : vector<2xi32>
    %186 = vector.multi_reduction <minsi>, %185, %cst_64 [1] : vector<2x8xi32> to vector<2xi32>
    %187 = vector.shape_cast %186 : vector<2xi32> to vector<2x1xi32>
    %188 = vector.broadcast %187 : vector<2x1xi32> to vector<2x8xi32>
    %189 = arith.cmpi eq, %62, %188 : vector<2x8xi32>
    %190 = vector.broadcast %181 : vector<2x1xf32> to vector<2x8xf32>
    %191 = arith.subf %179, %190 : vector<2x8xf32>
    %192 = math.exp %191 : vector<2x8xf32>
    %cst_65 = arith.constant dense<0.000000e+00> : vector<2xf32>
    %193 = vector.multi_reduction <add>, %192, %cst_65 [1] : vector<2x8xf32> to vector<2xf32>
    %194 = vector.shape_cast %193 : vector<2xf32> to vector<2x1xf32>
    %cst_66 = arith.constant 1.000000e+00 : f32
    %195 = vector.broadcast %cst_66 : f32 to vector<2x1xf32>
    %196 = arith.divf %195, %194 : vector<2x1xf32>
    %cst_67 = arith.constant 0.000000e+00 : f32
    %197 = vector.broadcast %cst_67 : f32 to vector<2x8xf32>
    %198 = arith.select %189, %52, %197 : vector<2x8xi1>, vector<2x8xf32>
    %cst_68 = arith.constant dense<0.000000e+00> : vector<2xf32>
    %199 = vector.multi_reduction <add>, %198, %cst_68 [1] : vector<2x8xf32> to vector<2xf32>
    %200 = vector.shape_cast %199 : vector<2xf32> to vector<2x1xf32>
    %cst_69 = arith.constant 0.000000e+00 : f32
    %201 = vector.broadcast %cst_69 : f32 to vector<2x8xf32>
    %202 = arith.select %189, %53, %201 : vector<2x8xi1>, vector<2x8xf32>
    %cst_70 = arith.constant dense<0.000000e+00> : vector<2xf32>
    %203 = vector.multi_reduction <add>, %202, %cst_70 [1] : vector<2x8xf32> to vector<2xf32>
    %204 = vector.shape_cast %203 : vector<2xf32> to vector<2x1xf32>
    %205 = arith.extui %189 : vector<2x8xi1> to vector<2x8xi32>
    %206 = arith.sitofp %205 : vector<2x8xi32> to vector<2x8xf32>
    %207 = arith.maximumf %97, %206 : vector<2x8xf32>
    %208 = vector.broadcast %157 : vector<2x1xf32> to vector<2x32xf32>
    %209 = vector.broadcast %55 : vector<1x32xf32> to vector<2x32xf32>
    %210 = arith.mulf %208, %209 : vector<2x32xf32>
    %211 = vector.broadcast %200 : vector<2x1xf32> to vector<2x32xf32>
    %212 = vector.broadcast %56 : vector<1x32xf32> to vector<2x32xf32>
    %213 = arith.mulf %211, %212 : vector<2x32xf32>
    %214 = arith.addf %210, %213 : vector<2x32xf32>
    %215 = vector.broadcast %57 : vector<1x32xf32> to vector<2x32xf32>
    %216 = arith.addf %214, %215 : vector<2x32xf32>
    %217 = vector.broadcast %160 : vector<2x1xf32> to vector<2x32xf32>
    %218 = vector.broadcast %55 : vector<1x32xf32> to vector<2x32xf32>
    %219 = arith.mulf %217, %218 : vector<2x32xf32>
    %220 = vector.broadcast %204 : vector<2x1xf32> to vector<2x32xf32>
    %221 = vector.broadcast %56 : vector<1x32xf32> to vector<2x32xf32>
    %222 = arith.mulf %220, %221 : vector<2x32xf32>
    %223 = arith.addf %219, %222 : vector<2x32xf32>
    %224 = vector.broadcast %57 : vector<1x32xf32> to vector<2x32xf32>
    %225 = arith.addf %223, %224 : vector<2x32xf32>
    %226 = arith.addf %216, %225 : vector<2x32xf32>
    %cst_71 = arith.constant 5.000000e-01 : f32
    %227 = vector.broadcast %cst_71 : f32 to vector<2x32xf32>
    %228 = arith.mulf %227, %226 : vector<2x32xf32>
    %cst_72 = arith.constant dense<0.000000e+00> : vector<2x32xf32>
    %229 = tpu.matmul %228, %58, %cst_72 {dimension_numbers = #tpu.dot_dimension_numbers<[1], [0], [0], [1], [0, 0, 1, 1], [], []>} : vector<2x32xf32>, vector<32x32xf32>, vector<2x32xf32> -> vector<2x32xf32>
    %230 = vector.broadcast %59 : vector<1x32xf32> to vector<2x32xf32>
    %231 = arith.addf %229, %230 : vector<2x32xf32>
    %cst_73 = arith.constant dense<0.000000e+00> : vector<2x32xf32>
    %232 = tpu.matmul %216, %60, %cst_73 {dimension_numbers = #tpu.dot_dimension_numbers<[1], [0], [0], [1], [0, 0, 1, 1], [], []>} : vector<2x32xf32>, vector<32x32xf32>, vector<2x32xf32> -> vector<2x32xf32>
    %233 = vector.broadcast %61 : vector<1x32xf32> to vector<2x32xf32>
    %234 = arith.addf %232, %233 : vector<2x32xf32>
    %cst_74 = arith.constant dense<0.000000e+00> : vector<2x32xf32>
    %235 = tpu.matmul %225, %60, %cst_74 {dimension_numbers = #tpu.dot_dimension_numbers<[1], [0], [0], [1], [0, 0, 1, 1], [], []>} : vector<2x32xf32>, vector<32x32xf32>, vector<2x32xf32> -> vector<2x32xf32>
    %236 = vector.broadcast %61 : vector<1x32xf32> to vector<2x32xf32>
    %237 = arith.addf %235, %236 : vector<2x32xf32>
    %238 = arith.mulf %231, %234 : vector<2x32xf32>
    %cst_75 = arith.constant dense<0.000000e+00> : vector<2xf32>
    %239 = vector.multi_reduction <add>, %238, %cst_75 [1] : vector<2x32xf32> to vector<2xf32>
    %240 = vector.shape_cast %239 : vector<2xf32> to vector<2x1xf32>
    %cst_76 = arith.constant 0.353553385 : f32
    %241 = vector.broadcast %cst_76 : f32 to vector<2x1xf32>
    %242 = arith.mulf %240, %241 : vector<2x1xf32>
    %243 = math.tanh %242 : vector<2x1xf32>
    %cst_77 = arith.constant 1.000000e+01 : f32
    %244 = vector.broadcast %cst_77 : f32 to vector<2x1xf32>
    %245 = arith.mulf %243, %244 : vector<2x1xf32>
    %246 = arith.mulf %231, %237 : vector<2x32xf32>
    %cst_78 = arith.constant dense<0.000000e+00> : vector<2xf32>
    %247 = vector.multi_reduction <add>, %246, %cst_78 [1] : vector<2x32xf32> to vector<2xf32>
    %248 = vector.shape_cast %247 : vector<2xf32> to vector<2x1xf32>
    %cst_79 = arith.constant 0.353553385 : f32
    %249 = vector.broadcast %cst_79 : f32 to vector<2x1xf32>
    %250 = arith.mulf %248, %249 : vector<2x1xf32>
    %251 = math.tanh %250 : vector<2x1xf32>
    %cst_80 = arith.constant 1.000000e+01 : f32
    %252 = vector.broadcast %cst_80 : f32 to vector<2x1xf32>
    %253 = arith.mulf %251, %252 : vector<2x1xf32>
    %254 = arith.cmpf ogt, %253, %245 : vector<2x1xf32>
    %255 = arith.maximumf %245, %253 : vector<2x1xf32>
    %256 = arith.subf %245, %255 : vector<2x1xf32>
    %257 = math.exp %256 : vector<2x1xf32>
    %258 = arith.subf %253, %255 : vector<2x1xf32>
    %259 = math.exp %258 : vector<2x1xf32>
    %260 = arith.select %254, %259, %257 : vector<2x1xi1>, vector<2x1xf32>
    %261 = arith.addf %257, %259 : vector<2x1xf32>
    %262 = arith.divf %260, %261 : vector<2x1xf32>
    %263 = arith.extui %254 : vector<2x1xi1> to vector<2x1xi32>
    %264 = arith.select %254, %204, %200 : vector<2x1xi1>, vector<2x1xf32>
    %cst_81 = arith.constant 0.000000e+00 : f32
    %265 = vector.broadcast %cst_81 : f32 to vector<2x1xf32>
    %266 = arith.select %254, %265, %200 : vector<2x1xi1>, vector<2x1xf32>
    %267 = arith.addf %157, %266 : vector<2x1xf32>
    %cst_82 = arith.constant 0.000000e+00 : f32
    %268 = vector.broadcast %cst_82 : f32 to vector<2x1xf32>
    %269 = arith.select %254, %204, %268 : vector<2x1xi1>, vector<2x1xf32>
    %270 = arith.addf %160, %269 : vector<2x1xf32>
    %271 = arith.subf %161, %264 : vector<2x1xf32>
    %272 = vector.broadcast %c1_i32 : i32 to vector<2x8xi32>
    %273 = arith.cmpi eq, %62, %272 : vector<2x8xi32>
    %274 = vector.shape_cast %196 : vector<2x1xf32> to vector<2x1xf32>
    %275 = vector.broadcast %274 : vector<2x1xf32> to vector<2x8xf32>
    %276 = arith.select %273, %275, %166 : vector<2x8xi1>, vector<2x8xf32>
    %277 = vector.shape_cast %262 : vector<2x1xf32> to vector<2x1xf32>
    %278 = vector.broadcast %277 : vector<2x1xf32> to vector<2x8xf32>
    %279 = arith.select %273, %278, %169 : vector<2x8xi1>, vector<2x8xf32>
    %280 = vector.shape_cast %187 : vector<2x1xi32> to vector<2x1xi32>
    %281 = vector.broadcast %280 : vector<2x1xi32> to vector<2x8xi32>
    %282 = arith.select %273, %281, %172 : vector<2x8xi1>, vector<2x8xi32>
    %283 = vector.shape_cast %263 : vector<2x1xi32> to vector<2x1xi32>
    %284 = vector.broadcast %283 : vector<2x1xi32> to vector<2x8xi32>
    %285 = arith.select %273, %284, %175 : vector<2x8xi1>, vector<2x8xi32>
    %c2_i32 = arith.constant 2 : i32
    %cst_83 = arith.constant 5.000000e-01 : f32
    %286 = vector.broadcast %cst_83 : f32 to vector<2x8xf32>
    %287 = arith.cmpf ogt, %207, %286 : vector<2x8xf32>
    %cst_84 = arith.constant -1.000000e+30 : f32
    %288 = vector.broadcast %cst_84 : f32 to vector<2x8xf32>
    %289 = arith.select %287, %288, %51 : vector<2x8xi1>, vector<2x8xf32>
    %cst_85 = arith.constant dense<0xFF800000> : vector<2xf32>
    %290 = vector.multi_reduction <maximumf>, %289, %cst_85 [1] : vector<2x8xf32> to vector<2xf32>
    %291 = vector.shape_cast %290 : vector<2xf32> to vector<2x1xf32>
    %292 = vector.broadcast %291 : vector<2x1xf32> to vector<2x8xf32>
    %293 = arith.cmpf oge, %289, %292 : vector<2x8xf32>
    %c8_i32_86 = arith.constant 8 : i32
    %294 = vector.broadcast %c8_i32_86 : i32 to vector<2x8xi32>
    %295 = arith.select %293, %62, %294 : vector<2x8xi1>, vector<2x8xi32>
    %cst_87 = arith.constant dense<2147483647> : vector<2xi32>
    %296 = vector.multi_reduction <minsi>, %295, %cst_87 [1] : vector<2x8xi32> to vector<2xi32>
    %297 = vector.shape_cast %296 : vector<2xi32> to vector<2x1xi32>
    %298 = vector.broadcast %297 : vector<2x1xi32> to vector<2x8xi32>
    %299 = arith.cmpi eq, %62, %298 : vector<2x8xi32>
    %300 = vector.broadcast %291 : vector<2x1xf32> to vector<2x8xf32>
    %301 = arith.subf %289, %300 : vector<2x8xf32>
    %302 = math.exp %301 : vector<2x8xf32>
    %cst_88 = arith.constant dense<0.000000e+00> : vector<2xf32>
    %303 = vector.multi_reduction <add>, %302, %cst_88 [1] : vector<2x8xf32> to vector<2xf32>
    %304 = vector.shape_cast %303 : vector<2xf32> to vector<2x1xf32>
    %cst_89 = arith.constant 1.000000e+00 : f32
    %305 = vector.broadcast %cst_89 : f32 to vector<2x1xf32>
    %306 = arith.divf %305, %304 : vector<2x1xf32>
    %cst_90 = arith.constant 0.000000e+00 : f32
    %307 = vector.broadcast %cst_90 : f32 to vector<2x8xf32>
    %308 = arith.select %299, %52, %307 : vector<2x8xi1>, vector<2x8xf32>
    %cst_91 = arith.constant dense<0.000000e+00> : vector<2xf32>
    %309 = vector.multi_reduction <add>, %308, %cst_91 [1] : vector<2x8xf32> to vector<2xf32>
    %310 = vector.shape_cast %309 : vector<2xf32> to vector<2x1xf32>
    %cst_92 = arith.constant 0.000000e+00 : f32
    %311 = vector.broadcast %cst_92 : f32 to vector<2x8xf32>
    %312 = arith.select %299, %53, %311 : vector<2x8xi1>, vector<2x8xf32>
    %cst_93 = arith.constant dense<0.000000e+00> : vector<2xf32>
    %313 = vector.multi_reduction <add>, %312, %cst_93 [1] : vector<2x8xf32> to vector<2xf32>
    %314 = vector.shape_cast %313 : vector<2xf32> to vector<2x1xf32>
    %315 = arith.extui %299 : vector<2x8xi1> to vector<2x8xi32>
    %316 = arith.sitofp %315 : vector<2x8xi32> to vector<2x8xf32>
    %317 = arith.maximumf %207, %316 : vector<2x8xf32>
    %318 = vector.broadcast %267 : vector<2x1xf32> to vector<2x32xf32>
    %319 = vector.broadcast %55 : vector<1x32xf32> to vector<2x32xf32>
    %320 = arith.mulf %318, %319 : vector<2x32xf32>
    %321 = vector.broadcast %310 : vector<2x1xf32> to vector<2x32xf32>
    %322 = vector.broadcast %56 : vector<1x32xf32> to vector<2x32xf32>
    %323 = arith.mulf %321, %322 : vector<2x32xf32>
    %324 = arith.addf %320, %323 : vector<2x32xf32>
    %325 = vector.broadcast %57 : vector<1x32xf32> to vector<2x32xf32>
    %326 = arith.addf %324, %325 : vector<2x32xf32>
    %327 = vector.broadcast %270 : vector<2x1xf32> to vector<2x32xf32>
    %328 = vector.broadcast %55 : vector<1x32xf32> to vector<2x32xf32>
    %329 = arith.mulf %327, %328 : vector<2x32xf32>
    %330 = vector.broadcast %314 : vector<2x1xf32> to vector<2x32xf32>
    %331 = vector.broadcast %56 : vector<1x32xf32> to vector<2x32xf32>
    %332 = arith.mulf %330, %331 : vector<2x32xf32>
    %333 = arith.addf %329, %332 : vector<2x32xf32>
    %334 = vector.broadcast %57 : vector<1x32xf32> to vector<2x32xf32>
    %335 = arith.addf %333, %334 : vector<2x32xf32>
    %336 = arith.addf %326, %335 : vector<2x32xf32>
    %cst_94 = arith.constant 5.000000e-01 : f32
    %337 = vector.broadcast %cst_94 : f32 to vector<2x32xf32>
    %338 = arith.mulf %337, %336 : vector<2x32xf32>
    %cst_95 = arith.constant dense<0.000000e+00> : vector<2x32xf32>
    %339 = tpu.matmul %338, %58, %cst_95 {dimension_numbers = #tpu.dot_dimension_numbers<[1], [0], [0], [1], [0, 0, 1, 1], [], []>} : vector<2x32xf32>, vector<32x32xf32>, vector<2x32xf32> -> vector<2x32xf32>
    %340 = vector.broadcast %59 : vector<1x32xf32> to vector<2x32xf32>
    %341 = arith.addf %339, %340 : vector<2x32xf32>
    %cst_96 = arith.constant dense<0.000000e+00> : vector<2x32xf32>
    %342 = tpu.matmul %326, %60, %cst_96 {dimension_numbers = #tpu.dot_dimension_numbers<[1], [0], [0], [1], [0, 0, 1, 1], [], []>} : vector<2x32xf32>, vector<32x32xf32>, vector<2x32xf32> -> vector<2x32xf32>
    %343 = vector.broadcast %61 : vector<1x32xf32> to vector<2x32xf32>
    %344 = arith.addf %342, %343 : vector<2x32xf32>
    %cst_97 = arith.constant dense<0.000000e+00> : vector<2x32xf32>
    %345 = tpu.matmul %335, %60, %cst_97 {dimension_numbers = #tpu.dot_dimension_numbers<[1], [0], [0], [1], [0, 0, 1, 1], [], []>} : vector<2x32xf32>, vector<32x32xf32>, vector<2x32xf32> -> vector<2x32xf32>
    %346 = vector.broadcast %61 : vector<1x32xf32> to vector<2x32xf32>
    %347 = arith.addf %345, %346 : vector<2x32xf32>
    %348 = arith.mulf %341, %344 : vector<2x32xf32>
    %cst_98 = arith.constant dense<0.000000e+00> : vector<2xf32>
    %349 = vector.multi_reduction <add>, %348, %cst_98 [1] : vector<2x32xf32> to vector<2xf32>
    %350 = vector.shape_cast %349 : vector<2xf32> to vector<2x1xf32>
    %cst_99 = arith.constant 0.353553385 : f32
    %351 = vector.broadcast %cst_99 : f32 to vector<2x1xf32>
    %352 = arith.mulf %350, %351 : vector<2x1xf32>
    %353 = math.tanh %352 : vector<2x1xf32>
    %cst_100 = arith.constant 1.000000e+01 : f32
    %354 = vector.broadcast %cst_100 : f32 to vector<2x1xf32>
    %355 = arith.mulf %353, %354 : vector<2x1xf32>
    %356 = arith.mulf %341, %347 : vector<2x32xf32>
    %cst_101 = arith.constant dense<0.000000e+00> : vector<2xf32>
    %357 = vector.multi_reduction <add>, %356, %cst_101 [1] : vector<2x32xf32> to vector<2xf32>
    %358 = vector.shape_cast %357 : vector<2xf32> to vector<2x1xf32>
    %cst_102 = arith.constant 0.353553385 : f32
    %359 = vector.broadcast %cst_102 : f32 to vector<2x1xf32>
    %360 = arith.mulf %358, %359 : vector<2x1xf32>
    %361 = math.tanh %360 : vector<2x1xf32>
    %cst_103 = arith.constant 1.000000e+01 : f32
    %362 = vector.broadcast %cst_103 : f32 to vector<2x1xf32>
    %363 = arith.mulf %361, %362 : vector<2x1xf32>
    %364 = arith.cmpf ogt, %363, %355 : vector<2x1xf32>
    %365 = arith.maximumf %355, %363 : vector<2x1xf32>
    %366 = arith.subf %355, %365 : vector<2x1xf32>
    %367 = math.exp %366 : vector<2x1xf32>
    %368 = arith.subf %363, %365 : vector<2x1xf32>
    %369 = math.exp %368 : vector<2x1xf32>
    %370 = arith.select %364, %369, %367 : vector<2x1xi1>, vector<2x1xf32>
    %371 = arith.addf %367, %369 : vector<2x1xf32>
    %372 = arith.divf %370, %371 : vector<2x1xf32>
    %373 = arith.extui %364 : vector<2x1xi1> to vector<2x1xi32>
    %374 = arith.select %364, %314, %310 : vector<2x1xi1>, vector<2x1xf32>
    %cst_104 = arith.constant 0.000000e+00 : f32
    %375 = vector.broadcast %cst_104 : f32 to vector<2x1xf32>
    %376 = arith.select %364, %375, %310 : vector<2x1xi1>, vector<2x1xf32>
    %377 = arith.addf %267, %376 : vector<2x1xf32>
    %cst_105 = arith.constant 0.000000e+00 : f32
    %378 = vector.broadcast %cst_105 : f32 to vector<2x1xf32>
    %379 = arith.select %364, %314, %378 : vector<2x1xi1>, vector<2x1xf32>
    %380 = arith.addf %270, %379 : vector<2x1xf32>
    %381 = arith.subf %271, %374 : vector<2x1xf32>
    %382 = vector.broadcast %c2_i32 : i32 to vector<2x8xi32>
    %383 = arith.cmpi eq, %62, %382 : vector<2x8xi32>
    %384 = vector.shape_cast %306 : vector<2x1xf32> to vector<2x1xf32>
    %385 = vector.broadcast %384 : vector<2x1xf32> to vector<2x8xf32>
    %386 = arith.select %383, %385, %276 : vector<2x8xi1>, vector<2x8xf32>
    %387 = vector.shape_cast %372 : vector<2x1xf32> to vector<2x1xf32>
    %388 = vector.broadcast %387 : vector<2x1xf32> to vector<2x8xf32>
    %389 = arith.select %383, %388, %279 : vector<2x8xi1>, vector<2x8xf32>
    %390 = vector.shape_cast %297 : vector<2x1xi32> to vector<2x1xi32>
    %391 = vector.broadcast %390 : vector<2x1xi32> to vector<2x8xi32>
    %392 = arith.select %383, %391, %282 : vector<2x8xi1>, vector<2x8xi32>
    %393 = vector.shape_cast %373 : vector<2x1xi32> to vector<2x1xi32>
    %394 = vector.broadcast %393 : vector<2x1xi32> to vector<2x8xi32>
    %395 = arith.select %383, %394, %285 : vector<2x8xi1>, vector<2x8xi32>
    %c3_i32 = arith.constant 3 : i32
    %cst_106 = arith.constant 5.000000e-01 : f32
    %396 = vector.broadcast %cst_106 : f32 to vector<2x8xf32>
    %397 = arith.cmpf ogt, %317, %396 : vector<2x8xf32>
    %cst_107 = arith.constant -1.000000e+30 : f32
    %398 = vector.broadcast %cst_107 : f32 to vector<2x8xf32>
    %399 = arith.select %397, %398, %51 : vector<2x8xi1>, vector<2x8xf32>
    %cst_108 = arith.constant dense<0xFF800000> : vector<2xf32>
    %400 = vector.multi_reduction <maximumf>, %399, %cst_108 [1] : vector<2x8xf32> to vector<2xf32>
    %401 = vector.shape_cast %400 : vector<2xf32> to vector<2x1xf32>
    %402 = vector.broadcast %401 : vector<2x1xf32> to vector<2x8xf32>
    %403 = arith.cmpf oge, %399, %402 : vector<2x8xf32>
    %c8_i32_109 = arith.constant 8 : i32
    %404 = vector.broadcast %c8_i32_109 : i32 to vector<2x8xi32>
    %405 = arith.select %403, %62, %404 : vector<2x8xi1>, vector<2x8xi32>
    %cst_110 = arith.constant dense<2147483647> : vector<2xi32>
    %406 = vector.multi_reduction <minsi>, %405, %cst_110 [1] : vector<2x8xi32> to vector<2xi32>
    %407 = vector.shape_cast %406 : vector<2xi32> to vector<2x1xi32>
    %408 = vector.broadcast %407 : vector<2x1xi32> to vector<2x8xi32>
    %409 = arith.cmpi eq, %62, %408 : vector<2x8xi32>
    %410 = vector.broadcast %401 : vector<2x1xf32> to vector<2x8xf32>
    %411 = arith.subf %399, %410 : vector<2x8xf32>
    %412 = math.exp %411 : vector<2x8xf32>
    %cst_111 = arith.constant dense<0.000000e+00> : vector<2xf32>
    %413 = vector.multi_reduction <add>, %412, %cst_111 [1] : vector<2x8xf32> to vector<2xf32>
    %414 = vector.shape_cast %413 : vector<2xf32> to vector<2x1xf32>
    %cst_112 = arith.constant 1.000000e+00 : f32
    %415 = vector.broadcast %cst_112 : f32 to vector<2x1xf32>
    %416 = arith.divf %415, %414 : vector<2x1xf32>
    %cst_113 = arith.constant 0.000000e+00 : f32
    %417 = vector.broadcast %cst_113 : f32 to vector<2x8xf32>
    %418 = arith.select %409, %52, %417 : vector<2x8xi1>, vector<2x8xf32>
    %cst_114 = arith.constant dense<0.000000e+00> : vector<2xf32>
    %419 = vector.multi_reduction <add>, %418, %cst_114 [1] : vector<2x8xf32> to vector<2xf32>
    %420 = vector.shape_cast %419 : vector<2xf32> to vector<2x1xf32>
    %cst_115 = arith.constant 0.000000e+00 : f32
    %421 = vector.broadcast %cst_115 : f32 to vector<2x8xf32>
    %422 = arith.select %409, %53, %421 : vector<2x8xi1>, vector<2x8xf32>
    %cst_116 = arith.constant dense<0.000000e+00> : vector<2xf32>
    %423 = vector.multi_reduction <add>, %422, %cst_116 [1] : vector<2x8xf32> to vector<2xf32>
    %424 = vector.shape_cast %423 : vector<2xf32> to vector<2x1xf32>
    %425 = arith.extui %409 : vector<2x8xi1> to vector<2x8xi32>
    %426 = arith.sitofp %425 : vector<2x8xi32> to vector<2x8xf32>
    %427 = arith.maximumf %317, %426 : vector<2x8xf32>
    %428 = vector.broadcast %377 : vector<2x1xf32> to vector<2x32xf32>
    %429 = vector.broadcast %55 : vector<1x32xf32> to vector<2x32xf32>
    %430 = arith.mulf %428, %429 : vector<2x32xf32>
    %431 = vector.broadcast %420 : vector<2x1xf32> to vector<2x32xf32>
    %432 = vector.broadcast %56 : vector<1x32xf32> to vector<2x32xf32>
    %433 = arith.mulf %431, %432 : vector<2x32xf32>
    %434 = arith.addf %430, %433 : vector<2x32xf32>
    %435 = vector.broadcast %57 : vector<1x32xf32> to vector<2x32xf32>
    %436 = arith.addf %434, %435 : vector<2x32xf32>
    %437 = vector.broadcast %380 : vector<2x1xf32> to vector<2x32xf32>
    %438 = vector.broadcast %55 : vector<1x32xf32> to vector<2x32xf32>
    %439 = arith.mulf %437, %438 : vector<2x32xf32>
    %440 = vector.broadcast %424 : vector<2x1xf32> to vector<2x32xf32>
    %441 = vector.broadcast %56 : vector<1x32xf32> to vector<2x32xf32>
    %442 = arith.mulf %440, %441 : vector<2x32xf32>
    %443 = arith.addf %439, %442 : vector<2x32xf32>
    %444 = vector.broadcast %57 : vector<1x32xf32> to vector<2x32xf32>
    %445 = arith.addf %443, %444 : vector<2x32xf32>
    %446 = arith.addf %436, %445 : vector<2x32xf32>
    %cst_117 = arith.constant 5.000000e-01 : f32
    %447 = vector.broadcast %cst_117 : f32 to vector<2x32xf32>
    %448 = arith.mulf %447, %446 : vector<2x32xf32>
    %cst_118 = arith.constant dense<0.000000e+00> : vector<2x32xf32>
    %449 = tpu.matmul %448, %58, %cst_118 {dimension_numbers = #tpu.dot_dimension_numbers<[1], [0], [0], [1], [0, 0, 1, 1], [], []>} : vector<2x32xf32>, vector<32x32xf32>, vector<2x32xf32> -> vector<2x32xf32>
    %450 = vector.broadcast %59 : vector<1x32xf32> to vector<2x32xf32>
    %451 = arith.addf %449, %450 : vector<2x32xf32>
    %cst_119 = arith.constant dense<0.000000e+00> : vector<2x32xf32>
    %452 = tpu.matmul %436, %60, %cst_119 {dimension_numbers = #tpu.dot_dimension_numbers<[1], [0], [0], [1], [0, 0, 1, 1], [], []>} : vector<2x32xf32>, vector<32x32xf32>, vector<2x32xf32> -> vector<2x32xf32>
    %453 = vector.broadcast %61 : vector<1x32xf32> to vector<2x32xf32>
    %454 = arith.addf %452, %453 : vector<2x32xf32>
    %cst_120 = arith.constant dense<0.000000e+00> : vector<2x32xf32>
    %455 = tpu.matmul %445, %60, %cst_120 {dimension_numbers = #tpu.dot_dimension_numbers<[1], [0], [0], [1], [0, 0, 1, 1], [], []>} : vector<2x32xf32>, vector<32x32xf32>, vector<2x32xf32> -> vector<2x32xf32>
    %456 = vector.broadcast %61 : vector<1x32xf32> to vector<2x32xf32>
    %457 = arith.addf %455, %456 : vector<2x32xf32>
    %458 = arith.mulf %451, %454 : vector<2x32xf32>
    %cst_121 = arith.constant dense<0.000000e+00> : vector<2xf32>
    %459 = vector.multi_reduction <add>, %458, %cst_121 [1] : vector<2x32xf32> to vector<2xf32>
    %460 = vector.shape_cast %459 : vector<2xf32> to vector<2x1xf32>
    %cst_122 = arith.constant 0.353553385 : f32
    %461 = vector.broadcast %cst_122 : f32 to vector<2x1xf32>
    %462 = arith.mulf %460, %461 : vector<2x1xf32>
    %463 = math.tanh %462 : vector<2x1xf32>
    %cst_123 = arith.constant 1.000000e+01 : f32
    %464 = vector.broadcast %cst_123 : f32 to vector<2x1xf32>
    %465 = arith.mulf %463, %464 : vector<2x1xf32>
    %466 = arith.mulf %451, %457 : vector<2x32xf32>
    %cst_124 = arith.constant dense<0.000000e+00> : vector<2xf32>
    %467 = vector.multi_reduction <add>, %466, %cst_124 [1] : vector<2x32xf32> to vector<2xf32>
    %468 = vector.shape_cast %467 : vector<2xf32> to vector<2x1xf32>
    %cst_125 = arith.constant 0.353553385 : f32
    %469 = vector.broadcast %cst_125 : f32 to vector<2x1xf32>
    %470 = arith.mulf %468, %469 : vector<2x1xf32>
    %471 = math.tanh %470 : vector<2x1xf32>
    %cst_126 = arith.constant 1.000000e+01 : f32
    %472 = vector.broadcast %cst_126 : f32 to vector<2x1xf32>
    %473 = arith.mulf %471, %472 : vector<2x1xf32>
    %474 = arith.cmpf ogt, %473, %465 : vector<2x1xf32>
    %475 = arith.maximumf %465, %473 : vector<2x1xf32>
    %476 = arith.subf %465, %475 : vector<2x1xf32>
    %477 = math.exp %476 : vector<2x1xf32>
    %478 = arith.subf %473, %475 : vector<2x1xf32>
    %479 = math.exp %478 : vector<2x1xf32>
    %480 = arith.select %474, %479, %477 : vector<2x1xi1>, vector<2x1xf32>
    %481 = arith.addf %477, %479 : vector<2x1xf32>
    %482 = arith.divf %480, %481 : vector<2x1xf32>
    %483 = arith.extui %474 : vector<2x1xi1> to vector<2x1xi32>
    %484 = arith.select %474, %424, %420 : vector<2x1xi1>, vector<2x1xf32>
    %cst_127 = arith.constant 0.000000e+00 : f32
    %485 = vector.broadcast %cst_127 : f32 to vector<2x1xf32>
    %486 = arith.select %474, %485, %420 : vector<2x1xi1>, vector<2x1xf32>
    %487 = arith.addf %377, %486 : vector<2x1xf32>
    %cst_128 = arith.constant 0.000000e+00 : f32
    %488 = vector.broadcast %cst_128 : f32 to vector<2x1xf32>
    %489 = arith.select %474, %424, %488 : vector<2x1xi1>, vector<2x1xf32>
    %490 = arith.addf %380, %489 : vector<2x1xf32>
    %491 = arith.subf %381, %484 : vector<2x1xf32>
    %492 = vector.broadcast %c3_i32 : i32 to vector<2x8xi32>
    %493 = arith.cmpi eq, %62, %492 : vector<2x8xi32>
    %494 = vector.shape_cast %416 : vector<2x1xf32> to vector<2x1xf32>
    %495 = vector.broadcast %494 : vector<2x1xf32> to vector<2x8xf32>
    %496 = arith.select %493, %495, %386 : vector<2x8xi1>, vector<2x8xf32>
    %497 = vector.shape_cast %482 : vector<2x1xf32> to vector<2x1xf32>
    %498 = vector.broadcast %497 : vector<2x1xf32> to vector<2x8xf32>
    %499 = arith.select %493, %498, %389 : vector<2x8xi1>, vector<2x8xf32>
    %500 = vector.shape_cast %407 : vector<2x1xi32> to vector<2x1xi32>
    %501 = vector.broadcast %500 : vector<2x1xi32> to vector<2x8xi32>
    %502 = arith.select %493, %501, %392 : vector<2x8xi1>, vector<2x8xi32>
    %503 = vector.shape_cast %483 : vector<2x1xi32> to vector<2x1xi32>
    %504 = vector.broadcast %503 : vector<2x1xi32> to vector<2x8xi32>
    %505 = arith.select %493, %504, %395 : vector<2x8xi1>, vector<2x8xi32>
    %c4_i32 = arith.constant 4 : i32
    %cst_129 = arith.constant 5.000000e-01 : f32
    %506 = vector.broadcast %cst_129 : f32 to vector<2x8xf32>
    %507 = arith.cmpf ogt, %427, %506 : vector<2x8xf32>
    %cst_130 = arith.constant -1.000000e+30 : f32
    %508 = vector.broadcast %cst_130 : f32 to vector<2x8xf32>
    %509 = arith.select %507, %508, %51 : vector<2x8xi1>, vector<2x8xf32>
    %cst_131 = arith.constant dense<0xFF800000> : vector<2xf32>
    %510 = vector.multi_reduction <maximumf>, %509, %cst_131 [1] : vector<2x8xf32> to vector<2xf32>
    %511 = vector.shape_cast %510 : vector<2xf32> to vector<2x1xf32>
    %512 = vector.broadcast %511 : vector<2x1xf32> to vector<2x8xf32>
    %513 = arith.cmpf oge, %509, %512 : vector<2x8xf32>
    %c8_i32_132 = arith.constant 8 : i32
    %514 = vector.broadcast %c8_i32_132 : i32 to vector<2x8xi32>
    %515 = arith.select %513, %62, %514 : vector<2x8xi1>, vector<2x8xi32>
    %cst_133 = arith.constant dense<2147483647> : vector<2xi32>
    %516 = vector.multi_reduction <minsi>, %515, %cst_133 [1] : vector<2x8xi32> to vector<2xi32>
    %517 = vector.shape_cast %516 : vector<2xi32> to vector<2x1xi32>
    %518 = vector.broadcast %517 : vector<2x1xi32> to vector<2x8xi32>
    %519 = arith.cmpi eq, %62, %518 : vector<2x8xi32>
    %520 = vector.broadcast %511 : vector<2x1xf32> to vector<2x8xf32>
    %521 = arith.subf %509, %520 : vector<2x8xf32>
    %522 = math.exp %521 : vector<2x8xf32>
    %cst_134 = arith.constant dense<0.000000e+00> : vector<2xf32>
    %523 = vector.multi_reduction <add>, %522, %cst_134 [1] : vector<2x8xf32> to vector<2xf32>
    %524 = vector.shape_cast %523 : vector<2xf32> to vector<2x1xf32>
    %cst_135 = arith.constant 1.000000e+00 : f32
    %525 = vector.broadcast %cst_135 : f32 to vector<2x1xf32>
    %526 = arith.divf %525, %524 : vector<2x1xf32>
    %cst_136 = arith.constant 0.000000e+00 : f32
    %527 = vector.broadcast %cst_136 : f32 to vector<2x8xf32>
    %528 = arith.select %519, %52, %527 : vector<2x8xi1>, vector<2x8xf32>
    %cst_137 = arith.constant dense<0.000000e+00> : vector<2xf32>
    %529 = vector.multi_reduction <add>, %528, %cst_137 [1] : vector<2x8xf32> to vector<2xf32>
    %530 = vector.shape_cast %529 : vector<2xf32> to vector<2x1xf32>
    %cst_138 = arith.constant 0.000000e+00 : f32
    %531 = vector.broadcast %cst_138 : f32 to vector<2x8xf32>
    %532 = arith.select %519, %53, %531 : vector<2x8xi1>, vector<2x8xf32>
    %cst_139 = arith.constant dense<0.000000e+00> : vector<2xf32>
    %533 = vector.multi_reduction <add>, %532, %cst_139 [1] : vector<2x8xf32> to vector<2xf32>
    %534 = vector.shape_cast %533 : vector<2xf32> to vector<2x1xf32>
    %535 = arith.extui %519 : vector<2x8xi1> to vector<2x8xi32>
    %536 = arith.sitofp %535 : vector<2x8xi32> to vector<2x8xf32>
    %537 = arith.maximumf %427, %536 : vector<2x8xf32>
    %538 = vector.broadcast %487 : vector<2x1xf32> to vector<2x32xf32>
    %539 = vector.broadcast %55 : vector<1x32xf32> to vector<2x32xf32>
    %540 = arith.mulf %538, %539 : vector<2x32xf32>
    %541 = vector.broadcast %530 : vector<2x1xf32> to vector<2x32xf32>
    %542 = vector.broadcast %56 : vector<1x32xf32> to vector<2x32xf32>
    %543 = arith.mulf %541, %542 : vector<2x32xf32>
    %544 = arith.addf %540, %543 : vector<2x32xf32>
    %545 = vector.broadcast %57 : vector<1x32xf32> to vector<2x32xf32>
    %546 = arith.addf %544, %545 : vector<2x32xf32>
    %547 = vector.broadcast %490 : vector<2x1xf32> to vector<2x32xf32>
    %548 = vector.broadcast %55 : vector<1x32xf32> to vector<2x32xf32>
    %549 = arith.mulf %547, %548 : vector<2x32xf32>
    %550 = vector.broadcast %534 : vector<2x1xf32> to vector<2x32xf32>
    %551 = vector.broadcast %56 : vector<1x32xf32> to vector<2x32xf32>
    %552 = arith.mulf %550, %551 : vector<2x32xf32>
    %553 = arith.addf %549, %552 : vector<2x32xf32>
    %554 = vector.broadcast %57 : vector<1x32xf32> to vector<2x32xf32>
    %555 = arith.addf %553, %554 : vector<2x32xf32>
    %556 = arith.addf %546, %555 : vector<2x32xf32>
    %cst_140 = arith.constant 5.000000e-01 : f32
    %557 = vector.broadcast %cst_140 : f32 to vector<2x32xf32>
    %558 = arith.mulf %557, %556 : vector<2x32xf32>
    %cst_141 = arith.constant dense<0.000000e+00> : vector<2x32xf32>
    %559 = tpu.matmul %558, %58, %cst_141 {dimension_numbers = #tpu.dot_dimension_numbers<[1], [0], [0], [1], [0, 0, 1, 1], [], []>} : vector<2x32xf32>, vector<32x32xf32>, vector<2x32xf32> -> vector<2x32xf32>
    %560 = vector.broadcast %59 : vector<1x32xf32> to vector<2x32xf32>
    %561 = arith.addf %559, %560 : vector<2x32xf32>
    %cst_142 = arith.constant dense<0.000000e+00> : vector<2x32xf32>
    %562 = tpu.matmul %546, %60, %cst_142 {dimension_numbers = #tpu.dot_dimension_numbers<[1], [0], [0], [1], [0, 0, 1, 1], [], []>} : vector<2x32xf32>, vector<32x32xf32>, vector<2x32xf32> -> vector<2x32xf32>
    %563 = vector.broadcast %61 : vector<1x32xf32> to vector<2x32xf32>
    %564 = arith.addf %562, %563 : vector<2x32xf32>
    %cst_143 = arith.constant dense<0.000000e+00> : vector<2x32xf32>
    %565 = tpu.matmul %555, %60, %cst_143 {dimension_numbers = #tpu.dot_dimension_numbers<[1], [0], [0], [1], [0, 0, 1, 1], [], []>} : vector<2x32xf32>, vector<32x32xf32>, vector<2x32xf32> -> vector<2x32xf32>
    %566 = vector.broadcast %61 : vector<1x32xf32> to vector<2x32xf32>
    %567 = arith.addf %565, %566 : vector<2x32xf32>
    %568 = arith.mulf %561, %564 : vector<2x32xf32>
    %cst_144 = arith.constant dense<0.000000e+00> : vector<2xf32>
    %569 = vector.multi_reduction <add>, %568, %cst_144 [1] : vector<2x32xf32> to vector<2xf32>
    %570 = vector.shape_cast %569 : vector<2xf32> to vector<2x1xf32>
    %cst_145 = arith.constant 0.353553385 : f32
    %571 = vector.broadcast %cst_145 : f32 to vector<2x1xf32>
    %572 = arith.mulf %570, %571 : vector<2x1xf32>
    %573 = math.tanh %572 : vector<2x1xf32>
    %cst_146 = arith.constant 1.000000e+01 : f32
    %574 = vector.broadcast %cst_146 : f32 to vector<2x1xf32>
    %575 = arith.mulf %573, %574 : vector<2x1xf32>
    %576 = arith.mulf %561, %567 : vector<2x32xf32>
    %cst_147 = arith.constant dense<0.000000e+00> : vector<2xf32>
    %577 = vector.multi_reduction <add>, %576, %cst_147 [1] : vector<2x32xf32> to vector<2xf32>
    %578 = vector.shape_cast %577 : vector<2xf32> to vector<2x1xf32>
    %cst_148 = arith.constant 0.353553385 : f32
    %579 = vector.broadcast %cst_148 : f32 to vector<2x1xf32>
    %580 = arith.mulf %578, %579 : vector<2x1xf32>
    %581 = math.tanh %580 : vector<2x1xf32>
    %cst_149 = arith.constant 1.000000e+01 : f32
    %582 = vector.broadcast %cst_149 : f32 to vector<2x1xf32>
    %583 = arith.mulf %581, %582 : vector<2x1xf32>
    %584 = arith.cmpf ogt, %583, %575 : vector<2x1xf32>
    %585 = arith.maximumf %575, %583 : vector<2x1xf32>
    %586 = arith.subf %575, %585 : vector<2x1xf32>
    %587 = math.exp %586 : vector<2x1xf32>
    %588 = arith.subf %583, %585 : vector<2x1xf32>
    %589 = math.exp %588 : vector<2x1xf32>
    %590 = arith.select %584, %589, %587 : vector<2x1xi1>, vector<2x1xf32>
    %591 = arith.addf %587, %589 : vector<2x1xf32>
    %592 = arith.divf %590, %591 : vector<2x1xf32>
    %593 = arith.extui %584 : vector<2x1xi1> to vector<2x1xi32>
    %594 = arith.select %584, %534, %530 : vector<2x1xi1>, vector<2x1xf32>
    %cst_150 = arith.constant 0.000000e+00 : f32
    %595 = vector.broadcast %cst_150 : f32 to vector<2x1xf32>
    %596 = arith.select %584, %595, %530 : vector<2x1xi1>, vector<2x1xf32>
    %597 = arith.addf %487, %596 : vector<2x1xf32>
    %cst_151 = arith.constant 0.000000e+00 : f32
    %598 = vector.broadcast %cst_151 : f32 to vector<2x1xf32>
    %599 = arith.select %584, %534, %598 : vector<2x1xi1>, vector<2x1xf32>
    %600 = arith.addf %490, %599 : vector<2x1xf32>
    %601 = arith.subf %491, %594 : vector<2x1xf32>
    %602 = vector.broadcast %c4_i32 : i32 to vector<2x8xi32>
    %603 = arith.cmpi eq, %62, %602 : vector<2x8xi32>
    %604 = vector.shape_cast %526 : vector<2x1xf32> to vector<2x1xf32>
    %605 = vector.broadcast %604 : vector<2x1xf32> to vector<2x8xf32>
    %606 = arith.select %603, %605, %496 : vector<2x8xi1>, vector<2x8xf32>
    %607 = vector.shape_cast %592 : vector<2x1xf32> to vector<2x1xf32>
    %608 = vector.broadcast %607 : vector<2x1xf32> to vector<2x8xf32>
    %609 = arith.select %603, %608, %499 : vector<2x8xi1>, vector<2x8xf32>
    %610 = vector.shape_cast %517 : vector<2x1xi32> to vector<2x1xi32>
    %611 = vector.broadcast %610 : vector<2x1xi32> to vector<2x8xi32>
    %612 = arith.select %603, %611, %502 : vector<2x8xi1>, vector<2x8xi32>
    %613 = vector.shape_cast %593 : vector<2x1xi32> to vector<2x1xi32>
    %614 = vector.broadcast %613 : vector<2x1xi32> to vector<2x8xi32>
    %615 = arith.select %603, %614, %505 : vector<2x8xi1>, vector<2x8xi32>
    %c5_i32 = arith.constant 5 : i32
    %cst_152 = arith.constant 5.000000e-01 : f32
    %616 = vector.broadcast %cst_152 : f32 to vector<2x8xf32>
    %617 = arith.cmpf ogt, %537, %616 : vector<2x8xf32>
    %cst_153 = arith.constant -1.000000e+30 : f32
    %618 = vector.broadcast %cst_153 : f32 to vector<2x8xf32>
    %619 = arith.select %617, %618, %51 : vector<2x8xi1>, vector<2x8xf32>
    %cst_154 = arith.constant dense<0xFF800000> : vector<2xf32>
    %620 = vector.multi_reduction <maximumf>, %619, %cst_154 [1] : vector<2x8xf32> to vector<2xf32>
    %621 = vector.shape_cast %620 : vector<2xf32> to vector<2x1xf32>
    %622 = vector.broadcast %621 : vector<2x1xf32> to vector<2x8xf32>
    %623 = arith.cmpf oge, %619, %622 : vector<2x8xf32>
    %c8_i32_155 = arith.constant 8 : i32
    %624 = vector.broadcast %c8_i32_155 : i32 to vector<2x8xi32>
    %625 = arith.select %623, %62, %624 : vector<2x8xi1>, vector<2x8xi32>
    %cst_156 = arith.constant dense<2147483647> : vector<2xi32>
    %626 = vector.multi_reduction <minsi>, %625, %cst_156 [1] : vector<2x8xi32> to vector<2xi32>
    %627 = vector.shape_cast %626 : vector<2xi32> to vector<2x1xi32>
    %628 = vector.broadcast %627 : vector<2x1xi32> to vector<2x8xi32>
    %629 = arith.cmpi eq, %62, %628 : vector<2x8xi32>
    %630 = vector.broadcast %621 : vector<2x1xf32> to vector<2x8xf32>
    %631 = arith.subf %619, %630 : vector<2x8xf32>
    %632 = math.exp %631 : vector<2x8xf32>
    %cst_157 = arith.constant dense<0.000000e+00> : vector<2xf32>
    %633 = vector.multi_reduction <add>, %632, %cst_157 [1] : vector<2x8xf32> to vector<2xf32>
    %634 = vector.shape_cast %633 : vector<2xf32> to vector<2x1xf32>
    %cst_158 = arith.constant 1.000000e+00 : f32
    %635 = vector.broadcast %cst_158 : f32 to vector<2x1xf32>
    %636 = arith.divf %635, %634 : vector<2x1xf32>
    %cst_159 = arith.constant 0.000000e+00 : f32
    %637 = vector.broadcast %cst_159 : f32 to vector<2x8xf32>
    %638 = arith.select %629, %52, %637 : vector<2x8xi1>, vector<2x8xf32>
    %cst_160 = arith.constant dense<0.000000e+00> : vector<2xf32>
    %639 = vector.multi_reduction <add>, %638, %cst_160 [1] : vector<2x8xf32> to vector<2xf32>
    %640 = vector.shape_cast %639 : vector<2xf32> to vector<2x1xf32>
    %cst_161 = arith.constant 0.000000e+00 : f32
    %641 = vector.broadcast %cst_161 : f32 to vector<2x8xf32>
    %642 = arith.select %629, %53, %641 : vector<2x8xi1>, vector<2x8xf32>
    %cst_162 = arith.constant dense<0.000000e+00> : vector<2xf32>
    %643 = vector.multi_reduction <add>, %642, %cst_162 [1] : vector<2x8xf32> to vector<2xf32>
    %644 = vector.shape_cast %643 : vector<2xf32> to vector<2x1xf32>
    %645 = arith.extui %629 : vector<2x8xi1> to vector<2x8xi32>
    %646 = arith.sitofp %645 : vector<2x8xi32> to vector<2x8xf32>
    %647 = arith.maximumf %537, %646 : vector<2x8xf32>
    %648 = vector.broadcast %597 : vector<2x1xf32> to vector<2x32xf32>
    %649 = vector.broadcast %55 : vector<1x32xf32> to vector<2x32xf32>
    %650 = arith.mulf %648, %649 : vector<2x32xf32>
    %651 = vector.broadcast %640 : vector<2x1xf32> to vector<2x32xf32>
    %652 = vector.broadcast %56 : vector<1x32xf32> to vector<2x32xf32>
    %653 = arith.mulf %651, %652 : vector<2x32xf32>
    %654 = arith.addf %650, %653 : vector<2x32xf32>
    %655 = vector.broadcast %57 : vector<1x32xf32> to vector<2x32xf32>
    %656 = arith.addf %654, %655 : vector<2x32xf32>
    %657 = vector.broadcast %600 : vector<2x1xf32> to vector<2x32xf32>
    %658 = vector.broadcast %55 : vector<1x32xf32> to vector<2x32xf32>
    %659 = arith.mulf %657, %658 : vector<2x32xf32>
    %660 = vector.broadcast %644 : vector<2x1xf32> to vector<2x32xf32>
    %661 = vector.broadcast %56 : vector<1x32xf32> to vector<2x32xf32>
    %662 = arith.mulf %660, %661 : vector<2x32xf32>
    %663 = arith.addf %659, %662 : vector<2x32xf32>
    %664 = vector.broadcast %57 : vector<1x32xf32> to vector<2x32xf32>
    %665 = arith.addf %663, %664 : vector<2x32xf32>
    %666 = arith.addf %656, %665 : vector<2x32xf32>
    %cst_163 = arith.constant 5.000000e-01 : f32
    %667 = vector.broadcast %cst_163 : f32 to vector<2x32xf32>
    %668 = arith.mulf %667, %666 : vector<2x32xf32>
    %cst_164 = arith.constant dense<0.000000e+00> : vector<2x32xf32>
    %669 = tpu.matmul %668, %58, %cst_164 {dimension_numbers = #tpu.dot_dimension_numbers<[1], [0], [0], [1], [0, 0, 1, 1], [], []>} : vector<2x32xf32>, vector<32x32xf32>, vector<2x32xf32> -> vector<2x32xf32>
    %670 = vector.broadcast %59 : vector<1x32xf32> to vector<2x32xf32>
    %671 = arith.addf %669, %670 : vector<2x32xf32>
    %cst_165 = arith.constant dense<0.000000e+00> : vector<2x32xf32>
    %672 = tpu.matmul %656, %60, %cst_165 {dimension_numbers = #tpu.dot_dimension_numbers<[1], [0], [0], [1], [0, 0, 1, 1], [], []>} : vector<2x32xf32>, vector<32x32xf32>, vector<2x32xf32> -> vector<2x32xf32>
    %673 = vector.broadcast %61 : vector<1x32xf32> to vector<2x32xf32>
    %674 = arith.addf %672, %673 : vector<2x32xf32>
    %cst_166 = arith.constant dense<0.000000e+00> : vector<2x32xf32>
    %675 = tpu.matmul %665, %60, %cst_166 {dimension_numbers = #tpu.dot_dimension_numbers<[1], [0], [0], [1], [0, 0, 1, 1], [], []>} : vector<2x32xf32>, vector<32x32xf32>, vector<2x32xf32> -> vector<2x32xf32>
    %676 = vector.broadcast %61 : vector<1x32xf32> to vector<2x32xf32>
    %677 = arith.addf %675, %676 : vector<2x32xf32>
    %678 = arith.mulf %671, %674 : vector<2x32xf32>
    %cst_167 = arith.constant dense<0.000000e+00> : vector<2xf32>
    %679 = vector.multi_reduction <add>, %678, %cst_167 [1] : vector<2x32xf32> to vector<2xf32>
    %680 = vector.shape_cast %679 : vector<2xf32> to vector<2x1xf32>
    %cst_168 = arith.constant 0.353553385 : f32
    %681 = vector.broadcast %cst_168 : f32 to vector<2x1xf32>
    %682 = arith.mulf %680, %681 : vector<2x1xf32>
    %683 = math.tanh %682 : vector<2x1xf32>
    %cst_169 = arith.constant 1.000000e+01 : f32
    %684 = vector.broadcast %cst_169 : f32 to vector<2x1xf32>
    %685 = arith.mulf %683, %684 : vector<2x1xf32>
    %686 = arith.mulf %671, %677 : vector<2x32xf32>
    %cst_170 = arith.constant dense<0.000000e+00> : vector<2xf32>
    %687 = vector.multi_reduction <add>, %686, %cst_170 [1] : vector<2x32xf32> to vector<2xf32>
    %688 = vector.shape_cast %687 : vector<2xf32> to vector<2x1xf32>
    %cst_171 = arith.constant 0.353553385 : f32
    %689 = vector.broadcast %cst_171 : f32 to vector<2x1xf32>
    %690 = arith.mulf %688, %689 : vector<2x1xf32>
    %691 = math.tanh %690 : vector<2x1xf32>
    %cst_172 = arith.constant 1.000000e+01 : f32
    %692 = vector.broadcast %cst_172 : f32 to vector<2x1xf32>
    %693 = arith.mulf %691, %692 : vector<2x1xf32>
    %694 = arith.cmpf ogt, %693, %685 : vector<2x1xf32>
    %695 = arith.maximumf %685, %693 : vector<2x1xf32>
    %696 = arith.subf %685, %695 : vector<2x1xf32>
    %697 = math.exp %696 : vector<2x1xf32>
    %698 = arith.subf %693, %695 : vector<2x1xf32>
    %699 = math.exp %698 : vector<2x1xf32>
    %700 = arith.select %694, %699, %697 : vector<2x1xi1>, vector<2x1xf32>
    %701 = arith.addf %697, %699 : vector<2x1xf32>
    %702 = arith.divf %700, %701 : vector<2x1xf32>
    %703 = arith.extui %694 : vector<2x1xi1> to vector<2x1xi32>
    %704 = arith.select %694, %644, %640 : vector<2x1xi1>, vector<2x1xf32>
    %cst_173 = arith.constant 0.000000e+00 : f32
    %705 = vector.broadcast %cst_173 : f32 to vector<2x1xf32>
    %706 = arith.select %694, %705, %640 : vector<2x1xi1>, vector<2x1xf32>
    %707 = arith.addf %597, %706 : vector<2x1xf32>
    %cst_174 = arith.constant 0.000000e+00 : f32
    %708 = vector.broadcast %cst_174 : f32 to vector<2x1xf32>
    %709 = arith.select %694, %644, %708 : vector<2x1xi1>, vector<2x1xf32>
    %710 = arith.addf %600, %709 : vector<2x1xf32>
    %711 = arith.subf %601, %704 : vector<2x1xf32>
    %712 = vector.broadcast %c5_i32 : i32 to vector<2x8xi32>
    %713 = arith.cmpi eq, %62, %712 : vector<2x8xi32>
    %714 = vector.shape_cast %636 : vector<2x1xf32> to vector<2x1xf32>
    %715 = vector.broadcast %714 : vector<2x1xf32> to vector<2x8xf32>
    %716 = arith.select %713, %715, %606 : vector<2x8xi1>, vector<2x8xf32>
    %717 = vector.shape_cast %702 : vector<2x1xf32> to vector<2x1xf32>
    %718 = vector.broadcast %717 : vector<2x1xf32> to vector<2x8xf32>
    %719 = arith.select %713, %718, %609 : vector<2x8xi1>, vector<2x8xf32>
    %720 = vector.shape_cast %627 : vector<2x1xi32> to vector<2x1xi32>
    %721 = vector.broadcast %720 : vector<2x1xi32> to vector<2x8xi32>
    %722 = arith.select %713, %721, %612 : vector<2x8xi1>, vector<2x8xi32>
    %723 = vector.shape_cast %703 : vector<2x1xi32> to vector<2x1xi32>
    %724 = vector.broadcast %723 : vector<2x1xi32> to vector<2x8xi32>
    %725 = arith.select %713, %724, %615 : vector<2x8xi1>, vector<2x8xi32>
    %c6_i32 = arith.constant 6 : i32
    %cst_175 = arith.constant 5.000000e-01 : f32
    %726 = vector.broadcast %cst_175 : f32 to vector<2x8xf32>
    %727 = arith.cmpf ogt, %647, %726 : vector<2x8xf32>
    %cst_176 = arith.constant -1.000000e+30 : f32
    %728 = vector.broadcast %cst_176 : f32 to vector<2x8xf32>
    %729 = arith.select %727, %728, %51 : vector<2x8xi1>, vector<2x8xf32>
    %cst_177 = arith.constant dense<0xFF800000> : vector<2xf32>
    %730 = vector.multi_reduction <maximumf>, %729, %cst_177 [1] : vector<2x8xf32> to vector<2xf32>
    %731 = vector.shape_cast %730 : vector<2xf32> to vector<2x1xf32>
    %732 = vector.broadcast %731 : vector<2x1xf32> to vector<2x8xf32>
    %733 = arith.cmpf oge, %729, %732 : vector<2x8xf32>
    %c8_i32_178 = arith.constant 8 : i32
    %734 = vector.broadcast %c8_i32_178 : i32 to vector<2x8xi32>
    %735 = arith.select %733, %62, %734 : vector<2x8xi1>, vector<2x8xi32>
    %cst_179 = arith.constant dense<2147483647> : vector<2xi32>
    %736 = vector.multi_reduction <minsi>, %735, %cst_179 [1] : vector<2x8xi32> to vector<2xi32>
    %737 = vector.shape_cast %736 : vector<2xi32> to vector<2x1xi32>
    %738 = vector.broadcast %737 : vector<2x1xi32> to vector<2x8xi32>
    %739 = arith.cmpi eq, %62, %738 : vector<2x8xi32>
    %740 = vector.broadcast %731 : vector<2x1xf32> to vector<2x8xf32>
    %741 = arith.subf %729, %740 : vector<2x8xf32>
    %742 = math.exp %741 : vector<2x8xf32>
    %cst_180 = arith.constant dense<0.000000e+00> : vector<2xf32>
    %743 = vector.multi_reduction <add>, %742, %cst_180 [1] : vector<2x8xf32> to vector<2xf32>
    %744 = vector.shape_cast %743 : vector<2xf32> to vector<2x1xf32>
    %cst_181 = arith.constant 1.000000e+00 : f32
    %745 = vector.broadcast %cst_181 : f32 to vector<2x1xf32>
    %746 = arith.divf %745, %744 : vector<2x1xf32>
    %cst_182 = arith.constant 0.000000e+00 : f32
    %747 = vector.broadcast %cst_182 : f32 to vector<2x8xf32>
    %748 = arith.select %739, %52, %747 : vector<2x8xi1>, vector<2x8xf32>
    %cst_183 = arith.constant dense<0.000000e+00> : vector<2xf32>
    %749 = vector.multi_reduction <add>, %748, %cst_183 [1] : vector<2x8xf32> to vector<2xf32>
    %750 = vector.shape_cast %749 : vector<2xf32> to vector<2x1xf32>
    %cst_184 = arith.constant 0.000000e+00 : f32
    %751 = vector.broadcast %cst_184 : f32 to vector<2x8xf32>
    %752 = arith.select %739, %53, %751 : vector<2x8xi1>, vector<2x8xf32>
    %cst_185 = arith.constant dense<0.000000e+00> : vector<2xf32>
    %753 = vector.multi_reduction <add>, %752, %cst_185 [1] : vector<2x8xf32> to vector<2xf32>
    %754 = vector.shape_cast %753 : vector<2xf32> to vector<2x1xf32>
    %755 = arith.extui %739 : vector<2x8xi1> to vector<2x8xi32>
    %756 = arith.sitofp %755 : vector<2x8xi32> to vector<2x8xf32>
    %757 = arith.maximumf %647, %756 : vector<2x8xf32>
    %758 = vector.broadcast %707 : vector<2x1xf32> to vector<2x32xf32>
    %759 = vector.broadcast %55 : vector<1x32xf32> to vector<2x32xf32>
    %760 = arith.mulf %758, %759 : vector<2x32xf32>
    %761 = vector.broadcast %750 : vector<2x1xf32> to vector<2x32xf32>
    %762 = vector.broadcast %56 : vector<1x32xf32> to vector<2x32xf32>
    %763 = arith.mulf %761, %762 : vector<2x32xf32>
    %764 = arith.addf %760, %763 : vector<2x32xf32>
    %765 = vector.broadcast %57 : vector<1x32xf32> to vector<2x32xf32>
    %766 = arith.addf %764, %765 : vector<2x32xf32>
    %767 = vector.broadcast %710 : vector<2x1xf32> to vector<2x32xf32>
    %768 = vector.broadcast %55 : vector<1x32xf32> to vector<2x32xf32>
    %769 = arith.mulf %767, %768 : vector<2x32xf32>
    %770 = vector.broadcast %754 : vector<2x1xf32> to vector<2x32xf32>
    %771 = vector.broadcast %56 : vector<1x32xf32> to vector<2x32xf32>
    %772 = arith.mulf %770, %771 : vector<2x32xf32>
    %773 = arith.addf %769, %772 : vector<2x32xf32>
    %774 = vector.broadcast %57 : vector<1x32xf32> to vector<2x32xf32>
    %775 = arith.addf %773, %774 : vector<2x32xf32>
    %776 = arith.addf %766, %775 : vector<2x32xf32>
    %cst_186 = arith.constant 5.000000e-01 : f32
    %777 = vector.broadcast %cst_186 : f32 to vector<2x32xf32>
    %778 = arith.mulf %777, %776 : vector<2x32xf32>
    %cst_187 = arith.constant dense<0.000000e+00> : vector<2x32xf32>
    %779 = tpu.matmul %778, %58, %cst_187 {dimension_numbers = #tpu.dot_dimension_numbers<[1], [0], [0], [1], [0, 0, 1, 1], [], []>} : vector<2x32xf32>, vector<32x32xf32>, vector<2x32xf32> -> vector<2x32xf32>
    %780 = vector.broadcast %59 : vector<1x32xf32> to vector<2x32xf32>
    %781 = arith.addf %779, %780 : vector<2x32xf32>
    %cst_188 = arith.constant dense<0.000000e+00> : vector<2x32xf32>
    %782 = tpu.matmul %766, %60, %cst_188 {dimension_numbers = #tpu.dot_dimension_numbers<[1], [0], [0], [1], [0, 0, 1, 1], [], []>} : vector<2x32xf32>, vector<32x32xf32>, vector<2x32xf32> -> vector<2x32xf32>
    %783 = vector.broadcast %61 : vector<1x32xf32> to vector<2x32xf32>
    %784 = arith.addf %782, %783 : vector<2x32xf32>
    %cst_189 = arith.constant dense<0.000000e+00> : vector<2x32xf32>
    %785 = tpu.matmul %775, %60, %cst_189 {dimension_numbers = #tpu.dot_dimension_numbers<[1], [0], [0], [1], [0, 0, 1, 1], [], []>} : vector<2x32xf32>, vector<32x32xf32>, vector<2x32xf32> -> vector<2x32xf32>
    %786 = vector.broadcast %61 : vector<1x32xf32> to vector<2x32xf32>
    %787 = arith.addf %785, %786 : vector<2x32xf32>
    %788 = arith.mulf %781, %784 : vector<2x32xf32>
    %cst_190 = arith.constant dense<0.000000e+00> : vector<2xf32>
    %789 = vector.multi_reduction <add>, %788, %cst_190 [1] : vector<2x32xf32> to vector<2xf32>
    %790 = vector.shape_cast %789 : vector<2xf32> to vector<2x1xf32>
    %cst_191 = arith.constant 0.353553385 : f32
    %791 = vector.broadcast %cst_191 : f32 to vector<2x1xf32>
    %792 = arith.mulf %790, %791 : vector<2x1xf32>
    %793 = math.tanh %792 : vector<2x1xf32>
    %cst_192 = arith.constant 1.000000e+01 : f32
    %794 = vector.broadcast %cst_192 : f32 to vector<2x1xf32>
    %795 = arith.mulf %793, %794 : vector<2x1xf32>
    %796 = arith.mulf %781, %787 : vector<2x32xf32>
    %cst_193 = arith.constant dense<0.000000e+00> : vector<2xf32>
    %797 = vector.multi_reduction <add>, %796, %cst_193 [1] : vector<2x32xf32> to vector<2xf32>
    %798 = vector.shape_cast %797 : vector<2xf32> to vector<2x1xf32>
    %cst_194 = arith.constant 0.353553385 : f32
    %799 = vector.broadcast %cst_194 : f32 to vector<2x1xf32>
    %800 = arith.mulf %798, %799 : vector<2x1xf32>
    %801 = math.tanh %800 : vector<2x1xf32>
    %cst_195 = arith.constant 1.000000e+01 : f32
    %802 = vector.broadcast %cst_195 : f32 to vector<2x1xf32>
    %803 = arith.mulf %801, %802 : vector<2x1xf32>
    %804 = arith.cmpf ogt, %803, %795 : vector<2x1xf32>
    %805 = arith.maximumf %795, %803 : vector<2x1xf32>
    %806 = arith.subf %795, %805 : vector<2x1xf32>
    %807 = math.exp %806 : vector<2x1xf32>
    %808 = arith.subf %803, %805 : vector<2x1xf32>
    %809 = math.exp %808 : vector<2x1xf32>
    %810 = arith.select %804, %809, %807 : vector<2x1xi1>, vector<2x1xf32>
    %811 = arith.addf %807, %809 : vector<2x1xf32>
    %812 = arith.divf %810, %811 : vector<2x1xf32>
    %813 = arith.extui %804 : vector<2x1xi1> to vector<2x1xi32>
    %814 = arith.select %804, %754, %750 : vector<2x1xi1>, vector<2x1xf32>
    %cst_196 = arith.constant 0.000000e+00 : f32
    %815 = vector.broadcast %cst_196 : f32 to vector<2x1xf32>
    %816 = arith.select %804, %815, %750 : vector<2x1xi1>, vector<2x1xf32>
    %817 = arith.addf %707, %816 : vector<2x1xf32>
    %cst_197 = arith.constant 0.000000e+00 : f32
    %818 = vector.broadcast %cst_197 : f32 to vector<2x1xf32>
    %819 = arith.select %804, %754, %818 : vector<2x1xi1>, vector<2x1xf32>
    %820 = arith.addf %710, %819 : vector<2x1xf32>
    %821 = arith.subf %711, %814 : vector<2x1xf32>
    %822 = vector.broadcast %c6_i32 : i32 to vector<2x8xi32>
    %823 = arith.cmpi eq, %62, %822 : vector<2x8xi32>
    %824 = vector.shape_cast %746 : vector<2x1xf32> to vector<2x1xf32>
    %825 = vector.broadcast %824 : vector<2x1xf32> to vector<2x8xf32>
    %826 = arith.select %823, %825, %716 : vector<2x8xi1>, vector<2x8xf32>
    %827 = vector.shape_cast %812 : vector<2x1xf32> to vector<2x1xf32>
    %828 = vector.broadcast %827 : vector<2x1xf32> to vector<2x8xf32>
    %829 = arith.select %823, %828, %719 : vector<2x8xi1>, vector<2x8xf32>
    %830 = vector.shape_cast %737 : vector<2x1xi32> to vector<2x1xi32>
    %831 = vector.broadcast %830 : vector<2x1xi32> to vector<2x8xi32>
    %832 = arith.select %823, %831, %722 : vector<2x8xi1>, vector<2x8xi32>
    %833 = vector.shape_cast %813 : vector<2x1xi32> to vector<2x1xi32>
    %834 = vector.broadcast %833 : vector<2x1xi32> to vector<2x8xi32>
    %835 = arith.select %823, %834, %725 : vector<2x8xi1>, vector<2x8xi32>
    %c7_i32 = arith.constant 7 : i32
    %cst_198 = arith.constant 5.000000e-01 : f32
    %836 = vector.broadcast %cst_198 : f32 to vector<2x8xf32>
    %837 = arith.cmpf ogt, %757, %836 : vector<2x8xf32>
    %cst_199 = arith.constant -1.000000e+30 : f32
    %838 = vector.broadcast %cst_199 : f32 to vector<2x8xf32>
    %839 = arith.select %837, %838, %51 : vector<2x8xi1>, vector<2x8xf32>
    %cst_200 = arith.constant dense<0xFF800000> : vector<2xf32>
    %840 = vector.multi_reduction <maximumf>, %839, %cst_200 [1] : vector<2x8xf32> to vector<2xf32>
    %841 = vector.shape_cast %840 : vector<2xf32> to vector<2x1xf32>
    %842 = vector.broadcast %841 : vector<2x1xf32> to vector<2x8xf32>
    %843 = arith.cmpf oge, %839, %842 : vector<2x8xf32>
    %c8_i32_201 = arith.constant 8 : i32
    %844 = vector.broadcast %c8_i32_201 : i32 to vector<2x8xi32>
    %845 = arith.select %843, %62, %844 : vector<2x8xi1>, vector<2x8xi32>
    %cst_202 = arith.constant dense<2147483647> : vector<2xi32>
    %846 = vector.multi_reduction <minsi>, %845, %cst_202 [1] : vector<2x8xi32> to vector<2xi32>
    %847 = vector.shape_cast %846 : vector<2xi32> to vector<2x1xi32>
    %848 = vector.broadcast %847 : vector<2x1xi32> to vector<2x8xi32>
    %849 = arith.cmpi eq, %62, %848 : vector<2x8xi32>
    %850 = vector.broadcast %841 : vector<2x1xf32> to vector<2x8xf32>
    %851 = arith.subf %839, %850 : vector<2x8xf32>
    %852 = math.exp %851 : vector<2x8xf32>
    %cst_203 = arith.constant dense<0.000000e+00> : vector<2xf32>
    %853 = vector.multi_reduction <add>, %852, %cst_203 [1] : vector<2x8xf32> to vector<2xf32>
    %854 = vector.shape_cast %853 : vector<2xf32> to vector<2x1xf32>
    %cst_204 = arith.constant 1.000000e+00 : f32
    %855 = vector.broadcast %cst_204 : f32 to vector<2x1xf32>
    %856 = arith.divf %855, %854 : vector<2x1xf32>
    %cst_205 = arith.constant 0.000000e+00 : f32
    %857 = vector.broadcast %cst_205 : f32 to vector<2x8xf32>
    %858 = arith.select %849, %52, %857 : vector<2x8xi1>, vector<2x8xf32>
    %cst_206 = arith.constant dense<0.000000e+00> : vector<2xf32>
    %859 = vector.multi_reduction <add>, %858, %cst_206 [1] : vector<2x8xf32> to vector<2xf32>
    %860 = vector.shape_cast %859 : vector<2xf32> to vector<2x1xf32>
    %cst_207 = arith.constant 0.000000e+00 : f32
    %861 = vector.broadcast %cst_207 : f32 to vector<2x8xf32>
    %862 = arith.select %849, %53, %861 : vector<2x8xi1>, vector<2x8xf32>
    %cst_208 = arith.constant dense<0.000000e+00> : vector<2xf32>
    %863 = vector.multi_reduction <add>, %862, %cst_208 [1] : vector<2x8xf32> to vector<2xf32>
    %864 = vector.shape_cast %863 : vector<2xf32> to vector<2x1xf32>
    %865 = arith.extui %849 : vector<2x8xi1> to vector<2x8xi32>
    %866 = arith.sitofp %865 : vector<2x8xi32> to vector<2x8xf32>
    %867 = arith.maximumf %757, %866 : vector<2x8xf32>
    %868 = vector.broadcast %817 : vector<2x1xf32> to vector<2x32xf32>
    %869 = vector.broadcast %55 : vector<1x32xf32> to vector<2x32xf32>
    %870 = arith.mulf %868, %869 : vector<2x32xf32>
    %871 = vector.broadcast %860 : vector<2x1xf32> to vector<2x32xf32>
    %872 = vector.broadcast %56 : vector<1x32xf32> to vector<2x32xf32>
    %873 = arith.mulf %871, %872 : vector<2x32xf32>
    %874 = arith.addf %870, %873 : vector<2x32xf32>
    %875 = vector.broadcast %57 : vector<1x32xf32> to vector<2x32xf32>
    %876 = arith.addf %874, %875 : vector<2x32xf32>
    %877 = vector.broadcast %820 : vector<2x1xf32> to vector<2x32xf32>
    %878 = vector.broadcast %55 : vector<1x32xf32> to vector<2x32xf32>
    %879 = arith.mulf %877, %878 : vector<2x32xf32>
    %880 = vector.broadcast %864 : vector<2x1xf32> to vector<2x32xf32>
    %881 = vector.broadcast %56 : vector<1x32xf32> to vector<2x32xf32>
    %882 = arith.mulf %880, %881 : vector<2x32xf32>
    %883 = arith.addf %879, %882 : vector<2x32xf32>
    %884 = vector.broadcast %57 : vector<1x32xf32> to vector<2x32xf32>
    %885 = arith.addf %883, %884 : vector<2x32xf32>
    %886 = arith.addf %876, %885 : vector<2x32xf32>
    %cst_209 = arith.constant 5.000000e-01 : f32
    %887 = vector.broadcast %cst_209 : f32 to vector<2x32xf32>
    %888 = arith.mulf %887, %886 : vector<2x32xf32>
    %cst_210 = arith.constant dense<0.000000e+00> : vector<2x32xf32>
    %889 = tpu.matmul %888, %58, %cst_210 {dimension_numbers = #tpu.dot_dimension_numbers<[1], [0], [0], [1], [0, 0, 1, 1], [], []>} : vector<2x32xf32>, vector<32x32xf32>, vector<2x32xf32> -> vector<2x32xf32>
    %890 = vector.broadcast %59 : vector<1x32xf32> to vector<2x32xf32>
    %891 = arith.addf %889, %890 : vector<2x32xf32>
    %cst_211 = arith.constant dense<0.000000e+00> : vector<2x32xf32>
    %892 = tpu.matmul %876, %60, %cst_211 {dimension_numbers = #tpu.dot_dimension_numbers<[1], [0], [0], [1], [0, 0, 1, 1], [], []>} : vector<2x32xf32>, vector<32x32xf32>, vector<2x32xf32> -> vector<2x32xf32>
    %893 = vector.broadcast %61 : vector<1x32xf32> to vector<2x32xf32>
    %894 = arith.addf %892, %893 : vector<2x32xf32>
    %cst_212 = arith.constant dense<0.000000e+00> : vector<2x32xf32>
    %895 = tpu.matmul %885, %60, %cst_212 {dimension_numbers = #tpu.dot_dimension_numbers<[1], [0], [0], [1], [0, 0, 1, 1], [], []>} : vector<2x32xf32>, vector<32x32xf32>, vector<2x32xf32> -> vector<2x32xf32>
    %896 = vector.broadcast %61 : vector<1x32xf32> to vector<2x32xf32>
    %897 = arith.addf %895, %896 : vector<2x32xf32>
    %898 = arith.mulf %891, %894 : vector<2x32xf32>
    %cst_213 = arith.constant dense<0.000000e+00> : vector<2xf32>
    %899 = vector.multi_reduction <add>, %898, %cst_213 [1] : vector<2x32xf32> to vector<2xf32>
    %900 = vector.shape_cast %899 : vector<2xf32> to vector<2x1xf32>
    %cst_214 = arith.constant 0.353553385 : f32
    %901 = vector.broadcast %cst_214 : f32 to vector<2x1xf32>
    %902 = arith.mulf %900, %901 : vector<2x1xf32>
    %903 = math.tanh %902 : vector<2x1xf32>
    %cst_215 = arith.constant 1.000000e+01 : f32
    %904 = vector.broadcast %cst_215 : f32 to vector<2x1xf32>
    %905 = arith.mulf %903, %904 : vector<2x1xf32>
    %906 = arith.mulf %891, %897 : vector<2x32xf32>
    %cst_216 = arith.constant dense<0.000000e+00> : vector<2xf32>
    %907 = vector.multi_reduction <add>, %906, %cst_216 [1] : vector<2x32xf32> to vector<2xf32>
    %908 = vector.shape_cast %907 : vector<2xf32> to vector<2x1xf32>
    %cst_217 = arith.constant 0.353553385 : f32
    %909 = vector.broadcast %cst_217 : f32 to vector<2x1xf32>
    %910 = arith.mulf %908, %909 : vector<2x1xf32>
    %911 = math.tanh %910 : vector<2x1xf32>
    %cst_218 = arith.constant 1.000000e+01 : f32
    %912 = vector.broadcast %cst_218 : f32 to vector<2x1xf32>
    %913 = arith.mulf %911, %912 : vector<2x1xf32>
    %914 = arith.cmpf ogt, %913, %905 : vector<2x1xf32>
    %915 = arith.maximumf %905, %913 : vector<2x1xf32>
    %916 = arith.subf %905, %915 : vector<2x1xf32>
    %917 = math.exp %916 : vector<2x1xf32>
    %918 = arith.subf %913, %915 : vector<2x1xf32>
    %919 = math.exp %918 : vector<2x1xf32>
    %920 = arith.select %914, %919, %917 : vector<2x1xi1>, vector<2x1xf32>
    %921 = arith.addf %917, %919 : vector<2x1xf32>
    %922 = arith.divf %920, %921 : vector<2x1xf32>
    %923 = arith.extui %914 : vector<2x1xi1> to vector<2x1xi32>
    %924 = arith.select %914, %864, %860 : vector<2x1xi1>, vector<2x1xf32>
    %cst_219 = arith.constant 0.000000e+00 : f32
    %925 = vector.broadcast %cst_219 : f32 to vector<2x1xf32>
    %926 = arith.select %914, %925, %860 : vector<2x1xi1>, vector<2x1xf32>
    %927 = arith.addf %817, %926 : vector<2x1xf32>
    %cst_220 = arith.constant 0.000000e+00 : f32
    %928 = vector.broadcast %cst_220 : f32 to vector<2x1xf32>
    %929 = arith.select %914, %864, %928 : vector<2x1xi1>, vector<2x1xf32>
    %930 = arith.addf %820, %929 : vector<2x1xf32>
    %931 = arith.subf %821, %924 : vector<2x1xf32>
    %932 = vector.broadcast %c7_i32 : i32 to vector<2x8xi32>
    %933 = arith.cmpi eq, %62, %932 : vector<2x8xi32>
    %934 = vector.shape_cast %856 : vector<2x1xf32> to vector<2x1xf32>
    %935 = vector.broadcast %934 : vector<2x1xf32> to vector<2x8xf32>
    %936 = arith.select %933, %935, %826 : vector<2x8xi1>, vector<2x8xf32>
    %937 = vector.shape_cast %922 : vector<2x1xf32> to vector<2x1xf32>
    %938 = vector.broadcast %937 : vector<2x1xf32> to vector<2x8xf32>
    %939 = arith.select %933, %938, %829 : vector<2x8xi1>, vector<2x8xf32>
    %940 = vector.shape_cast %847 : vector<2x1xi32> to vector<2x1xi32>
    %941 = vector.broadcast %940 : vector<2x1xi32> to vector<2x8xi32>
    %942 = arith.select %933, %941, %832 : vector<2x8xi1>, vector<2x8xi32>
    %943 = vector.shape_cast %923 : vector<2x1xi32> to vector<2x1xi32>
    %944 = vector.broadcast %943 : vector<2x1xi32> to vector<2x8xi32>
    %945 = arith.select %933, %944, %835 : vector<2x8xi1>, vector<2x8xi32>
    %c8_i32_221 = arith.constant 8 : i32
    %c0_222 = arith.constant 0 : index
    %c0_223 = arith.constant 0 : index
    %946 = vector.load %arg15[%c0_222, %c0_223] : memref<2x24xf32, #tpu.memory_space<vmem>>, vector<2x8xf32>
    tpu.vector_store %arg15[%c0_222, %c0_223], %936 {strides = array<i32>} : memref<2x24xf32, #tpu.memory_space<vmem>>, vector<2x8xf32>,
    %c0_224 = arith.constant 0 : index
    %c8 = arith.constant 8 : index
    %947 = vector.load %arg15[%c0_224, %c8] : memref<2x24xf32, #tpu.memory_space<vmem>>, vector<2x8xf32>
    tpu.vector_store %arg15[%c0_224, %c8], %939 {strides = array<i32>} : memref<2x24xf32, #tpu.memory_space<vmem>>, vector<2x8xf32>,
    %cst_225 = arith.constant 0.000000e+00 : f32
    %948 = vector.broadcast %cst_225 : f32 to vector<2x8xf32>
    %949 = vector.broadcast %931 : vector<2x1xf32> to vector<2x8xf32>
    %950 = arith.addf %949, %948 : vector<2x8xf32>
    %c0_226 = arith.constant 0 : index
    %c16 = arith.constant 16 : index
    %951 = vector.load %arg15[%c0_226, %c16] : memref<2x24xf32, #tpu.memory_space<vmem>>, vector<2x8xf32>
    tpu.vector_store %arg15[%c0_226, %c16], %950 {strides = array<i32>} : memref<2x24xf32, #tpu.memory_space<vmem>>, vector<2x8xf32>,
    %c0_227 = arith.constant 0 : index
    %c0_228 = arith.constant 0 : index
    %952 = vector.load %arg16[%c0_227, %c0_228] : memref<2x16xi32, #tpu.memory_space<vmem>>, vector<2x8xi32>
    tpu.vector_store %arg16[%c0_227, %c0_228], %942 {strides = array<i32>} : memref<2x16xi32, #tpu.memory_space<vmem>>, vector<2x8xi32>,
    %c0_229 = arith.constant 0 : index
    %c8_230 = arith.constant 8 : index
    %953 = vector.load %arg16[%c0_229, %c8_230] : memref<2x16xi32, #tpu.memory_space<vmem>>, vector<2x8xi32>
    tpu.vector_store %arg16[%c0_229, %c8_230], %945 {strides = array<i32>} : memref<2x16xi32, #tpu.memory_space<vmem>>, vector<2x8xi32>,
    return
  }
}

</mosaic_0001>

<llo_original>
// kernel: tpu_custom_call.1
$region0: #{tpu_custom_call.1}
  #allocation0 [shape = 'u32[]', space=smem, size = 0x4, offset = 0x4, fixed_abs, tag = 'smem constant byte address 0x4 - core index']
  #allocation1 [shape = 'u32[144,128]{1,0:T(1,128)}', space=vmem, size = 0x12000, scoped, tag = 'internal scratch']
  %s0 = inlined_call_operand.vmem [shape: f32[16,4], index: 0, kind: input, shape index: {}]
  %s1 = inlined_call_operand.hbm [shape: f32[2,8], index: 1, kind: input, shape index: {}]
  %s2 = inlined_call_operand.hbm [shape: f32[2,8], index: 2, kind: input, shape index: {}]
  %s3 = inlined_call_operand.hbm [shape: f32[4,32], index: 3, kind: input, shape index: {}]
  %s4 = inlined_call_operand.vmem [shape: f32[1,32], index: 4, kind: input, shape index: {}]
  %s5 = inlined_call_operand.vmem [shape: f32[32,32], index: 5, kind: input, shape index: {}]
  %s6 = inlined_call_operand.hbm [shape: f32[1,32], index: 6, kind: input, shape index: {}]
  %s7 = inlined_call_operand.hbm [shape: f32[32,32], index: 7, kind: input, shape index: {}]
  %s8 = inlined_call_operand.hbm [shape: f32[1,32], index: 8, kind: input, shape index: {}]
  %s9 = inlined_call_operand.hbm [shape: f32[2,32], index: 9, kind: input, shape index: {}]
  %s10 = inlined_call_operand.hbm [shape: f32[1,32], index: 10, kind: input, shape index: {}]
  %s11 = inlined_call_operand.hbm [shape: f32[32,32], index: 11, kind: input, shape index: {}]
  %s12 = inlined_call_operand.hbm [shape: f32[1,32], index: 12, kind: input, shape index: {}]
  %s13 = inlined_call_operand.vmem [shape: f32[32,32], index: 13, kind: input, shape index: {}]
  %s14 = inlined_call_operand.vmem [shape: f32[1,32], index: 14, kind: input, shape index: {}]
  %s15 = inlined_call_operand.hbm [shape: f32[2,24], index: 15, kind: output, shape index: {0}]
  %s16 = inlined_call_operand.hbm [shape: s32[2,16], index: 16, kind: output, shape index: {1}]
  %17 = xla_tuple %s15, %s16
  %s18 = sld [smem:[#allocation0]]
  $region118: #{tpu_custom_call.1} parent=0
    _
  %s20 = ssub.s32 1, %s18
  %s21 = scalar_select 0, %s20, %s18
  $region1: #{tpu_custom_call.1} parent=0
    #allocation2 [shape = 'u8[1024]{0}', space=vmem, size = 0x400, scoped, tag = 'input window, operand 1, single buffered']
    #allocation3 [shape = 's32[1]{0}', space=sflag, size = 0x4, scoped, tag = 'scoped memory for tpu_custom_call.1']
    #allocation4 [shape = 's32[1]{0}', space=sflag, size = 0x4, scoped, tag = 'scoped memory for tpu_custom_call.1']
    #allocation5 [shape = 'u8[1024]{0}', space=vmem, size = 0x400, scoped, tag = 'input window, operand 2, single buffered']
    #allocation6 [shape = 's32[1]{0}', space=sflag, size = 0x4, scoped, tag = 'scoped memory for tpu_custom_call.1']
    #allocation7 [shape = 'u8[2048]{0}', space=vmem, size = 0x800, scoped, tag = 'input window, operand 3, single buffered']
    #allocation8 [shape = 'u8[512]{0}', space=vmem, size = 0x400, scoped, tag = 'input window, operand 6, single buffered']
    #allocation9 [shape = 's32[1]{0}', space=sflag, size = 0x4, scoped, tag = 'scoped memory for tpu_custom_call.1']
    #allocation10 [shape = 'u8[16384]{0}', space=vmem, size = 0x4000, scoped, tag = 'input window, operand 7, single buffered']
    #allocation11 [shape = 'u8[512]{0}', space=vmem, size = 0x400, scoped, tag = 'input window, operand 8, single buffered']
    #allocation12 [shape = 's32[1]{0}', space=sflag, size = 0x4, scoped, tag = 'scoped memory for tpu_custom_call.1']
    #allocation13 [shape = 'u8[1024]{0}', space=vmem, size = 0x400, scoped, tag = 'input window, operand 9, single buffered']
    #allocation14 [shape = 'u8[512]{0}', space=vmem, size = 0x400, scoped, tag = 'input window, operand 10, single buffered']
    #allocation15 [shape = 's32[1]{0}', space=sflag, size = 0x4, scoped, tag = 'scoped memory for tpu_custom_call.1']
    #allocation16 [shape = 'u8[16384]{0}', space=vmem, size = 0x4000, scoped, tag = 'input window, operand 11, single buffered']
    #allocation17 [shape = 'u8[512]{0}', space=vmem, size = 0x400, scoped, tag = 'input window, operand 12, single buffered']
    #allocation18 [shape = 's32[1]{0}', space=sflag, size = 0x4, scoped, tag = 'scoped memory for tpu_custom_call.1']
    #allocation19 [shape = 'u8[1024]{0}', space=vmem, size = 0x400, scoped, tag = 'output window, operand 0, single buffered']
    #allocation20 [shape = 'u8[1024]{0}', space=vmem, size = 0x400, scoped, tag = 'output window, operand 1, single buffered']
    #allocation21 [shape = 's32[1]{0}', space=sflag, size = 0x4, scoped, tag = 'scoped memory for tpu_custom_call.1']
    %22 = vsyncpa [#allocation3], 0
    %23 = vsyncpa [#allocation6], 0
    %24 = vsyncpa [#allocation9], 0
    %25 = vsyncpa [#allocation12], 0
    %26 = vsyncpa [#allocation15], 0
    %27 = vsyncpa [#allocation18], 0
    %28 = vsyncpa [#allocation4], 0
    %29 = vsyncpa [#allocation21], 0
    // Predicated region
    $region2: #{tpu_custom_call.1} parent=1 // pred_check
      _
    $region3: #{tpu_custom_call.1} parent=1 // pred_check_branch
      %31 = sbr.rel (0) target = $region5
    $region4: #{tpu_custom_call.1} parent=1 // pred_region
      _
    $region5: #{tpu_custom_call.1} parent=1 // pred_fallthru
      _
    // Predicated region
    $region6: #{tpu_custom_call.1} parent=1 // pred_check
      _
    $region7: #{tpu_custom_call.1} parent=1 // pred_check_branch
      %33 = sbr.rel (0) target = $region9
    $region8: #{tpu_custom_call.1} parent=1 // pred_region
      %s35 = ssub.s32 32, 32
      %36 = vsyncadd [#allocation3], %s35
      %s38 = sshll.u32 [#allocation2], 4
      %s39 = int_to_ptr.vmem [resolvable:$true] %s38
      %41 = dma.hbm_to_vmem [thread:$0]  %s1, 32, %s39, [#allocation3]
    $region9: #{tpu_custom_call.1} parent=1 // pred_fallthru
      _
    // Predicated region
    $region10: #{tpu_custom_call.1} parent=1 // pred_check
      _
    $region11: #{tpu_custom_call.1} parent=1 // pred_check_branch
      %43 = sbr.rel (0) target = $region13
    $region12: #{tpu_custom_call.1} parent=1 // pred_region
      %s45 = ssub.s32 32, 32
      %46 = vsyncadd [#allocation6], %s45
      %s48 = sshll.u32 [#allocation5], 4
      %s49 = int_to_ptr.vmem [resolvable:$true] %s48
      %51 = dma.hbm_to_vmem [thread:$0]  %s2, 32, %s49, [#allocation6]
    $region13: #{tpu_custom_call.1} parent=1 // pred_fallthru
      _
    // Predicated region
    $region14: #{tpu_custom_call.1} parent=1 // pred_check
      _
    $region15: #{tpu_custom_call.1} parent=1 // pred_check_branch
      %53 = sbr.rel (0) target = $region17
    $region16: #{tpu_custom_call.1} parent=1 // pred_region
      %s55 = ssub.s32 64, 64
      %56 = vsyncadd [#allocation6], %s55
      %s58 = sshll.u32 [#allocation7], 4
      %s59 = int_to_ptr.vmem [resolvable:$true] %s58
      %61 = dma.hbm_to_vmem [thread:$0]  %s3, 64, %s59, [#allocation6]
    $region17: #{tpu_custom_call.1} parent=1 // pred_fallthru
      _
    // Predicated region
    $region18: #{tpu_custom_call.1} parent=1 // pred_check
      _
    $region19: #{tpu_custom_call.1} parent=1 // pred_check_branch
      %63 = sbr.rel (0) target = $region21
    $region20: #{tpu_custom_call.1} parent=1 // pred_region
      _
    $region21: #{tpu_custom_call.1} parent=1 // pred_fallthru
      _
    // Predicated region
    $region22: #{tpu_custom_call.1} parent=1 // pred_check
      _
    $region23: #{tpu_custom_call.1} parent=1 // pred_check_branch
      %65 = sbr.rel (0) target = $region25
    $region24: #{tpu_custom_call.1} parent=1 // pred_region
      _
    $region25: #{tpu_custom_call.1} parent=1 // pred_fallthru
      _
    // Predicated region
    $region26: #{tpu_custom_call.1} parent=1 // pred_check
      _
    $region27: #{tpu_custom_call.1} parent=1 // pred_check_branch
      %67 = sbr.rel (0) target = $region29
    $region28: #{tpu_custom_call.1} parent=1 // pred_region
      %s69 = ssub.s32 16, 16
      %70 = vsyncadd [#allocation9], %s69
      %s72 = sshll.u32 [#allocation8], 4
      %s73 = int_to_ptr.vmem [resolvable:$true] %s72
      %75 = dma.hbm_to_vmem [thread:$0]  %s6, 16, %s73, [#allocation9]
    $region29: #{tpu_custom_call.1} parent=1 // pred_fallthru
      _
    // Predicated region
    $region30: #{tpu_custom_call.1} parent=1 // pred_check
      _
    $region31: #{tpu_custom_call.1} parent=1 // pred_check_branch
      %77 = sbr.rel (0) target = $region33
    $region32: #{tpu_custom_call.1} parent=1 // pred_region
      %s79 = ssub.s32 512, 512
      %80 = vsyncadd [#allocation9], %s79
      %s81 = sshll.u32 [#allocation10], 4
      %s82 = int_to_ptr.vmem [resolvable:$true] %s81
      %87 = dma.hbm_to_vmem [thread:$0]  %s7, 512, %s82, [#allocation9], 128, 128, 8
    $region33: #{tpu_custom_call.1} parent=1 // pred_fallthru
      _
    // Predicated region
    $region34: #{tpu_custom_call.1} parent=1 // pred_check
      _
    $region35: #{tpu_custom_call.1} parent=1 // pred_check_branch
      %89 = sbr.rel (0) target = $region37
    $region36: #{tpu_custom_call.1} parent=1 // pred_region
      %s91 = ssub.s32 16, 16
      %92 = vsyncadd [#allocation12], %s91
      %s94 = sshll.u32 [#allocation11], 4
      %s95 = int_to_ptr.vmem [resolvable:$true] %s94
      %97 = dma.hbm_to_vmem [thread:$0]  %s8, 16, %s95, [#allocation12]
    $region37: #{tpu_custom_call.1} parent=1 // pred_fallthru
      _
    // Predicated region
    $region38: #{tpu_custom_call.1} parent=1 // pred_check
      _
    $region39: #{tpu_custom_call.1} parent=1 // pred_check_branch
      %99 = sbr.rel (0) target = $region41
    $region40: #{tpu_custom_call.1} parent=1 // pred_region
      %s101 = ssub.s32 32, 32
      %102 = vsyncadd [#allocation12], %s101
      %s104 = sshll.u32 [#allocation13], 4
      %s105 = int_to_ptr.vmem [resolvable:$true] %s104
      %107 = dma.hbm_to_vmem [thread:$0]  %s9, 32, %s105, [#allocation12]
    $region41: #{tpu_custom_call.1} parent=1 // pred_fallthru
      _
    // Predicated region
    $region42: #{tpu_custom_call.1} parent=1 // pred_check
      _
    $region43: #{tpu_custom_call.1} parent=1 // pred_check_branch
      %109 = sbr.rel (0) target = $region45
    $region44: #{tpu_custom_call.1} parent=1 // pred_region
      %s111 = ssub.s32 16, 16
      %112 = vsyncadd [#allocation15], %s111
      %s114 = sshll.u32 [#allocation14], 4
      %s115 = int_to_ptr.vmem [resolvable:$true] %s114
      %117 = dma.hbm_to_vmem [thread:$0]  %s10, 16, %s115, [#allocation15]
    $region45: #{tpu_custom_call.1} parent=1 // pred_fallthru
      _
    // Predicated region
    $region46: #{tpu_custom_call.1} parent=1 // pred_check
      _
    $region47: #{tpu_custom_call.1} parent=1 // pred_check_branch
      %119 = sbr.rel (0) target = $region49
    $region48: #{tpu_custom_call.1} parent=1 // pred_region
      %s121 = ssub.s32 512, 512
      %122 = vsyncadd [#allocation15], %s121
      %s123 = sshll.u32 [#allocation16], 4
      %s124 = int_to_ptr.vmem [resolvable:$true] %s123
      %129 = dma.hbm_to_vmem [thread:$0]  %s11, 512, %s124, [#allocation15], 128, 128, 8
    $region49: #{tpu_custom_call.1} parent=1 // pred_fallthru
      _
    // Predicated region
    $region50: #{tpu_custom_call.1} parent=1 // pred_check
      _
    $region51: #{tpu_custom_call.1} parent=1 // pred_check_branch
      %131 = sbr.rel (0) target = $region53
    $region52: #{tpu_custom_call.1} parent=1 // pred_region
      %s133 = ssub.s32 16, 16
      %134 = vsyncadd [#allocation18], %s133
      %s136 = sshll.u32 [#allocation17], 4
      %s137 = int_to_ptr.vmem [resolvable:$true] %s136
      %139 = dma.hbm_to_vmem [thread:$0]  %s12, 16, %s137, [#allocation18]
    $region53: #{tpu_custom_call.1} parent=1 // pred_fallthru
      _
    // Predicated region
    $region54: #{tpu_custom_call.1} parent=1 // pred_check
      _
    $region55: #{tpu_custom_call.1} parent=1 // pred_check_branch
      %141 = sbr.rel (0) target = $region57
    $region56: #{tpu_custom_call.1} parent=1 // pred_region
      _
    $region57: #{tpu_custom_call.1} parent=1 // pred_fallthru
      _
    // Predicated region
    $region58: #{tpu_custom_call.1} parent=1 // pred_check
      _
    $region59: #{tpu_custom_call.1} parent=1 // pred_check_branch
      %143 = sbr.rel (0) target = $region61
    $region60: #{tpu_custom_call.1} parent=1 // pred_region
      _
    $region61: #{tpu_custom_call.1} parent=1 // pred_fallthru
      _
    // Predicated region
    $region62: #{tpu_custom_call.1} parent=1 // pred_check
      _
    $region63: #{tpu_custom_call.1} parent=1 // pred_check_branch
      %145 = sbr.rel (0) target = $region65
    $region64: #{tpu_custom_call.1} parent=1 // pred_region
      %146 = dma.done [#allocation3], 32
    $region65: #{tpu_custom_call.1} parent=1 // pred_fallthru
      _
    // Predicated region
    $region66: #{tpu_custom_call.1} parent=1 // pred_check
      _
    $region67: #{tpu_custom_call.1} parent=1 // pred_check_branch
      %148 = sbr.rel (0) target = $region69
    $region68: #{tpu_custom_call.1} parent=1 // pred_region
      %149 = dma.done [#allocation6], 32
    $region69: #{tpu_custom_call.1} parent=1 // pred_fallthru
      _
    // Predicated region
    $region70: #{tpu_custom_call.1} parent=1 // pred_check
      _
    $region71: #{tpu_custom_call.1} parent=1 // pred_check_branch
      %151 = sbr.rel (0) target = $region73
    $region72: #{tpu_custom_call.1} parent=1 // pred_region
      %152 = dma.done [#allocation6], 64
    $region73: #{tpu_custom_call.1} parent=1 // pred_fallthru
      _
    // Predicated region
    $region74: #{tpu_custom_call.1} parent=1 // pred_check
      _
    $region75: #{tpu_custom_call.1} parent=1 // pred_check_branch
      %154 = sbr.rel (0) target = $region77
    $region76: #{tpu_custom_call.1} parent=1 // pred_region
      %155 = dma.done [#allocation9], 16
    $region77: #{tpu_custom_call.1} parent=1 // pred_fallthru
      _
    // Predicated region
    $region78: #{tpu_custom_call.1} parent=1 // pred_check
      _
    $region79: #{tpu_custom_call.1} parent=1 // pred_check_branch
      %157 = sbr.rel (0) target = $region81
    $region80: #{tpu_custom_call.1} parent=1 // pred_region
      %158 = dma.done [#allocation9], 512
    $region81: #{tpu_custom_call.1} parent=1 // pred_fallthru
      _
    // Predicated region
    $region82: #{tpu_custom_call.1} parent=1 // pred_check
      _
    $region83: #{tpu_custom_call.1} parent=1 // pred_check_branch
      %160 = sbr.rel (0) target = $region85
    $region84: #{tpu_custom_call.1} parent=1 // pred_region
      %161 = dma.done [#allocation12], 16
    $region85: #{tpu_custom_call.1} parent=1 // pred_fallthru
      _
    // Predicated region
    $region86: #{tpu_custom_call.1} parent=1 // pred_check
      _
    $region87: #{tpu_custom_call.1} parent=1 // pred_check_branch
      %163 = sbr.rel (0) target = $region89
    $region88: #{tpu_custom_call.1} parent=1 // pred_region
      %164 = dma.done [#allocation12], 32
    $region89: #{tpu_custom_call.1} parent=1 // pred_fallthru
      _
    // Predicated region
    $region90: #{tpu_custom_call.1} parent=1 // pred_check
      _
    $region91: #{tpu_custom_call.1} parent=1 // pred_check_branch
      %166 = sbr.rel (0) target = $region93
    $region92: #{tpu_custom_call.1} parent=1 // pred_region
      %167 = dma.done [#allocation15], 16
    $region93: #{tpu_custom_call.1} parent=1 // pred_fallthru
      _
    // Predicated region
    $region94: #{tpu_custom_call.1} parent=1 // pred_check
      _
    $region95: #{tpu_custom_call.1} parent=1 // pred_check_branch
      %169 = sbr.rel (0) target = $region97
    $region96: #{tpu_custom_call.1} parent=1 // pred_region
      %170 = dma.done [#allocation15], 512
    $region97: #{tpu_custom_call.1} parent=1 // pred_fallthru
      _
    // Predicated region
    $region98: #{tpu_custom_call.1} parent=1 // pred_check
      _
    $region99: #{tpu_custom_call.1} parent=1 // pred_check_branch
      %172 = sbr.rel (0) target = $region101
    $region100: #{tpu_custom_call.1} parent=1 // pred_region
      %173 = dma.done [#allocation18], 16
    $region101: #{tpu_custom_call.1} parent=1 // pred_fallthru
      _
    %v174 = vld [vmem:[%s0] sm:$0xff]
    %v175 = vld [vmem:[%s0 + $0x8] sm:$0xff]
    %v176 = vld [vmem:[#allocation7] sm:$0xf]
    %178 = vset.pattern.permute.xlu0 0
    %179 = vperm.xlu0 %178, %v174
    %v180 = vpop.permute.xlu0 %179
    %183 = vset.pattern.permute.xlu0 0
    %184 = vperm.xlu0 %183, %v175
    %v185 = vpop.permute.xlu0 %184
    %v187 = vlaneseq
    %v188 = vshrl.u32 %v187, 7
    %v189 = vsub.s32 0, %v188
    %v190 = vrot.slane %v176, %v189
    %v191 = vmul.f32 %v180, %v190
    %v192 = vmul.f32 %v185, %v190
    %193 = vset.pattern.permute.xlu0 1
    %194 = vperm.xlu0 %193, %v174
    %v195 = vpop.permute.xlu0 %194
    %197 = vset.pattern.permute.xlu0 1
    %198 = vperm.xlu0 %197, %v175
    %v199 = vpop.permute.xlu0 %198
    %v201 = vlaneseq
    %v202 = vshrl.u32 %v201, 7
    %v203 = vsub.s32 1, %v202
    %v204 = vrot.slane %v176, %v203
    %v205 = vmul.f32 %v195, %v204
    %v206 = vmul.f32 %v199, %v204
    %v207 = vadd.f32 %v191, %v205
    %v208 = vadd.f32 %v192, %v206
    %209 = vset.pattern.permute.xlu0 2
    %210 = vperm.xlu0 %209, %v174
    %v211 = vpop.permute.xlu0 %210
    %213 = vset.pattern.permute.xlu0 2
    %214 = vperm.xlu0 %213, %v175
    %v215 = vpop.permute.xlu0 %214
    %v217 = vlaneseq
    %v218 = vshrl.u32 %v217, 7
    %v219 = vsub.s32 2, %v218
    %v220 = vrot.slane %v176, %v219
    %v221 = vmul.f32 %v211, %v220
    %v222 = vmul.f32 %v215, %v220
    %v223 = vadd.f32 %v207, %v221
    %v224 = vadd.f32 %v208, %v222
    %225 = vset.pattern.permute.xlu0 3
    %226 = vperm.xlu0 %225, %v174
    %v227 = vpop.permute.xlu0 %226
    %229 = vset.pattern.permute.xlu0 3
    %230 = vperm.xlu0 %229, %v175
    %v231 = vpop.permute.xlu0 %230
    %v233 = vlaneseq
    %v234 = vshrl.u32 %v233, 7
    %v235 = vsub.s32 3, %v234
    %v236 = vrot.slane %v176, %v235
    %v237 = vmul.f32 %v227, %v236
    %v238 = vmul.f32 %v231, %v236
    %v239 = vadd.f32 %v223, %v237
    %v240 = vadd.f32 %v224, %v238
    %v241 = vld [vmem:[%s4] sm:$0x1]
    %v243 = vlaneseq
    %v244 = vshrl.u32 %v243, 7
    %v245 = vsub.s32 0, %v244
    %v246 = vrot.slane %v241, %v245
    %v248 = vadd.f32 %v239, %v246
    %v249 = vadd.f32 %v240, %v246
    %vm250 = vcmask 261120
    %v251 = vsel %vm250, %v248, 0.0
    %v252 = vrot.slane %v251, 4
    %v253 = vadd.f32 %v251, %v252
    %v254 = vrot.slane %v253, 2
    %v255 = vadd.f32 %v253, %v254
    %v256 = vrot.slane %v255, 1
    %v257 = vadd.f32 %v255, %v256
    %v258 = vsel %vm250, %v249, 0.0
    %v259 = vrot.slane %v258, 4
    %v260 = vadd.f32 %v258, %v259
    %v261 = vrot.slane %v260, 2
    %v262 = vadd.f32 %v260, %v261
    %v263 = vrot.slane %v262, 1
    %v264 = vadd.f32 %v262, %v263
    %v265 = vrcp.pop 8.0
    %v266 = vmul.f32 %v257, %v265
    %v267 = vmul.f32 %v264, %v265
    %v268 = vld [vmem:[%s5] sm:$0xff]
    %v269 = vld [vmem:[%s5 + $0x8] sm:$0xff]
    %v270 = vld [vmem:[%s5 + $0x10] sm:$0xff]
    %v271 = vld [vmem:[%s5 + $0x18] sm:$0xff]
    %v272 = vld [vmem:[#allocation8] sm:$0x1]
    %v274 = vlaneseq
    %v275 = vshrl.u32 %v274, 7
    %v276 = vsub.s32 0, %v275
    %v277 = vrot.slane %v272, %v276
    %vm281 = vcmask 1041409
    %v282 = vsel %vm281, %v267, %v266
    %v283 = vsel %vm250, %v282, 0
    %285 = vmatprep.subr.mxu0 0.0
    %286 = vmatpush1.msra.mxu0 %v268
    %287 = vmatprep.subr.mxu0 0.0
    %288 = vmatpush1.msra.mxu0 %v269
    %289 = vmatprep.subr.mxu0 0.0
    %290 = vmatpush1.msra.mxu0 %v270
    %291 = vmatprep.subr.mxu0 0.0
    %292 = vmatpush1.msra.mxu0 %v271
    %293 = vmatprep.subr.mxu0 0.0
    %294 = vmatpush1.msra.mxu0 0.0
    %295 = vmatprep.subr.mxu0 0.0
    %296 = vmatpush1.msra.mxu0 0.0
    %297 = vmatprep.subr.mxu0 0.0
    %298 = vmatpush1.msra.mxu0 0.0
    %299 = vmatprep.subr.mxu0 0.0
    %300 = vmatpush1.msra.mxu0 0.0
    %301 = vmatprep.subr.mxu0 0.0
    %302 = vmatpush1.msra.mxu0 0.0
    %303 = vmatprep.subr.mxu0 0.0
    %304 = vmatpush1.msra.mxu0 0.0
    %305 = vmatprep.subr.mxu0 0.0
    %306 = vmatpush1.msra.mxu0 0.0
    %307 = vmatprep.subr.mxu0 0.0
    %308 = vmatpush1.msra.mxu0 0.0
    %309 = vmatprep.subr.mxu0 0.0
    %310 = vmatpush1.msra.mxu0 0.0
    %311 = vmatprep.subr.mxu0 0.0
    %312 = vmatpush1.msra.mxu0 0.0
    %313 = vmatprep.subr.mxu0 0.0
    %314 = vmatpush1.msra.mxu0 0.0
    %315 = vmatprep.subr.mxu0 0.0
    %316 = vmatpush1.msra.mxu0 0.0
    %317 = vmatprep.subr.mxu0 0.0
    %318 = vmatpush1.msra.mxu0 0.0
    %319 = vmatprep.subr.mxu0 0.0
    %320 = vmatpush1.msra.mxu0 0.0
    %321 = vmatprep.subr.mxu0 0.0
    %322 = vmatpush1.msra.mxu0 0.0
    %323 = vmatprep.subr.mxu0 0.0
    %324 = vmatpush1.msra.mxu0 0.0
    %325 = vmatprep.subr.mxu0 0.0
    %326 = vmatpush1.msra.mxu0 0.0
    %327 = vmatprep.subr.mxu0 0.0
    %328 = vmatpush1.msra.mxu0 0.0
    %329 = vmatprep.subr.mxu0 0.0
    %330 = vmatpush1.msra.mxu0 0.0
    %331 = vmatprep.subr.mxu0 0.0
    %332 = vmatpush1.msra.mxu0 0.0
    %333 = vmatprep.subr.mxu0 0.0
    %334 = vmatpush1.msra.mxu0 0.0
    %335 = vmatprep.subr.mxu0 0.0
    %336 = vmatpush1.msra.mxu0 0.0
    %337 = vmatprep.subr.mxu0 0.0
    %338 = vmatpush1.msra.mxu0 0.0
    %339 = vmatprep.subr.mxu0 0.0
    %340 = vmatpush1.msra.mxu0 0.0
    %341 = vmatprep.subr.mxu0 0.0
    %342 = vmatpush1.msra.mxu0 0.0
    %343 = vmatprep.subr.mxu0 0.0
    %344 = vmatpush1.msra.mxu0 0.0
    %345 = vmatprep.subr.mxu0 0.0
    %346 = vmatpush1.msra.mxu0 0.0
    %347 = vmatprep.subr.mxu0 0.0
    %348 = vmatpush1.msra.mxu0 0.0
    %349 = vmatprep.mubr.f32.mxu0 0.0
    %350 = vmatmul.mubr.f32.gmra.mrb[0].mxu0 %v283
    %v351 = vpop.f32.mrb[0].mxu0
    %v352 = vadd.f32 %v277, %v351
    %v353 = vpop.f32.mrb[0].mxu0
    %354 = vdwg.mxu0
    %v355 = vld [vmem:[#allocation10] sm:$0xff]
    %v356 = vld [vmem:[#allocation10 + $0x8] sm:$0xff]
    %v357 = vld [vmem:[#allocation10 + $0x10] sm:$0xff]
    %v358 = vld [vmem:[#allocation10 + $0x18] sm:$0xff]
    %v359 = vld [vmem:[#allocation11] sm:$0x1]
    %v361 = vlaneseq
    %v362 = vshrl.u32 %v361, 7
    %v363 = vsub.s32 0, %v362
    %v364 = vrot.slane %v359, %v363
    %v367 = vsel %vm250, %v248, 0
    %v370 = vsel %vm250, %v249, 0
    %372 = vmatprep.subr.mxu0 0.0
    %373 = vmatpush1.msra.mxu0 %v355
    %374 = vmatprep.subr.mxu0 0.0
    %375 = vmatpush1.msra.mxu0 %v356
    %376 = vmatprep.subr.mxu0 0.0
    %377 = vmatpush1.msra.mxu0 %v357
    %378 = vmatprep.subr.mxu0 0.0
    %379 = vmatpush1.msra.mxu0 %v358
    %380 = vmatprep.subr.mxu0 0.0
    %381 = vmatpush1.msra.mxu0 0.0
    %382 = vmatprep.subr.mxu0 0.0
    %383 = vmatpush1.msra.mxu0 0.0
    %384 = vmatprep.subr.mxu0 0.0
    %385 = vmatpush1.msra.mxu0 0.0
    %386 = vmatprep.subr.mxu0 0.0
    %387 = vmatpush1.msra.mxu0 0.0
    %388 = vmatprep.subr.mxu0 0.0
    %389 = vmatpush1.msra.mxu0 0.0
    %390 = vmatprep.subr.mxu0 0.0
    %391 = vmatpush1.msra.mxu0 0.0
    %392 = vmatprep.subr.mxu0 0.0
    %393 = vmatpush1.msra.mxu0 0.0
    %394 = vmatprep.subr.mxu0 0.0
    %395 = vmatpush1.msra.mxu0 0.0
    %396 = vmatprep.subr.mxu0 0.0
    %397 = vmatpush1.msra.mxu0 0.0
    %398 = vmatprep.subr.mxu0 0.0
    %399 = vmatpush1.msra.mxu0 0.0
    %400 = vmatprep.subr.mxu0 0.0
    %401 = vmatpush1.msra.mxu0 0.0
    %402 = vmatprep.subr.mxu0 0.0
    %403 = vmatpush1.msra.mxu0 0.0
    %404 = vmatprep.subr.mxu0 0.0
    %405 = vmatpush1.msra.mxu0 0.0
    %406 = vmatprep.subr.mxu0 0.0
    %407 = vmatpush1.msra.mxu0 0.0
    %408 = vmatprep.subr.mxu0 0.0
    %409 = vmatpush1.msra.mxu0 0.0
    %410 = vmatprep.subr.mxu0 0.0
    %411 = vmatpush1.msra.mxu0 0.0
    %412 = vmatprep.subr.mxu0 0.0
    %413 = vmatpush1.msra.mxu0 0.0
    %414 = vmatprep.subr.mxu0 0.0
    %415 = vmatpush1.msra.mxu0 0.0
    %416 = vmatprep.subr.mxu0 0.0
    %417 = vmatpush1.msra.mxu0 0.0
    %418 = vmatprep.subr.mxu0 0.0
    %419 = vmatpush1.msra.mxu0 0.0
    %420 = vmatprep.subr.mxu0 0.0
    %421 = vmatpush1.msra.mxu0 0.0
    %422 = vmatprep.subr.mxu0 0.0
    %423 = vmatpush1.msra.mxu0 0.0
    %424 = vmatprep.subr.mxu0 0.0
    %425 = vmatpush1.msra.mxu0 0.0
    %426 = vmatprep.subr.mxu0 0.0
    %427 = vmatpush1.msra.mxu0 0.0
    %428 = vmatprep.subr.mxu0 0.0
    %429 = vmatpush1.msra.mxu0 0.0
    %430 = vmatprep.subr.mxu0 0.0
    %431 = vmatpush1.msra.mxu0 0.0
    %432 = vmatprep.subr.mxu0 0.0
    %433 = vmatpush1.msra.mxu0 0.0
    %434 = vmatprep.subr.mxu0 0.0
    %435 = vmatpush1.msra.mxu0 0.0
    %436 = vmatprep.mubr.f32.mxu0 0.0
    %437 = vmatmul.mubr.f32.gmra.mrb[0].mxu0 %v367
    %v438 = vpop.f32.mrb[0].mxu0
    %v439 = vadd.f32 %v364, %v438
    %v440 = vpop.f32.mrb[0].mxu0
    %441 = vmatprep.mubr.f32.mxu0 0.0
    %442 = vmatmul.mubr.f32.gmra.mrb[0].mxu0 %v370
    %v443 = vpop.f32.mrb[0].mxu0
    %v444 = vadd.f32 %v364, %v443
    %v445 = vpop.f32.mrb[0].mxu0
    %446 = vdwg.mxu0
    %v449 = vunpack.c.l.s4 1966171168
    %v450 = vunpack.c.0.s8 %v449
    %v451 = vlaneseq
    %v452 = vshrl.u32 %v451, 7
    %v453 = vsub.s32 %v450, %v452
    %v454 = vrot.slane %v352, %v453
    %v455 = vcombine.high %v454, %v454
    %v457 = vunpack.c.l.s4 1966171168
    %v458 = vunpack.c.0.s8 %v457
    %v459 = vlaneseq
    %v460 = vshrl.u32 %v459, 7
    %v461 = vsub.s32 %v458, %v460
    %v462 = vrot.slane %v454, %v461
    %v464 = vunpack.c.l.s4 1966171168
    %v465 = vunpack.c.0.s8 %v464
    %v466 = vlaneseq
    %v467 = vshrl.u32 %v466, 7
    %v468 = vsub.s32 %v465, %v467
    %v469 = vrot.slane %v455, %v468
    %v470 = vlaneseq
    %v471 = vshrl.u32 %v470, 7
    %v472 = vsub.s32 0, %v471
    %v473 = vrot.slane %v462, %v472
    %v474 = vlaneseq
    %v475 = vshrl.u32 %v474, 7
    %v476 = vsub.s32 0, %v475
    %v477 = vrot.slane %v469, %v476
    %v480 = vmul.f32 %v473, %v439
    %v481 = vmul.f32 %v477, %v444
    %v482 = vsel %vm250, %v480, 0.0
    %483 = vadd.xlane.f32.xlu0 %v482
    %v484 = vpop.xlane.xlu0 %483
    %v485 = vsel %vm250, %v481, 0.0
    %486 = vadd.xlane.f32.xlu0 %v485
    %v487 = vpop.xlane.xlu0 %486
    %v488 = vmul.f32 %v484, 0.35355338
    %v489 = vmul.f32 %v487, 0.35355338
    %v490 = vtanh.pop %v488
    %v491 = vtanh.pop %v489
    %v492 = vmul.f32 %v490, 10.0
    %v493 = vmul.f32 %v491, 10.0
    %v494 = vld [vmem:[#allocation2] sm:$0x3]
    %v495 = vld [vmem:[#allocation5] sm:$0x3]
    %v496 = vld [vmem:[#allocation13] sm:$0x3]
    %v497 = vld [vmem:[#allocation14] sm:$0x1]
    %v498 = vld [vmem:[#allocation16] sm:$0xff]
    %v499 = vld [vmem:[#allocation16 + $0x8] sm:$0xff]
    %v500 = vld [vmem:[#allocation16 + $0x10] sm:$0xff]
    %v501 = vld [vmem:[#allocation16 + $0x18] sm:$0xff]
    %v502 = vld [vmem:[#allocation17] sm:$0x1]
    %v503 = vld [vmem:[%s13] sm:$0xff]
    %v504 = vld [vmem:[%s13 + $0x8] sm:$0xff]
    %v505 = vld [vmem:[%s13 + $0x10] sm:$0xff]
    %v506 = vld [vmem:[%s13 + $0x18] sm:$0xff]
    %v507 = vld [vmem:[%s14] sm:$0x1]
    %v508 = vlaneseq
    %v509 = vand.u32 %v508, 127
    %vm510 = vcmp.gt.f32.partialorder 0.0, 0.5
    %v511 = vsel %vm510, -1e+30, %v492
    %v512 = vsel %vm510, -1e+30, %v493
    %v515 = vlaneseq
    %v516 = vshrl.u32 %v515, 7
    %v517 = vsub.s32 %v509, %v516
    %v518 = vrot.slane %v511, %v517
    %v519 = vlaneseq
    %v520 = vshrl.u32 %v519, 7
    %v521 = vsub.s32 %v509, %v520
    %v522 = vrot.slane %v512, %v521
    %v523 = vsel %vm281, %v522, %v518
    %vm525 = vcmask 58368
    %v526 = vsel %vm525, %v523, -inf
    %527 = vmax.xlane.f32.xlu0 %v526
    %v528 = vpop.xlane.xlu0 %527
    %v530 = vlaneseq
    %v531 = vshrl.u32 %v530, 7
    %v532 = vsub.s32 0, %v531
    %v533 = vrot.slane %v528, %v532
    %v534 = vlaneseq
    %v535 = vshrl.u32 %v534, 7
    %v536 = vsub.s32 1, %v535
    %v537 = vrot.slane %v528, %v536
    %vm540 = vcmp.ge.f32.partialorder %v511, %v533
    %vm541 = vcmp.ge.f32.partialorder %v512, %v537
    %543 = vbcast.lane.b32.xlu0 %v509, 256
    %v544 = vpop.permute.xlu0 %543
    %v545 = vsel %vm540, %v544, 8
    %v546 = vsel %vm541, %v544, 8
    %547 = vset.pattern.permute.xlu0 0
    %548 = vperm.xlu0 %547, %v545
    %v549 = vpop.permute.xlu0 %548
    %550 = vset.pattern.permute.xlu0 0
    %551 = vperm.xlu0 %550, %v546
    %v552 = vpop.permute.xlu0 %551
    %v553 = vlaneseq
    %v554 = vshrl.u32 %v553, 7
    %v555 = vsub.s32 %v509, %v554
    %v556 = vrot.slane %v549, %v555
    %v557 = vlaneseq
    %v558 = vshrl.u32 %v557, 7
    %v559 = vsub.s32 %v509, %v558
    %v560 = vrot.slane %v552, %v559
    %v561 = vsel %vm281, %v560, %v556
    %v562 = vsel %vm525, %v561, 2147483647
    %v563 = vand.u32 %v562, 65535
    %v564 = vshra.s32 %v562, 16
    %v565 = vcvt.s32.f32 %v563
    %v566 = vcvt.s32.f32 %v564
    %567 = vmin.xlane.f32.xlu0 %v566
    %v568 = vpop.xlane.xlu0 %567
    %vm569 = vcmp.eq.f32.partialorder %v566, %v568
    %v570 = vsel %vm569, %v565, inf
    %571 = vmin.xlane.f32.xlu0 %v570
    %v572 = vpop.xlane.xlu0 %571
    %v573 = vcvt.f32.s32 %v572
    %v574 = vcvt.f32.s32 %v568
    %v575 = vshll.u32 %v574, 16
    %v576 = vadd.s32 %v575, %v573
    %vm577 = vcmp.eq.s32.totalorder %v509, %v576
    %v578 = vsub.f32 %v511, %v533
    %v579 = vsub.f32 %v512, %v537
    %v580 = vmul.f32 %v578, 1.442695
    %v581 = vpow.pop %v580
    %v582 = vmul.f32 %v579, 1.442695
    %v583 = vpow.pop %v582
    %586 = vset.pattern.permute.xlu0 0
    %587 = vperm.xlu0 %586, %v581
    %v588 = vpop.permute.xlu0 %587
    %589 = vset.pattern.permute.xlu0 0
    %590 = vperm.xlu0 %589, %v583
    %v591 = vpop.permute.xlu0 %590
    %v592 = vlaneseq
    %v593 = vshrl.u32 %v592, 7
    %v594 = vsub.s32 %v509, %v593
    %v595 = vrot.slane %v588, %v594
    %v596 = vlaneseq
    %v597 = vshrl.u32 %v596, 7
    %v598 = vsub.s32 %v509, %v597
    %v599 = vrot.slane %v591, %v598
    %v600 = vsel %vm281, %v599, %v595
    %v602 = vsel %vm525, %v600, 0.0
    %603 = vadd.xlane.f32.xlu0 %v602
    %v604 = vpop.xlane.xlu0 %603
    %v605 = vrcp.pop %v604
    %v606 = vmul.f32 1.0, %v605
    %v607 = vsel %vm577, %v494, 0.0
    %v608 = vsel %vm525, %v607, 0.0
    %609 = vadd.xlane.f32.xlu0 %v608
    %v610 = vpop.xlane.xlu0 %609
    %v611 = vsel %vm577, %v495, 0.0
    %v612 = vsel %vm525, %v611, 0.0
    %613 = vadd.xlane.f32.xlu0 %v612
    %v614 = vpop.xlane.xlu0 %613
    %v615 = vsel %vm577, 1, 0
    %v616 = vcvt.s32.f32 %v615
    %v617 = vmax.f32 %v616, 0.0
    %v618 = vlaneseq
    %v619 = vshrl.u32 %v618, 7
    %v620 = vsub.s32 0, %v619
    %v621 = vrot.slane %v496, %v620
    %v622 = vmul.f32 %v621, 0.0
    %v623 = vlaneseq
    %v624 = vshrl.u32 %v623, 7
    %v625 = vsub.s32 1, %v624
    %v626 = vrot.slane %v496, %v625
    %v627 = vmul.f32 %v610, %v626
    %v628 = vadd.f32 %v622, %v627
    %v630 = vlaneseq
    %v631 = vshrl.u32 %v630, 7
    %v632 = vsub.s32 0, %v631
    %v633 = vrot.slane %v497, %v632
    %v635 = vadd.f32 %v628, %v633
    %v636 = vmul.f32 %v614, %v626
    %v637 = vadd.f32 %v622, %v636
    %v638 = vadd.f32 %v637, %v633
    %v639 = vadd.f32 %v635, %v638
    %v640 = vmul.f32 %v639, 0.5
    %v642 = vlaneseq
    %v643 = vshrl.u32 %v642, 7
    %v644 = vsub.s32 0, %v643
    %v645 = vrot.slane %v502, %v644
    %v648 = vsel %vm250, %v640, 0
    %650 = vmatprep.subr.mxu0 0.0
    %651 = vmatpush1.msra.mxu0 %v498
    %652 = vmatprep.subr.mxu0 0.0
    %653 = vmatpush1.msra.mxu0 %v499
    %654 = vmatprep.subr.mxu0 0.0
    %655 = vmatpush1.msra.mxu0 %v500
    %656 = vmatprep.subr.mxu0 0.0
    %657 = vmatpush1.msra.mxu0 %v501
    %658 = vmatprep.subr.mxu0 0.0
    %659 = vmatpush1.msra.mxu0 0.0
    %660 = vmatprep.subr.mxu0 0.0
    %661 = vmatpush1.msra.mxu0 0.0
    %662 = vmatprep.subr.mxu0 0.0
    %663 = vmatpush1.msra.mxu0 0.0
    %664 = vmatprep.subr.mxu0 0.0
    %665 = vmatpush1.msra.mxu0 0.0
    %666 = vmatprep.subr.mxu0 0.0
    %667 = vmatpush1.msra.mxu0 0.0
    %668 = vmatprep.subr.mxu0 0.0
    %669 = vmatpush1.msra.mxu0 0.0
    %670 = vmatprep.subr.mxu0 0.0
    %671 = vmatpush1.msra.mxu0 0.0
    %672 = vmatprep.subr.mxu0 0.0
    %673 = vmatpush1.msra.mxu0 0.0
    %674 = vmatprep.subr.mxu0 0.0
    %675 = vmatpush1.msra.mxu0 0.0
    %676 = vmatprep.subr.mxu0 0.0
    %677 = vmatpush1.msra.mxu0 0.0
    %678 = vmatprep.subr.mxu0 0.0
    %679 = vmatpush1.msra.mxu0 0.0
    %680 = vmatprep.subr.mxu0 0.0
    %681 = vmatpush1.msra.mxu0 0.0
    %682 = vmatprep.subr.mxu0 0.0
    %683 = vmatpush1.msra.mxu0 0.0
    %684 = vmatprep.subr.mxu0 0.0
    %685 = vmatpush1.msra.mxu0 0.0
    %686 = vmatprep.subr.mxu0 0.0
    %687 = vmatpush1.msra.mxu0 0.0
    %688 = vmatprep.subr.mxu0 0.0
    %689 = vmatpush1.msra.mxu0 0.0
    %690 = vmatprep.subr.mxu0 0.0
    %691 = vmatpush1.msra.mxu0 0.0
    %692 = vmatprep.subr.mxu0 0.0
    %693 = vmatpush1.msra.mxu0 0.0
    %694 = vmatprep.subr.mxu0 0.0
    %695 = vmatpush1.msra.mxu0 0.0
    %696 = vmatprep.subr.mxu0 0.0
    %697 = vmatpush1.msra.mxu0 0.0
    %698 = vmatprep.subr.mxu0 0.0
    %699 = vmatpush1.msra.mxu0 0.0
    %700 = vmatprep.subr.mxu0 0.0
    %701 = vmatpush1.msra.mxu0 0.0
    %702 = vmatprep.subr.mxu0 0.0
    %703 = vmatpush1.msra.mxu0 0.0
    %704 = vmatprep.subr.mxu0 0.0
    %705 = vmatpush1.msra.mxu0 0.0
    %706 = vmatprep.subr.mxu0 0.0
    %707 = vmatpush1.msra.mxu0 0.0
    %708 = vmatprep.subr.mxu0 0.0
    %709 = vmatpush1.msra.mxu0 0.0
    %710 = vmatprep.subr.mxu0 0.0
    %711 = vmatpush1.msra.mxu0 0.0
    %712 = vmatprep.subr.mxu0 0.0
    %713 = vmatpush1.msra.mxu0 0.0
    %714 = vmatprep.mubr.f32.mxu0 0.0
    %715 = vmatmul.mubr.f32.gmra.mrb[0].mxu0 %v648
    %v716 = vpop.f32.mrb[0].mxu0
    %v717 = vadd.f32 %v645, %v716
    %v718 = vpop.f32.mrb[0].mxu0
    %719 = vdwg.mxu0
    %v721 = vlaneseq
    %v722 = vshrl.u32 %v721, 7
    %v723 = vsub.s32 0, %v722
    %v724 = vrot.slane %v507, %v723
    %v727 = vsel %vm250, %v635, 0
    %729 = vmatprep.subr.mxu0 0.0
    %730 = vmatpush1.msra.mxu0 %v503
    %731 = vmatprep.subr.mxu0 0.0
    %732 = vmatpush1.msra.mxu0 %v504
    %733 = vmatprep.subr.mxu0 0.0
    %734 = vmatpush1.msra.mxu0 %v505
    %735 = vmatprep.subr.mxu0 0.0
    %736 = vmatpush1.msra.mxu0 %v506
    %737 = vmatprep.subr.mxu0 0.0
    %738 = vmatpush1.msra.mxu0 0.0
    %739 = vmatprep.subr.mxu0 0.0
    %740 = vmatpush1.msra.mxu0 0.0
    %741 = vmatprep.subr.mxu0 0.0
    %742 = vmatpush1.msra.mxu0 0.0
    %743 = vmatprep.subr.mxu0 0.0
    %744 = vmatpush1.msra.mxu0 0.0
    %745 = vmatprep.subr.mxu0 0.0
    %746 = vmatpush1.msra.mxu0 0.0
    %747 = vmatprep.subr.mxu0 0.0
    %748 = vmatpush1.msra.mxu0 0.0
    %749 = vmatprep.subr.mxu0 0.0
    %750 = vmatpush1.msra.mxu0 0.0
    %751 = vmatprep.subr.mxu0 0.0
    %752 = vmatpush1.msra.mxu0 0.0
    %753 = vmatprep.subr.mxu0 0.0
    %754 = vmatpush1.msra.mxu0 0.0
    %755 = vmatprep.subr.mxu0 0.0
    %756 = vmatpush1.msra.mxu0 0.0
    %757 = vmatprep.subr.mxu0 0.0
    %758 = vmatpush1.msra.mxu0 0.0
    %759 = vmatprep.subr.mxu0 0.0
    %760 = vmatpush1.msra.mxu0 0.0
    %761 = vmatprep.subr.mxu0 0.0
    %762 = vmatpush1.msra.mxu0 0.0
    %763 = vmatprep.subr.mxu0 0.0
    %764 = vmatpush1.msra.mxu0 0.0
    %765 = vmatprep.subr.mxu0 0.0
    %766 = vmatpush1.msra.mxu0 0.0
    %767 = vmatprep.subr.mxu0 0.0
    %768 = vmatpush1.msra.mxu0 0.0
    %769 = vmatprep.subr.mxu0 0.0
    %770 = vmatpush1.msra.mxu0 0.0
    %771 = vmatprep.subr.mxu0 0.0
    %772 = vmatpush1.msra.mxu0 0.0
    %773 = vmatprep.subr.mxu0 0.0
    %774 = vmatpush1.msra.mxu0 0.0
    %775 = vmatprep.subr.mxu0 0.0
    %776 = vmatpush1.msra.mxu0 0.0
    %777 = vmatprep.subr.mxu0 0.0
    %778 = vmatpush1.msra.mxu0 0.0
    %779 = vmatprep.subr.mxu0 0.0
    %780 = vmatpush1.msra.mxu0 0.0
    %781 = vmatprep.subr.mxu0 0.0
    %782 = vmatpush1.msra.mxu0 0.0
    %783 = vmatprep.subr.mxu0 0.0
    %784 = vmatpush1.msra.mxu0 0.0
    %785 = vmatprep.subr.mxu0 0.0
    %786 = vmatpush1.msra.mxu0 0.0
    %787 = vmatprep.subr.mxu0 0.0
    %788 = vmatpush1.msra.mxu0 0.0
    %789 = vmatprep.subr.mxu0 0.0
    %790 = vmatpush1.msra.mxu0 0.0
    %791 = vmatprep.subr.mxu0 0.0
    %792 = vmatpush1.msra.mxu0 0.0
    %793 = vmatprep.mubr.f32.mxu0 0.0
    %794 = vmatmul.mubr.f32.gmra.mrb[0].mxu0 %v727
    %v795 = vpop.f32.mrb[0].mxu0
    %v796 = vadd.f32 %v724, %v795
    %v797 = vpop.f32.mrb[0].mxu0
    %798 = vdwg.mxu0
    %v800 = vsel %vm250, %v638, 0
    %802 = vmatprep.subr.mxu0 0.0
    %803 = vmatpush1.msra.mxu0 %v503
    %804 = vmatprep.subr.mxu0 0.0
    %805 = vmatpush1.msra.mxu0 %v504
    %806 = vmatprep.subr.mxu0 0.0
    %807 = vmatpush1.msra.mxu0 %v505
    %808 = vmatprep.subr.mxu0 0.0
    %809 = vmatpush1.msra.mxu0 %v506
    %810 = vmatprep.subr.mxu0 0.0
    %811 = vmatpush1.msra.mxu0 0.0
    %812 = vmatprep.subr.mxu0 0.0
    %813 = vmatpush1.msra.mxu0 0.0
    %814 = vmatprep.subr.mxu0 0.0
    %815 = vmatpush1.msra.mxu0 0.0
    %816 = vmatprep.subr.mxu0 0.0
    %817 = vmatpush1.msra.mxu0 0.0
    %818 = vmatprep.subr.mxu0 0.0
    %819 = vmatpush1.msra.mxu0 0.0
    %820 = vmatprep.subr.mxu0 0.0
    %821 = vmatpush1.msra.mxu0 0.0
    %822 = vmatprep.subr.mxu0 0.0
    %823 = vmatpush1.msra.mxu0 0.0
    %824 = vmatprep.subr.mxu0 0.0
    %825 = vmatpush1.msra.mxu0 0.0
    %826 = vmatprep.subr.mxu0 0.0
    %827 = vmatpush1.msra.mxu0 0.0
    %828 = vmatprep.subr.mxu0 0.0
    %829 = vmatpush1.msra.mxu0 0.0
    %830 = vmatprep.subr.mxu0 0.0
    %831 = vmatpush1.msra.mxu0 0.0
    %832 = vmatprep.subr.mxu0 0.0
    %833 = vmatpush1.msra.mxu0 0.0
    %834 = vmatprep.subr.mxu0 0.0
    %835 = vmatpush1.msra.mxu0 0.0
    %836 = vmatprep.subr.mxu0 0.0
    %837 = vmatpush1.msra.mxu0 0.0
    %838 = vmatprep.subr.mxu0 0.0
    %839 = vmatpush1.msra.mxu0 0.0
    %840 = vmatprep.subr.mxu0 0.0
    %841 = vmatpush1.msra.mxu0 0.0
    %842 = vmatprep.subr.mxu0 0.0
    %843 = vmatpush1.msra.mxu0 0.0
    %844 = vmatprep.subr.mxu0 0.0
    %845 = vmatpush1.msra.mxu0 0.0
    %846 = vmatprep.subr.mxu0 0.0
    %847 = vmatpush1.msra.mxu0 0.0
    %848 = vmatprep.subr.mxu0 0.0
    %849 = vmatpush1.msra.mxu0 0.0
    %850 = vmatprep.subr.mxu0 0.0
    %851 = vmatpush1.msra.mxu0 0.0
    %852 = vmatprep.subr.mxu0 0.0
    %853 = vmatpush1.msra.mxu0 0.0
    %854 = vmatprep.subr.mxu0 0.0
    %855 = vmatpush1.msra.mxu0 0.0
    %856 = vmatprep.subr.mxu0 0.0
    %857 = vmatpush1.msra.mxu0 0.0
    %858 = vmatprep.subr.mxu0 0.0
    %859 = vmatpush1.msra.mxu0 0.0
    %860 = vmatprep.subr.mxu0 0.0
    %861 = vmatpush1.msra.mxu0 0.0
    %862 = vmatprep.subr.mxu0 0.0
    %863 = vmatpush1.msra.mxu0 0.0
    %864 = vmatprep.subr.mxu0 0.0
    %865 = vmatpush1.msra.mxu0 0.0
    %866 = vmatprep.mubr.f32.mxu0 0.0
    %867 = vmatmul.mubr.f32.gmra.mrb[0].mxu0 %v800
    %v868 = vpop.f32.mrb[0].mxu0
    %v869 = vadd.f32 %v724, %v868
    %v870 = vpop.f32.mrb[0].mxu0
    %871 = vdwg.mxu0
    %v872 = vmul.f32 %v717, %v796
    %vm873 = vcmask 254976
    %v874 = vsel %vm873, %v872, 0.0
    %875 = vadd.xlane.f32.xlu0 %v874
    %v876 = vpop.xlane.xlu0 %875
    %v877 = vmul.f32 %v876, 0.35355338
    %v878 = vtanh.pop %v877
    %v879 = vmul.f32 %v878, 10.0
    %v880 = vmul.f32 %v717, %v869
    %v881 = vsel %vm873, %v880, 0.0
    %882 = vadd.xlane.f32.xlu0 %v881
    %v883 = vpop.xlane.xlu0 %882
    %v884 = vmul.f32 %v883, 0.35355338
    %v885 = vtanh.pop %v884
    %v886 = vmul.f32 %v885, 10.0
    %vm887 = vcmp.gt.f32.partialorder %v886, %v879
    %v888 = vmax.f32 %v879, %v886
    %v889 = vsub.f32 %v879, %v888
    %v890 = vmul.f32 %v889, 1.442695
    %v891 = vpow.pop %v890
    %v892 = vsub.f32 %v886, %v888
    %v893 = vmul.f32 %v892, 1.442695
    %v894 = vpow.pop %v893
    %v895 = vsel %vm887, %v894, %v891
    %v896 = vadd.f32 %v891, %v894
    %v897 = vrcp.pop %v896
    %v898 = vmul.f32 %v895, %v897
    %v899 = vsel %vm887, 1, 0
    %v900 = vsel %vm887, %v614, %v610
    %v901 = vsel %vm887, 0.0, %v610
    %v902 = vadd.f32 %v901, 0.0
    %v903 = vsel %vm887, %v614, 0.0
    %v904 = vadd.f32 %v903, 0.0
    %v905 = vsub.f32 0.0, %v900
    %vm906 = vcmp.eq.s32.totalorder %v509, 0
    %v907 = vsel %vm906, %v606, 0.0
    %v908 = vsel %vm906, %v898, 0.0
    %v909 = vsel %vm906, %v576, 0
    %v910 = vsel %vm906, %v899, 0
    %vm911 = vcmp.gt.f32.partialorder %v617, 0.5
    %v914 = vlaneseq
    %v915 = vshrl.u32 %v914, 7
    %v916 = vsub.s32 %v509, %v915
    %v917 = vrot.slane %v492, %v916
    %v918 = vlaneseq
    %v919 = vshrl.u32 %v918, 7
    %v920 = vsub.s32 %v509, %v919
    %v921 = vrot.slane %v493, %v920
    %v922 = vsel %vm281, %v921, %v917
    %v924 = vsel %vm911, -1e+30, %v922
    %v925 = vsel %vm525, %v924, -inf
    %926 = vmax.xlane.f32.xlu0 %v925
    %v927 = vpop.xlane.xlu0 %926
    %vm928 = vcmp.ge.f32.partialorder %v924, %v927
    %v929 = vsel %vm928, %v509, 8
    %v930 = vsel %vm525, %v929, 2147483647
    %v931 = vand.u32 %v930, 65535
    %v932 = vshra.s32 %v930, 16
    %v933 = vcvt.s32.f32 %v931
    %v934 = vcvt.s32.f32 %v932
    %935 = vmin.xlane.f32.xlu0 %v934
    %v936 = vpop.xlane.xlu0 %935
    %vm937 = vcmp.eq.f32.partialorder %v934, %v936
    %v938 = vsel %vm937, %v933, inf
    %939 = vmin.xlane.f32.xlu0 %v938
    %v940 = vpop.xlane.xlu0 %939
    %v941 = vcvt.f32.s32 %v940
    %v942 = vcvt.f32.s32 %v936
    %v943 = vshll.u32 %v942, 16
    %v944 = vadd.s32 %v943, %v941
    %vm945 = vcmp.eq.s32.totalorder %v509, %v944
    %v946 = vsub.f32 %v924, %v927
    %v947 = vmul.f32 %v946, 1.442695
    %v948 = vpow.pop %v947
    %v949 = vsel %vm525, %v948, 0.0
    %950 = vadd.xlane.f32.xlu0 %v949
    %v951 = vpop.xlane.xlu0 %950
    %v952 = vrcp.pop %v951
    %v953 = vmul.f32 1.0, %v952
    %v954 = vsel %vm945, %v494, 0.0
    %v955 = vsel %vm525, %v954, 0.0
    %956 = vadd.xlane.f32.xlu0 %v955
    %v957 = vpop.xlane.xlu0 %956
    %v958 = vsel %vm945, %v495, 0.0
    %v959 = vsel %vm525, %v958, 0.0
    %960 = vadd.xlane.f32.xlu0 %v959
    %v961 = vpop.xlane.xlu0 %960
    %v962 = vsel %vm945, 1, 0
    %v963 = vcvt.s32.f32 %v962
    %v964 = vmax.f32 %v617, %v963
    %v965 = vmul.f32 %v902, %v621
    %v966 = vmul.f32 %v957, %v626
    %v967 = vadd.f32 %v965, %v966
    %v968 = vadd.f32 %v967, %v633
    %v969 = vmul.f32 %v904, %v621
    %v970 = vmul.f32 %v961, %v626
    %v971 = vadd.f32 %v969, %v970
    %v972 = vadd.f32 %v971, %v633
    %v973 = vadd.f32 %v968, %v972
    %v974 = vmul.f32 %v973, 0.5
    %v976 = vsel %vm250, %v974, 0
    %978 = vmatprep.subr.mxu0 0.0
    %979 = vmatpush1.msra.mxu0 %v498
    %980 = vmatprep.subr.mxu0 0.0
    %981 = vmatpush1.msra.mxu0 %v499
    %982 = vmatprep.subr.mxu0 0.0
    %983 = vmatpush1.msra.mxu0 %v500
    %984 = vmatprep.subr.mxu0 0.0
    %985 = vmatpush1.msra.mxu0 %v501
    %986 = vmatprep.subr.mxu0 0.0
    %987 = vmatpush1.msra.mxu0 0.0
    %988 = vmatprep.subr.mxu0 0.0
    %989 = vmatpush1.msra.mxu0 0.0
    %990 = vmatprep.subr.mxu0 0.0
    %991 = vmatpush1.msra.mxu0 0.0
    %992 = vmatprep.subr.mxu0 0.0
    %993 = vmatpush1.msra.mxu0 0.0
    %994 = vmatprep.subr.mxu0 0.0
    %995 = vmatpush1.msra.mxu0 0.0
    %996 = vmatprep.subr.mxu0 0.0
    %997 = vmatpush1.msra.mxu0 0.0
    %998 = vmatprep.subr.mxu0 0.0
    %999 = vmatpush1.msra.mxu0 0.0
    %1000 = vmatprep.subr.mxu0 0.0
    %1001 = vmatpush1.msra.mxu0 0.0
    %1002 = vmatprep.subr.mxu0 0.0
    %1003 = vmatpush1.msra.mxu0 0.0
    %1004 = vmatprep.subr.mxu0 0.0
    %1005 = vmatpush1.msra.mxu0 0.0
    %1006 = vmatprep.subr.mxu0 0.0
    %1007 = vmatpush1.msra.mxu0 0.0
    %1008 = vmatprep.subr.mxu0 0.0
    %1009 = vmatpush1.msra.mxu0 0.0
    %1010 = vmatprep.subr.mxu0 0.0
    %1011 = vmatpush1.msra.mxu0 0.0
    %1012 = vmatprep.subr.mxu0 0.0
    %1013 = vmatpush1.msra.mxu0 0.0
    %1014 = vmatprep.subr.mxu0 0.0
    %1015 = vmatpush1.msra.mxu0 0.0
    %1016 = vmatprep.subr.mxu0 0.0
    %1017 = vmatpush1.msra.mxu0 0.0
    %1018 = vmatprep.subr.mxu0 0.0
    %1019 = vmatpush1.msra.mxu0 0.0
    %1020 = vmatprep.subr.mxu0 0.0
    %1021 = vmatpush1.msra.mxu0 0.0
    %1022 = vmatprep.subr.mxu0 0.0
    %1023 = vmatpush1.msra.mxu0 0.0
    %1024 = vmatprep.subr.mxu0 0.0
    %1025 = vmatpush1.msra.mxu0 0.0
    %1026 = vmatprep.subr.mxu0 0.0
    %1027 = vmatpush1.msra.mxu0 0.0
    %1028 = vmatprep.subr.mxu0 0.0
    %1029 = vmatpush1.msra.mxu0 0.0
    %1030 = vmatprep.subr.mxu0 0.0
    %1031 = vmatpush1.msra.mxu0 0.0
    %1032 = vmatprep.subr.mxu0 0.0
    %1033 = vmatpush1.msra.mxu0 0.0
    %1034 = vmatprep.subr.mxu0 0.0
    %1035 = vmatpush1.msra.mxu0 0.0
    %1036 = vmatprep.subr.mxu0 0.0
    %1037 = vmatpush1.msra.mxu0 0.0
    %1038 = vmatprep.subr.mxu0 0.0
    %1039 = vmatpush1.msra.mxu0 0.0
    %1040 = vmatprep.subr.mxu0 0.0
    %1041 = vmatpush1.msra.mxu0 0.0
    %1042 = vmatprep.mubr.f32.mxu0 0.0
    %1043 = vmatmul.mubr.f32.gmra.mrb[0].mxu0 %v976
    %v1044 = vpop.f32.mrb[0].mxu0
    %v1045 = vadd.f32 %v645, %v1044
    %v1046 = vpop.f32.mrb[0].mxu0
    %1047 = vdwg.mxu0
    %v1049 = vsel %vm250, %v968, 0
    %1051 = vmatprep.subr.mxu0 0.0
    %1052 = vmatpush1.msra.mxu0 %v503
    %1053 = vmatprep.subr.mxu0 0.0
    %1054 = vmatpush1.msra.mxu0 %v504
    %1055 = vmatprep.subr.mxu0 0.0
    %1056 = vmatpush1.msra.mxu0 %v505
    %1057 = vmatprep.subr.mxu0 0.0
    %1058 = vmatpush1.msra.mxu0 %v506
    %1059 = vmatprep.subr.mxu0 0.0
    %1060 = vmatpush1.msra.mxu0 0.0
    %1061 = vmatprep.subr.mxu0 0.0
    %1062 = vmatpush1.msra.mxu0 0.0
    %1063 = vmatprep.subr.mxu0 0.0
    %1064 = vmatpush1.msra.mxu0 0.0
    %1065 = vmatprep.subr.mxu0 0.0
    %1066 = vmatpush1.msra.mxu0 0.0
    %1067 = vmatprep.subr.mxu0 0.0
    %1068 = vmatpush1.msra.mxu0 0.0
    %1069 = vmatprep.subr.mxu0 0.0
    %1070 = vmatpush1.msra.mxu0 0.0
    %1071 = vmatprep.subr.mxu0 0.0
    %1072 = vmatpush1.msra.mxu0 0.0
    %1073 = vmatprep.subr.mxu0 0.0
    %1074 = vmatpush1.msra.mxu0 0.0
    %1075 = vmatprep.subr.mxu0 0.0
    %1076 = vmatpush1.msra.mxu0 0.0
    %1077 = vmatprep.subr.mxu0 0.0
    %1078 = vmatpush1.msra.mxu0 0.0
    %1079 = vmatprep.subr.mxu0 0.0
    %1080 = vmatpush1.msra.mxu0 0.0
    %1081 = vmatprep.subr.mxu0 0.0
    %1082 = vmatpush1.msra.mxu0 0.0
    %1083 = vmatprep.subr.mxu0 0.0
    %1084 = vmatpush1.msra.mxu0 0.0
    %1085 = vmatprep.subr.mxu0 0.0
    %1086 = vmatpush1.msra.mxu0 0.0
    %1087 = vmatprep.subr.mxu0 0.0
    %1088 = vmatpush1.msra.mxu0 0.0
    %1089 = vmatprep.subr.mxu0 0.0
    %1090 = vmatpush1.msra.mxu0 0.0
    %1091 = vmatprep.subr.mxu0 0.0
    %1092 = vmatpush1.msra.mxu0 0.0
    %1093 = vmatprep.subr.mxu0 0.0
    %1094 = vmatpush1.msra.mxu0 0.0
    %1095 = vmatprep.subr.mxu0 0.0
    %1096 = vmatpush1.msra.mxu0 0.0
    %1097 = vmatprep.subr.mxu0 0.0
    %1098 = vmatpush1.msra.mxu0 0.0
    %1099 = vmatprep.subr.mxu0 0.0
    %1100 = vmatpush1.msra.mxu0 0.0
    %1101 = vmatprep.subr.mxu0 0.0
    %1102 = vmatpush1.msra.mxu0 0.0
    %1103 = vmatprep.subr.mxu0 0.0
    %1104 = vmatpush1.msra.mxu0 0.0
    %1105 = vmatprep.subr.mxu0 0.0
    %1106 = vmatpush1.msra.mxu0 0.0
    %1107 = vmatprep.subr.mxu0 0.0
    %1108 = vmatpush1.msra.mxu0 0.0
    %1109 = vmatprep.subr.mxu0 0.0
    %1110 = vmatpush1.msra.mxu0 0.0
    %1111 = vmatprep.subr.mxu0 0.0
    %1112 = vmatpush1.msra.mxu0 0.0
    %1113 = vmatprep.subr.mxu0 0.0
    %1114 = vmatpush1.msra.mxu0 0.0
    %1115 = vmatprep.mubr.f32.mxu0 0.0
    %1116 = vmatmul.mubr.f32.gmra.mrb[0].mxu0 %v1049
    %v1117 = vpop.f32.mrb[0].mxu0
    %v1118 = vadd.f32 %v724, %v1117
    %v1119 = vpop.f32.mrb[0].mxu0
    %1120 = vdwg.mxu0
    %v1122 = vsel %vm250, %v972, 0
    %1124 = vmatprep.subr.mxu0 0.0
    %1125 = vmatpush1.msra.mxu0 %v503
    %1126 = vmatprep.subr.mxu0 0.0
    %1127 = vmatpush1.msra.mxu0 %v504
    %1128 = vmatprep.subr.mxu0 0.0
    %1129 = vmatpush1.msra.mxu0 %v505
    %1130 = vmatprep.subr.mxu0 0.0
    %1131 = vmatpush1.msra.mxu0 %v506
    %1132 = vmatprep.subr.mxu0 0.0
    %1133 = vmatpush1.msra.mxu0 0.0
    %1134 = vmatprep.subr.mxu0 0.0
    %1135 = vmatpush1.msra.mxu0 0.0
    %1136 = vmatprep.subr.mxu0 0.0
    %1137 = vmatpush1.msra.mxu0 0.0
    %1138 = vmatprep.subr.mxu0 0.0
    %1139 = vmatpush1.msra.mxu0 0.0
    %1140 = vmatprep.subr.mxu0 0.0
    %1141 = vmatpush1.msra.mxu0 0.0
    %1142 = vmatprep.subr.mxu0 0.0
    %1143 = vmatpush1.msra.mxu0 0.0
    %1144 = vmatprep.subr.mxu0 0.0
    %1145 = vmatpush1.msra.mxu0 0.0
    %1146 = vmatprep.subr.mxu0 0.0
    %1147 = vmatpush1.msra.mxu0 0.0
    %1148 = vmatprep.subr.mxu0 0.0
    %1149 = vmatpush1.msra.mxu0 0.0
    %1150 = vmatprep.subr.mxu0 0.0
    %1151 = vmatpush1.msra.mxu0 0.0
    %1152 = vmatprep.subr.mxu0 0.0
    %1153 = vmatpush1.msra.mxu0 0.0
    %1154 = vmatprep.subr.mxu0 0.0
    %1155 = vmatpush1.msra.mxu0 0.0
    %1156 = vmatprep.subr.mxu0 0.0
    %1157 = vmatpush1.msra.mxu0 0.0
    %1158 = vmatprep.subr.mxu0 0.0
    %1159 = vmatpush1.msra.mxu0 0.0
    %1160 = vmatprep.subr.mxu0 0.0
    %1161 = vmatpush1.msra.mxu0 0.0
    %1162 = vmatprep.subr.mxu0 0.0
    %1163 = vmatpush1.msra.mxu0 0.0
    %1164 = vmatprep.subr.mxu0 0.0
    %1165 = vmatpush1.msra.mxu0 0.0
    %1166 = vmatprep.subr.mxu0 0.0
    %1167 = vmatpush1.msra.mxu0 0.0
    %1168 = vmatprep.subr.mxu0 0.0
    %1169 = vmatpush1.msra.mxu0 0.0
    %1170 = vmatprep.subr.mxu0 0.0
    %1171 = vmatpush1.msra.mxu0 0.0
    %1172 = vmatprep.subr.mxu0 0.0
    %1173 = vmatpush1.msra.mxu0 0.0
    %1174 = vmatprep.subr.mxu0 0.0
    %1175 = vmatpush1.msra.mxu0 0.0
    %1176 = vmatprep.subr.mxu0 0.0
    %1177 = vmatpush1.msra.mxu0 0.0
    %1178 = vmatprep.subr.mxu0 0.0
    %1179 = vmatpush1.msra.mxu0 0.0
    %1180 = vmatprep.subr.mxu0 0.0
    %1181 = vmatpush1.msra.mxu0 0.0
    %1182 = vmatprep.subr.mxu0 0.0
    %1183 = vmatpush1.msra.mxu0 0.0
    %1184 = vmatprep.subr.mxu0 0.0
    %1185 = vmatpush1.msra.mxu0 0.0
    %1186 = vmatprep.subr.mxu0 0.0
    %1187 = vmatpush1.msra.mxu0 0.0
    %1188 = vmatprep.mubr.f32.mxu0 0.0
    %1189 = vmatmul.mubr.f32.gmra.mrb[0].mxu0 %v1122
    %v1190 = vpop.f32.mrb[0].mxu0
    %v1191 = vadd.f32 %v724, %v1190
    %v1192 = vpop.f32.mrb[0].mxu0
    %1193 = vdwg.mxu0
    %v1194 = vmul.f32 %v1045, %v1118
    %v1195 = vsel %vm873, %v1194, 0.0
    %1196 = vadd.xlane.f32.xlu0 %v1195
    %v1197 = vpop.xlane.xlu0 %1196
    %v1198 = vmul.f32 %v1197, 0.35355338
    %v1199 = vtanh.pop %v1198
    %v1200 = vmul.f32 %v1199, 10.0
    %v1201 = vmul.f32 %v1045, %v1191
    %v1202 = vsel %vm873, %v1201, 0.0
    %1203 = vadd.xlane.f32.xlu0 %v1202
    %v1204 = vpop.xlane.xlu0 %1203
    %v1205 = vmul.f32 %v1204, 0.35355338
    %v1206 = vtanh.pop %v1205
    %v1207 = vmul.f32 %v1206, 10.0
    %vm1208 = vcmp.gt.f32.partialorder %v1207, %v1200
    %v1209 = vmax.f32 %v1200, %v1207
    %v1210 = vsub.f32 %v1200, %v1209
    %v1211 = vmul.f32 %v1210, 1.442695
    %v1212 = vpow.pop %v1211
    %v1213 = vsub.f32 %v1207, %v1209
    %v1214 = vmul.f32 %v1213, 1.442695
    %v1215 = vpow.pop %v1214
    %v1216 = vsel %vm1208, %v1215, %v1212
    %v1217 = vadd.f32 %v1212, %v1215
    %v1218 = vrcp.pop %v1217
    %v1219 = vmul.f32 %v1216, %v1218
    %v1220 = vsel %vm1208, 1, 0
    %v1221 = vsel %vm1208, %v961, %v957
    %v1222 = vsel %vm1208, 0.0, %v957
    %v1223 = vadd.f32 %v902, %v1222
    %v1224 = vsel %vm1208, %v961, 0.0
    %v1225 = vadd.f32 %v904, %v1224
    %v1226 = vsub.f32 %v905, %v1221
    %vm1227 = vcmp.eq.s32.totalorder %v509, 1
    %v1228 = vsel %vm1227, %v953, %v907
    %v1229 = vsel %vm1227, %v1219, %v908
    %v1230 = vsel %vm1227, %v944, %v909
    %v1231 = vsel %vm1227, %v1220, %v910
    %vm1232 = vcmp.gt.f32.partialorder %v964, 0.5
    %v1233 = vsel %vm1232, -1e+30, %v922
    %v1234 = vsel %vm525, %v1233, -inf
    %1235 = vmax.xlane.f32.xlu0 %v1234
    %v1236 = vpop.xlane.xlu0 %1235
    %vm1237 = vcmp.ge.f32.partialorder %v1233, %v1236
    %v1238 = vsel %vm1237, %v509, 8
    %v1239 = vsel %vm525, %v1238, 2147483647
    %v1240 = vand.u32 %v1239, 65535
    %v1241 = vshra.s32 %v1239, 16
    %v1242 = vcvt.s32.f32 %v1240
    %v1243 = vcvt.s32.f32 %v1241
    %1244 = vmin.xlane.f32.xlu0 %v1243
    %v1245 = vpop.xlane.xlu0 %1244
    %vm1246 = vcmp.eq.f32.partialorder %v1243, %v1245
    %v1247 = vsel %vm1246, %v1242, inf
    %1248 = vmin.xlane.f32.xlu0 %v1247
    %v1249 = vpop.xlane.xlu0 %1248
    %v1250 = vcvt.f32.s32 %v1249
    %v1251 = vcvt.f32.s32 %v1245
    %v1252 = vshll.u32 %v1251, 16
    %v1253 = vadd.s32 %v1252, %v1250
    %vm1254 = vcmp.eq.s32.totalorder %v509, %v1253
    %v1255 = vsub.f32 %v1233, %v1236
    %v1256 = vmul.f32 %v1255, 1.442695
    %v1257 = vpow.pop %v1256
    %v1258 = vsel %vm525, %v1257, 0.0
    %1259 = vadd.xlane.f32.xlu0 %v1258
    %v1260 = vpop.xlane.xlu0 %1259
    %v1261 = vrcp.pop %v1260
    %v1262 = vmul.f32 1.0, %v1261
    %v1263 = vsel %vm1254, %v494, 0.0
    %v1264 = vsel %vm525, %v1263, 0.0
    %1265 = vadd.xlane.f32.xlu0 %v1264
    %v1266 = vpop.xlane.xlu0 %1265
    %v1267 = vsel %vm1254, %v495, 0.0
    %v1268 = vsel %vm525, %v1267, 0.0
    %1269 = vadd.xlane.f32.xlu0 %v1268
    %v1270 = vpop.xlane.xlu0 %1269
    %v1271 = vsel %vm1254, 1, 0
    %v1272 = vcvt.s32.f32 %v1271
    %v1273 = vmax.f32 %v964, %v1272
    %v1274 = vmul.f32 %v1223, %v621
    %v1275 = vmul.f32 %v1266, %v626
    %v1276 = vadd.f32 %v1274, %v1275
    %v1277 = vadd.f32 %v1276, %v633
    %v1278 = vmul.f32 %v1225, %v621
    %v1279 = vmul.f32 %v1270, %v626
    %v1280 = vadd.f32 %v1278, %v1279
    %v1281 = vadd.f32 %v1280, %v633
    %v1282 = vadd.f32 %v1277, %v1281
    %v1283 = vmul.f32 %v1282, 0.5
    %v1285 = vsel %vm250, %v1283, 0
    %1287 = vmatprep.subr.mxu0 0.0
    %1288 = vmatpush1.msra.mxu0 %v498
    %1289 = vmatprep.subr.mxu0 0.0
    %1290 = vmatpush1.msra.mxu0 %v499
    %1291 = vmatprep.subr.mxu0 0.0
    %1292 = vmatpush1.msra.mxu0 %v500
    %1293 = vmatprep.subr.mxu0 0.0
    %1294 = vmatpush1.msra.mxu0 %v501
    %1295 = vmatprep.subr.mxu0 0.0
    %1296 = vmatpush1.msra.mxu0 0.0
    %1297 = vmatprep.subr.mxu0 0.0
    %1298 = vmatpush1.msra.mxu0 0.0
    %1299 = vmatprep.subr.mxu0 0.0
    %1300 = vmatpush1.msra.mxu0 0.0
    %1301 = vmatprep.subr.mxu0 0.0
    %1302 = vmatpush1.msra.mxu0 0.0
    %1303 = vmatprep.subr.mxu0 0.0
    %1304 = vmatpush1.msra.mxu0 0.0
    %1305 = vmatprep.subr.mxu0 0.0
    %1306 = vmatpush1.msra.mxu0 0.0
    %1307 = vmatprep.subr.mxu0 0.0
    %1308 = vmatpush1.msra.mxu0 0.0
    %1309 = vmatprep.subr.mxu0 0.0
    %1310 = vmatpush1.msra.mxu0 0.0
    %1311 = vmatprep.subr.mxu0 0.0
    %1312 = vmatpush1.msra.mxu0 0.0
    %1313 = vmatprep.subr.mxu0 0.0
    %1314 = vmatpush1.msra.mxu0 0.0
    %1315 = vmatprep.subr.mxu0 0.0
    %1316 = vmatpush1.msra.mxu0 0.0
    %1317 = vmatprep.subr.mxu0 0.0
    %1318 = vmatpush1.msra.mxu0 0.0
    %1319 = vmatprep.subr.mxu0 0.0
    %1320 = vmatpush1.msra.mxu0 0.0
    %1321 = vmatprep.subr.mxu0 0.0
    %1322 = vmatpush1.msra.mxu0 0.0
    %1323 = vmatprep.subr.mxu0 0.0
    %1324 = vmatpush1.msra.mxu0 0.0
    %1325 = vmatprep.subr.mxu0 0.0
    %1326 = vmatpush1.msra.mxu0 0.0
    %1327 = vmatprep.subr.mxu0 0.0
    %1328 = vmatpush1.msra.mxu0 0.0
    %1329 = vmatprep.subr.mxu0 0.0
    %1330 = vmatpush1.msra.mxu0 0.0
    %1331 = vmatprep.subr.mxu0 0.0
    %1332 = vmatpush1.msra.mxu0 0.0
    %1333 = vmatprep.subr.mxu0 0.0
    %1334 = vmatpush1.msra.mxu0 0.0
    %1335 = vmatprep.subr.mxu0 0.0
    %1336 = vmatpush1.msra.mxu0 0.0
    %1337 = vmatprep.subr.mxu0 0.0
    %1338 = vmatpush1.msra.mxu0 0.0
    %1339 = vmatprep.subr.mxu0 0.0
    %1340 = vmatpush1.msra.mxu0 0.0
    %1341 = vmatprep.subr.mxu0 0.0
    %1342 = vmatpush1.msra.mxu0 0.0
    %1343 = vmatprep.subr.mxu0 0.0
    %1344 = vmatpush1.msra.mxu0 0.0
    %1345 = vmatprep.subr.mxu0 0.0
    %1346 = vmatpush1.msra.mxu0 0.0
    %1347 = vmatprep.subr.mxu0 0.0
    %1348 = vmatpush1.msra.mxu0 0.0
    %1349 = vmatprep.subr.mxu0 0.0
    %1350 = vmatpush1.msra.mxu0 0.0
    %1351 = vmatprep.mubr.f32.mxu0 0.0
    %1352 = vmatmul.mubr.f32.gmra.mrb[0].mxu0 %v1285
    %v1353 = vpop.f32.mrb[0].mxu0
    %v1354 = vadd.f32 %v645, %v1353
    %v1355 = vpop.f32.mrb[0].mxu0
    %1356 = vdwg.mxu0
    %v1358 = vsel %vm250, %v1277, 0
    %1360 = vmatprep.subr.mxu0 0.0
    %1361 = vmatpush1.msra.mxu0 %v503
    %1362 = vmatprep.subr.mxu0 0.0
    %1363 = vmatpush1.msra.mxu0 %v504
    %1364 = vmatprep.subr.mxu0 0.0
    %1365 = vmatpush1.msra.mxu0 %v505
    %1366 = vmatprep.subr.mxu0 0.0
    %1367 = vmatpush1.msra.mxu0 %v506
    %1368 = vmatprep.subr.mxu0 0.0
    %1369 = vmatpush1.msra.mxu0 0.0
    %1370 = vmatprep.subr.mxu0 0.0
    %1371 = vmatpush1.msra.mxu0 0.0
    %1372 = vmatprep.subr.mxu0 0.0
    %1373 = vmatpush1.msra.mxu0 0.0
    %1374 = vmatprep.subr.mxu0 0.0
    %1375 = vmatpush1.msra.mxu0 0.0
    %1376 = vmatprep.subr.mxu0 0.0
    %1377 = vmatpush1.msra.mxu0 0.0
    %1378 = vmatprep.subr.mxu0 0.0
    %1379 = vmatpush1.msra.mxu0 0.0
    %1380 = vmatprep.subr.mxu0 0.0
    %1381 = vmatpush1.msra.mxu0 0.0
    %1382 = vmatprep.subr.mxu0 0.0
    %1383 = vmatpush1.msra.mxu0 0.0
    %1384 = vmatprep.subr.mxu0 0.0
    %1385 = vmatpush1.msra.mxu0 0.0
    %1386 = vmatprep.subr.mxu0 0.0
    %1387 = vmatpush1.msra.mxu0 0.0
    %1388 = vmatprep.subr.mxu0 0.0
    %1389 = vmatpush1.msra.mxu0 0.0
    %1390 = vmatprep.subr.mxu0 0.0
    %1391 = vmatpush1.msra.mxu0 0.0
    %1392 = vmatprep.subr.mxu0 0.0
    %1393 = vmatpush1.msra.mxu0 0.0
    %1394 = vmatprep.subr.mxu0 0.0
    %1395 = vmatpush1.msra.mxu0 0.0
    %1396 = vmatprep.subr.mxu0 0.0
    %1397 = vmatpush1.msra.mxu0 0.0
    %1398 = vmatprep.subr.mxu0 0.0
    %1399 = vmatpush1.msra.mxu0 0.0
    %1400 = vmatprep.subr.mxu0 0.0
    %1401 = vmatpush1.msra.mxu0 0.0
    %1402 = vmatprep.subr.mxu0 0.0
    %1403 = vmatpush1.msra.mxu0 0.0
    %1404 = vmatprep.subr.mxu0 0.0
    %1405 = vmatpush1.msra.mxu0 0.0
    %1406 = vmatprep.subr.mxu0 0.0
    %1407 = vmatpush1.msra.mxu0 0.0
    %1408 = vmatprep.subr.mxu0 0.0
    %1409 = vmatpush1.msra.mxu0 0.0
    %1410 = vmatprep.subr.mxu0 0.0
    %1411 = vmatpush1.msra.mxu0 0.0
    %1412 = vmatprep.subr.mxu0 0.0
    %1413 = vmatpush1.msra.mxu0 0.0
    %1414 = vmatprep.subr.mxu0 0.0
    %1415 = vmatpush1.msra.mxu0 0.0
    %1416 = vmatprep.subr.mxu0 0.0
    %1417 = vmatpush1.msra.mxu0 0.0
    %1418 = vmatprep.subr.mxu0 0.0
    %1419 = vmatpush1.msra.mxu0 0.0
    %1420 = vmatprep.subr.mxu0 0.0
    %1421 = vmatpush1.msra.mxu0 0.0
    %1422 = vmatprep.subr.mxu0 0.0
    %1423 = vmatpush1.msra.mxu0 0.0
    %1424 = vmatprep.mubr.f32.mxu0 0.0
    %1425 = vmatmul.mubr.f32.gmra.mrb[0].mxu0 %v1358
    %v1426 = vpop.f32.mrb[0].mxu0
    %v1427 = vadd.f32 %v724, %v1426
    %v1428 = vpop.f32.mrb[0].mxu0
    %1429 = vdwg.mxu0
    %v1431 = vsel %vm250, %v1281, 0
    %1433 = vmatprep.subr.mxu0 0.0
    %1434 = vmatpush1.msra.mxu0 %v503
    %1435 = vmatprep.subr.mxu0 0.0
    %1436 = vmatpush1.msra.mxu0 %v504
    %1437 = vmatprep.subr.mxu0 0.0
    %1438 = vmatpush1.msra.mxu0 %v505
    %1439 = vmatprep.subr.mxu0 0.0
    %1440 = vmatpush1.msra.mxu0 %v506
    %1441 = vmatprep.subr.mxu0 0.0
    %1442 = vmatpush1.msra.mxu0 0.0
    %1443 = vmatprep.subr.mxu0 0.0
    %1444 = vmatpush1.msra.mxu0 0.0
    %1445 = vmatprep.subr.mxu0 0.0
    %1446 = vmatpush1.msra.mxu0 0.0
    %1447 = vmatprep.subr.mxu0 0.0
    %1448 = vmatpush1.msra.mxu0 0.0
    %1449 = vmatprep.subr.mxu0 0.0
    %1450 = vmatpush1.msra.mxu0 0.0
    %1451 = vmatprep.subr.mxu0 0.0
    %1452 = vmatpush1.msra.mxu0 0.0
    %1453 = vmatprep.subr.mxu0 0.0
    %1454 = vmatpush1.msra.mxu0 0.0
    %1455 = vmatprep.subr.mxu0 0.0
    %1456 = vmatpush1.msra.mxu0 0.0
    %1457 = vmatprep.subr.mxu0 0.0
    %1458 = vmatpush1.msra.mxu0 0.0
    %1459 = vmatprep.subr.mxu0 0.0
    %1460 = vmatpush1.msra.mxu0 0.0
    %1461 = vmatprep.subr.mxu0 0.0
    %1462 = vmatpush1.msra.mxu0 0.0
    %1463 = vmatprep.subr.mxu0 0.0
    %1464 = vmatpush1.msra.mxu0 0.0
    %1465 = vmatprep.subr.mxu0 0.0
    %1466 = vmatpush1.msra.mxu0 0.0
    %1467 = vmatprep.subr.mxu0 0.0
    %1468 = vmatpush1.msra.mxu0 0.0
    %1469 = vmatprep.subr.mxu0 0.0
    %1470 = vmatpush1.msra.mxu0 0.0
    %1471 = vmatprep.subr.mxu0 0.0
    %1472 = vmatpush1.msra.mxu0 0.0
    %1473 = vmatprep.subr.mxu0 0.0
    %1474 = vmatpush1.msra.mxu0 0.0
    %1475 = vmatprep.subr.mxu0 0.0
    %1476 = vmatpush1.msra.mxu0 0.0
    %1477 = vmatprep.subr.mxu0 0.0
    %1478 = vmatpush1.msra.mxu0 0.0
    %1479 = vmatprep.subr.mxu0 0.0
    %1480 = vmatpush1.msra.mxu0 0.0
    %1481 = vmatprep.subr.mxu0 0.0
    %1482 = vmatpush1.msra.mxu0 0.0
    %1483 = vmatprep.subr.mxu0 0.0
    %1484 = vmatpush1.msra.mxu0 0.0
    %1485 = vmatprep.subr.mxu0 0.0
    %1486 = vmatpush1.msra.mxu0 0.0
    %1487 = vmatprep.subr.mxu0 0.0
    %1488 = vmatpush1.msra.mxu0 0.0
    %1489 = vmatprep.subr.mxu0 0.0
    %1490 = vmatpush1.msra.mxu0 0.0
    %1491 = vmatprep.subr.mxu0 0.0
    %1492 = vmatpush1.msra.mxu0 0.0
    %1493 = vmatprep.subr.mxu0 0.0
    %1494 = vmatpush1.msra.mxu0 0.0
    %1495 = vmatprep.subr.mxu0 0.0
    %1496 = vmatpush1.msra.mxu0 0.0
    %1497 = vmatprep.mubr.f32.mxu0 0.0
    %1498 = vmatmul.mubr.f32.gmra.mrb[0].mxu0 %v1431
    %v1499 = vpop.f32.mrb[0].mxu0
    %v1500 = vadd.f32 %v724, %v1499
    %v1501 = vpop.f32.mrb[0].mxu0
    %1502 = vdwg.mxu0
    %v1503 = vmul.f32 %v1354, %v1427
    %v1504 = vsel %vm873, %v1503, 0.0
    %1505 = vadd.xlane.f32.xlu0 %v1504
    %v1506 = vpop.xlane.xlu0 %1505
    %v1507 = vmul.f32 %v1506, 0.35355338
    %v1508 = vtanh.pop %v1507
    %v1509 = vmul.f32 %v1508, 10.0
    %v1510 = vmul.f32 %v1354, %v1500
    %v1511 = vsel %vm873, %v1510, 0.0
    %1512 = vadd.xlane.f32.xlu0 %v1511
    %v1513 = vpop.xlane.xlu0 %1512
    %v1514 = vmul.f32 %v1513, 0.35355338
    %v1515 = vtanh.pop %v1514
    %v1516 = vmul.f32 %v1515, 10.0
    %vm1517 = vcmp.gt.f32.partialorder %v1516, %v1509
    %v1518 = vmax.f32 %v1509, %v1516
    %v1519 = vsub.f32 %v1509, %v1518
    %v1520 = vmul.f32 %v1519, 1.442695
    %v1521 = vpow.pop %v1520
    %v1522 = vsub.f32 %v1516, %v1518
    %v1523 = vmul.f32 %v1522, 1.442695
    %v1524 = vpow.pop %v1523
    %v1525 = vsel %vm1517, %v1524, %v1521
    %v1526 = vadd.f32 %v1521, %v1524
    %v1527 = vrcp.pop %v1526
    %v1528 = vmul.f32 %v1525, %v1527
    %v1529 = vsel %vm1517, 1, 0
    %v1530 = vsel %vm1517, %v1270, %v1266
    %v1531 = vsel %vm1517, 0.0, %v1266
    %v1532 = vadd.f32 %v1223, %v1531
    %v1533 = vsel %vm1517, %v1270, 0.0
    %v1534 = vadd.f32 %v1225, %v1533
    %v1535 = vsub.f32 %v1226, %v1530
    %vm1536 = vcmp.eq.s32.totalorder %v509, 2
    %v1537 = vsel %vm1536, %v1262, %v1228
    %v1538 = vsel %vm1536, %v1528, %v1229
    %v1539 = vsel %vm1536, %v1253, %v1230
    %v1540 = vsel %vm1536, %v1529, %v1231
    %vm1541 = vcmp.gt.f32.partialorder %v1273, 0.5
    %v1542 = vsel %vm1541, -1e+30, %v922
    %v1543 = vsel %vm525, %v1542, -inf
    %1544 = vmax.xlane.f32.xlu0 %v1543
    %v1545 = vpop.xlane.xlu0 %1544
    %vm1546 = vcmp.ge.f32.partialorder %v1542, %v1545
    %v1547 = vsel %vm1546, %v509, 8
    %v1548 = vsel %vm525, %v1547, 2147483647
    %v1549 = vand.u32 %v1548, 65535
    %v1550 = vshra.s32 %v1548, 16
    %v1551 = vcvt.s32.f32 %v1549
    %v1552 = vcvt.s32.f32 %v1550
    %1553 = vmin.xlane.f32.xlu0 %v1552
    %v1554 = vpop.xlane.xlu0 %1553
    %vm1555 = vcmp.eq.f32.partialorder %v1552, %v1554
    %v1556 = vsel %vm1555, %v1551, inf
    %1557 = vmin.xlane.f32.xlu0 %v1556
    %v1558 = vpop.xlane.xlu0 %1557
    %v1559 = vcvt.f32.s32 %v1558
    %v1560 = vcvt.f32.s32 %v1554
    %v1561 = vshll.u32 %v1560, 16
    %v1562 = vadd.s32 %v1561, %v1559
    %vm1563 = vcmp.eq.s32.totalorder %v509, %v1562
    %v1564 = vsub.f32 %v1542, %v1545
    %v1565 = vmul.f32 %v1564, 1.442695
    %v1566 = vpow.pop %v1565
    %v1567 = vsel %vm525, %v1566, 0.0
    %1568 = vadd.xlane.f32.xlu0 %v1567
    %v1569 = vpop.xlane.xlu0 %1568
    %v1570 = vrcp.pop %v1569
    %v1571 = vmul.f32 1.0, %v1570
    %v1572 = vsel %vm1563, %v494, 0.0
    %v1573 = vsel %vm525, %v1572, 0.0
    %1574 = vadd.xlane.f32.xlu0 %v1573
    %v1575 = vpop.xlane.xlu0 %1574
    %v1576 = vsel %vm1563, %v495, 0.0
    %v1577 = vsel %vm525, %v1576, 0.0
    %1578 = vadd.xlane.f32.xlu0 %v1577
    %v1579 = vpop.xlane.xlu0 %1578
    %v1580 = vsel %vm1563, 1, 0
    %v1581 = vcvt.s32.f32 %v1580
    %v1582 = vmax.f32 %v1273, %v1581
    %v1583 = vmul.f32 %v1532, %v621
    %v1584 = vmul.f32 %v1575, %v626
    %v1585 = vadd.f32 %v1583, %v1584
    %v1586 = vadd.f32 %v1585, %v633
    %v1587 = vmul.f32 %v1534, %v621
    %v1588 = vmul.f32 %v1579, %v626
    %v1589 = vadd.f32 %v1587, %v1588
    %v1590 = vadd.f32 %v1589, %v633
    %v1591 = vadd.f32 %v1586, %v1590
    %v1592 = vmul.f32 %v1591, 0.5
    %v1594 = vsel %vm250, %v1592, 0
    %1596 = vmatprep.subr.mxu0 0.0
    %1597 = vmatpush1.msra.mxu0 %v498
    %1598 = vmatprep.subr.mxu0 0.0
    %1599 = vmatpush1.msra.mxu0 %v499
    %1600 = vmatprep.subr.mxu0 0.0
    %1601 = vmatpush1.msra.mxu0 %v500
    %1602 = vmatprep.subr.mxu0 0.0
    %1603 = vmatpush1.msra.mxu0 %v501
    %1604 = vmatprep.subr.mxu0 0.0
    %1605 = vmatpush1.msra.mxu0 0.0
    %1606 = vmatprep.subr.mxu0 0.0
    %1607 = vmatpush1.msra.mxu0 0.0
    %1608 = vmatprep.subr.mxu0 0.0
    %1609 = vmatpush1.msra.mxu0 0.0
    %1610 = vmatprep.subr.mxu0 0.0
    %1611 = vmatpush1.msra.mxu0 0.0
    %1612 = vmatprep.subr.mxu0 0.0
    %1613 = vmatpush1.msra.mxu0 0.0
    %1614 = vmatprep.subr.mxu0 0.0
    %1615 = vmatpush1.msra.mxu0 0.0
    %1616 = vmatprep.subr.mxu0 0.0
    %1617 = vmatpush1.msra.mxu0 0.0
    %1618 = vmatprep.subr.mxu0 0.0
    %1619 = vmatpush1.msra.mxu0 0.0
    %1620 = vmatprep.subr.mxu0 0.0
    %1621 = vmatpush1.msra.mxu0 0.0
    %1622 = vmatprep.subr.mxu0 0.0
    %1623 = vmatpush1.msra.mxu0 0.0
    %1624 = vmatprep.subr.mxu0 0.0
    %1625 = vmatpush1.msra.mxu0 0.0
    %1626 = vmatprep.subr.mxu0 0.0
    %1627 = vmatpush1.msra.mxu0 0.0
    %1628 = vmatprep.subr.mxu0 0.0
    %1629 = vmatpush1.msra.mxu0 0.0
    %1630 = vmatprep.subr.mxu0 0.0
    %1631 = vmatpush1.msra.mxu0 0.0
    %1632 = vmatprep.subr.mxu0 0.0
    %1633 = vmatpush1.msra.mxu0 0.0
    %1634 = vmatprep.subr.mxu0 0.0
    %1635 = vmatpush1.msra.mxu0 0.0
    %1636 = vmatprep.subr.mxu0 0.0
    %1637 = vmatpush1.msra.mxu0 0.0
    %1638 = vmatprep.subr.mxu0 0.0
    %1639 = vmatpush1.msra.mxu0 0.0
    %1640 = vmatprep.subr.mxu0 0.0
    %1641 = vmatpush1.msra.mxu0 0.0
    %1642 = vmatprep.subr.mxu0 0.0
    %1643 = vmatpush1.msra.mxu0 0.0
    %1644 = vmatprep.subr.mxu0 0.0
    %1645 = vmatpush1.msra.mxu0 0.0
    %1646 = vmatprep.subr.mxu0 0.0
    %1647 = vmatpush1.msra.mxu0 0.0
    %1648 = vmatprep.subr.mxu0 0.0
    %1649 = vmatpush1.msra.mxu0 0.0
    %1650 = vmatprep.subr.mxu0 0.0
    %1651 = vmatpush1.msra.mxu0 0.0
    %1652 = vmatprep.subr.mxu0 0.0
    %1653 = vmatpush1.msra.mxu0 0.0
    %1654 = vmatprep.subr.mxu0 0.0
    %1655 = vmatpush1.msra.mxu0 0.0
    %1656 = vmatprep.subr.mxu0 0.0
    %1657 = vmatpush1.msra.mxu0 0.0
    %1658 = vmatprep.subr.mxu0 0.0
    %1659 = vmatpush1.msra.mxu0 0.0
    %1660 = vmatprep.mubr.f32.mxu0 0.0
    %1661 = vmatmul.mubr.f32.gmra.mrb[0].mxu0 %v1594
    %v1662 = vpop.f32.mrb[0].mxu0
    %v1663 = vadd.f32 %v645, %v1662
    %v1664 = vpop.f32.mrb[0].mxu0
    %1665 = vdwg.mxu0
    %v1667 = vsel %vm250, %v1586, 0
    %1669 = vmatprep.subr.mxu0 0.0
    %1670 = vmatpush1.msra.mxu0 %v503
    %1671 = vmatprep.subr.mxu0 0.0
    %1672 = vmatpush1.msra.mxu0 %v504
    %1673 = vmatprep.subr.mxu0 0.0
    %1674 = vmatpush1.msra.mxu0 %v505
    %1675 = vmatprep.subr.mxu0 0.0
    %1676 = vmatpush1.msra.mxu0 %v506
    %1677 = vmatprep.subr.mxu0 0.0
    %1678 = vmatpush1.msra.mxu0 0.0
    %1679 = vmatprep.subr.mxu0 0.0
    %1680 = vmatpush1.msra.mxu0 0.0
    %1681 = vmatprep.subr.mxu0 0.0
    %1682 = vmatpush1.msra.mxu0 0.0
    %1683 = vmatprep.subr.mxu0 0.0
    %1684 = vmatpush1.msra.mxu0 0.0
    %1685 = vmatprep.subr.mxu0 0.0
    %1686 = vmatpush1.msra.mxu0 0.0
    %1687 = vmatprep.subr.mxu0 0.0
    %1688 = vmatpush1.msra.mxu0 0.0
    %1689 = vmatprep.subr.mxu0 0.0
    %1690 = vmatpush1.msra.mxu0 0.0
    %1691 = vmatprep.subr.mxu0 0.0
    %1692 = vmatpush1.msra.mxu0 0.0
    %1693 = vmatprep.subr.mxu0 0.0
    %1694 = vmatpush1.msra.mxu0 0.0
    %1695 = vmatprep.subr.mxu0 0.0
    %1696 = vmatpush1.msra.mxu0 0.0
    %1697 = vmatprep.subr.mxu0 0.0
    %1698 = vmatpush1.msra.mxu0 0.0
    %1699 = vmatprep.subr.mxu0 0.0
    %1700 = vmatpush1.msra.mxu0 0.0
    %1701 = vmatprep.subr.mxu0 0.0
    %1702 = vmatpush1.msra.mxu0 0.0
    %1703 = vmatprep.subr.mxu0 0.0
    %1704 = vmatpush1.msra.mxu0 0.0
    %1705 = vmatprep.subr.mxu0 0.0
    %1706 = vmatpush1.msra.mxu0 0.0
    %1707 = vmatprep.subr.mxu0 0.0
    %1708 = vmatpush1.msra.mxu0 0.0
    %1709 = vmatprep.subr.mxu0 0.0
    %1710 = vmatpush1.msra.mxu0 0.0
    %1711 = vmatprep.subr.mxu0 0.0
    %1712 = vmatpush1.msra.mxu0 0.0
    %1713 = vmatprep.subr.mxu0 0.0
    %1714 = vmatpush1.msra.mxu0 0.0
    %1715 = vmatprep.subr.mxu0 0.0
    %1716 = vmatpush1.msra.mxu0 0.0
    %1717 = vmatprep.subr.mxu0 0.0
    %1718 = vmatpush1.msra.mxu0 0.0
    %1719 = vmatprep.subr.mxu0 0.0
    %1720 = vmatpush1.msra.mxu0 0.0
    %1721 = vmatprep.subr.mxu0 0.0
    %1722 = vmatpush1.msra.mxu0 0.0
    %1723 = vmatprep.subr.mxu0 0.0
    %1724 = vmatpush1.msra.mxu0 0.0
    %1725 = vmatprep.subr.mxu0 0.0
    %1726 = vmatpush1.msra.mxu0 0.0
    %1727 = vmatprep.subr.mxu0 0.0
    %1728 = vmatpush1.msra.mxu0 0.0
    %1729 = vmatprep.subr.mxu0 0.0
    %1730 = vmatpush1.msra.mxu0 0.0
    %1731 = vmatprep.subr.mxu0 0.0
    %1732 = vmatpush1.msra.mxu0 0.0
    %1733 = vmatprep.mubr.f32.mxu0 0.0
    %1734 = vmatmul.mubr.f32.gmra.mrb[0].mxu0 %v1667
    %v1735 = vpop.f32.mrb[0].mxu0
    %v1736 = vadd.f32 %v724, %v1735
    %v1737 = vpop.f32.mrb[0].mxu0
    %1738 = vdwg.mxu0
    %v1740 = vsel %vm250, %v1590, 0
    %1742 = vmatprep.subr.mxu0 0.0
    %1743 = vmatpush1.msra.mxu0 %v503
    %1744 = vmatprep.subr.mxu0 0.0
    %1745 = vmatpush1.msra.mxu0 %v504
    %1746 = vmatprep.subr.mxu0 0.0
    %1747 = vmatpush1.msra.mxu0 %v505
    %1748 = vmatprep.subr.mxu0 0.0
    %1749 = vmatpush1.msra.mxu0 %v506
    %1750 = vmatprep.subr.mxu0 0.0
    %1751 = vmatpush1.msra.mxu0 0.0
    %1752 = vmatprep.subr.mxu0 0.0
    %1753 = vmatpush1.msra.mxu0 0.0
    %1754 = vmatprep.subr.mxu0 0.0
    %1755 = vmatpush1.msra.mxu0 0.0
    %1756 = vmatprep.subr.mxu0 0.0
    %1757 = vmatpush1.msra.mxu0 0.0
    %1758 = vmatprep.subr.mxu0 0.0
    %1759 = vmatpush1.msra.mxu0 0.0
    %1760 = vmatprep.subr.mxu0 0.0
    %1761 = vmatpush1.msra.mxu0 0.0
    %1762 = vmatprep.subr.mxu0 0.0
    %1763 = vmatpush1.msra.mxu0 0.0
    %1764 = vmatprep.subr.mxu0 0.0
    %1765 = vmatpush1.msra.mxu0 0.0
    %1766 = vmatprep.subr.mxu0 0.0
    %1767 = vmatpush1.msra.mxu0 0.0
    %1768 = vmatprep.subr.mxu0 0.0
    %1769 = vmatpush1.msra.mxu0 0.0
    %1770 = vmatprep.subr.mxu0 0.0
    %1771 = vmatpush1.msra.mxu0 0.0
    %1772 = vmatprep.subr.mxu0 0.0
    %1773 = vmatpush1.msra.mxu0 0.0
    %1774 = vmatprep.subr.mxu0 0.0
    %1775 = vmatpush1.msra.mxu0 0.0
    %1776 = vmatprep.subr.mxu0 0.0
    %1777 = vmatpush1.msra.mxu0 0.0
    %1778 = vmatprep.subr.mxu0 0.0
    %1779 = vmatpush1.msra.mxu0 0.0
    %1780 = vmatprep.subr.mxu0 0.0
    %1781 = vmatpush1.msra.mxu0 0.0
    %1782 = vmatprep.subr.mxu0 0.0
    %1783 = vmatpush1.msra.mxu0 0.0
    %1784 = vmatprep.subr.mxu0 0.0
    %1785 = vmatpush1.msra.mxu0 0.0
    %1786 = vmatprep.subr.mxu0 0.0
    %1787 = vmatpush1.msra.mxu0 0.0
    %1788 = vmatprep.subr.mxu0 0.0
    %1789 = vmatpush1.msra.mxu0 0.0
    %1790 = vmatprep.subr.mxu0 0.0
    %1791 = vmatpush1.msra.mxu0 0.0
    %1792 = vmatprep.subr.mxu0 0.0
    %1793 = vmatpush1.msra.mxu0 0.0
    %1794 = vmatprep.subr.mxu0 0.0
    %1795 = vmatpush1.msra.mxu0 0.0
    %1796 = vmatprep.subr.mxu0 0.0
    %1797 = vmatpush1.msra.mxu0 0.0
    %1798 = vmatprep.subr.mxu0 0.0
    %1799 = vmatpush1.msra.mxu0 0.0
    %1800 = vmatprep.subr.mxu0 0.0
    %1801 = vmatpush1.msra.mxu0 0.0
    %1802 = vmatprep.subr.mxu0 0.0
    %1803 = vmatpush1.msra.mxu0 0.0
    %1804 = vmatprep.subr.mxu0 0.0
    %1805 = vmatpush1.msra.mxu0 0.0
    %1806 = vmatprep.mubr.f32.mxu0 0.0
    %1807 = vmatmul.mubr.f32.gmra.mrb[0].mxu0 %v1740
    %v1808 = vpop.f32.mrb[0].mxu0
    %v1809 = vadd.f32 %v724, %v1808
    %v1810 = vpop.f32.mrb[0].mxu0
    %1811 = vdwg.mxu0
    %v1812 = vmul.f32 %v1663, %v1736
    %v1813 = vsel %vm873, %v1812, 0.0
    %1814 = vadd.xlane.f32.xlu0 %v1813
    %v1815 = vpop.xlane.xlu0 %1814
    %v1816 = vmul.f32 %v1815, 0.35355338
    %v1817 = vtanh.pop %v1816
    %v1818 = vmul.f32 %v1817, 10.0
    %v1819 = vmul.f32 %v1663, %v1809
    %v1820 = vsel %vm873, %v1819, 0.0
    %1821 = vadd.xlane.f32.xlu0 %v1820
    %v1822 = vpop.xlane.xlu0 %1821
    %v1823 = vmul.f32 %v1822, 0.35355338
    %v1824 = vtanh.pop %v1823
    %v1825 = vmul.f32 %v1824, 10.0
    %vm1826 = vcmp.gt.f32.partialorder %v1825, %v1818
    %v1827 = vmax.f32 %v1818, %v1825
    %v1828 = vsub.f32 %v1818, %v1827
    %v1829 = vmul.f32 %v1828, 1.442695
    %v1830 = vpow.pop %v1829
    %v1831 = vsub.f32 %v1825, %v1827
    %v1832 = vmul.f32 %v1831, 1.442695
    %v1833 = vpow.pop %v1832
    %v1834 = vsel %vm1826, %v1833, %v1830
    %v1835 = vadd.f32 %v1830, %v1833
    %v1836 = vrcp.pop %v1835
    %v1837 = vmul.f32 %v1834, %v1836
    %v1838 = vsel %vm1826, 1, 0
    %v1839 = vsel %vm1826, %v1579, %v1575
    %v1840 = vsel %vm1826, 0.0, %v1575
    %v1841 = vadd.f32 %v1532, %v1840
    %v1842 = vsel %vm1826, %v1579, 0.0
    %v1843 = vadd.f32 %v1534, %v1842
    %v1844 = vsub.f32 %v1535, %v1839
    %vm1845 = vcmp.eq.s32.totalorder %v509, 3
    %v1846 = vsel %vm1845, %v1571, %v1537
    %v1847 = vsel %vm1845, %v1837, %v1538
    %v1848 = vsel %vm1845, %v1562, %v1539
    %v1849 = vsel %vm1845, %v1838, %v1540
    %vm1850 = vcmp.gt.f32.partialorder %v1582, 0.5
    %v1851 = vsel %vm1850, -1e+30, %v922
    %v1852 = vsel %vm525, %v1851, -inf
    %1853 = vmax.xlane.f32.xlu0 %v1852
    %v1854 = vpop.xlane.xlu0 %1853
    %vm1855 = vcmp.ge.f32.partialorder %v1851, %v1854
    %v1856 = vsel %vm1855, %v509, 8
    %v1857 = vsel %vm525, %v1856, 2147483647
    %v1858 = vand.u32 %v1857, 65535
    %v1859 = vshra.s32 %v1857, 16
    %v1860 = vcvt.s32.f32 %v1858
    %v1861 = vcvt.s32.f32 %v1859
    %1862 = vmin.xlane.f32.xlu0 %v1861
    %v1863 = vpop.xlane.xlu0 %1862
    %vm1864 = vcmp.eq.f32.partialorder %v1861, %v1863
    %v1865 = vsel %vm1864, %v1860, inf
    %1866 = vmin.xlane.f32.xlu0 %v1865
    %v1867 = vpop.xlane.xlu0 %1866
    %v1868 = vcvt.f32.s32 %v1867
    %v1869 = vcvt.f32.s32 %v1863
    %v1870 = vshll.u32 %v1869, 16
    %v1871 = vadd.s32 %v1870, %v1868
    %vm1872 = vcmp.eq.s32.totalorder %v509, %v1871
    %v1873 = vsub.f32 %v1851, %v1854
    %v1874 = vmul.f32 %v1873, 1.442695
    %v1875 = vpow.pop %v1874
    %v1876 = vsel %vm525, %v1875, 0.0
    %1877 = vadd.xlane.f32.xlu0 %v1876
    %v1878 = vpop.xlane.xlu0 %1877
    %v1879 = vrcp.pop %v1878
    %v1880 = vmul.f32 1.0, %v1879
    %v1881 = vsel %vm1872, %v494, 0.0
    %v1882 = vsel %vm525, %v1881, 0.0
    %1883 = vadd.xlane.f32.xlu0 %v1882
    %v1884 = vpop.xlane.xlu0 %1883
    %v1885 = vsel %vm1872, %v495, 0.0
    %v1886 = vsel %vm525, %v1885, 0.0
    %1887 = vadd.xlane.f32.xlu0 %v1886
    %v1888 = vpop.xlane.xlu0 %1887
    %v1889 = vsel %vm1872, 1, 0
    %v1890 = vcvt.s32.f32 %v1889
    %v1891 = vmax.f32 %v1582, %v1890
    %v1892 = vmul.f32 %v1841, %v621
    %v1893 = vmul.f32 %v1884, %v626
    %v1894 = vadd.f32 %v1892, %v1893
    %v1895 = vadd.f32 %v1894, %v633
    %v1896 = vmul.f32 %v1843, %v621
    %v1897 = vmul.f32 %v1888, %v626
    %v1898 = vadd.f32 %v1896, %v1897
    %v1899 = vadd.f32 %v1898, %v633
    %v1900 = vadd.f32 %v1895, %v1899
    %v1901 = vmul.f32 %v1900, 0.5
    %v1903 = vsel %vm250, %v1901, 0
    %1905 = vmatprep.subr.mxu0 0.0
    %1906 = vmatpush1.msra.mxu0 %v498
    %1907 = vmatprep.subr.mxu0 0.0
    %1908 = vmatpush1.msra.mxu0 %v499
    %1909 = vmatprep.subr.mxu0 0.0
    %1910 = vmatpush1.msra.mxu0 %v500
    %1911 = vmatprep.subr.mxu0 0.0
    %1912 = vmatpush1.msra.mxu0 %v501
    %1913 = vmatprep.subr.mxu0 0.0
    %1914 = vmatpush1.msra.mxu0 0.0
    %1915 = vmatprep.subr.mxu0 0.0
    %1916 = vmatpush1.msra.mxu0 0.0
    %1917 = vmatprep.subr.mxu0 0.0
    %1918 = vmatpush1.msra.mxu0 0.0
    %1919 = vmatprep.subr.mxu0 0.0
    %1920 = vmatpush1.msra.mxu0 0.0
    %1921 = vmatprep.subr.mxu0 0.0
    %1922 = vmatpush1.msra.mxu0 0.0
    %1923 = vmatprep.subr.mxu0 0.0
    %1924 = vmatpush1.msra.mxu0 0.0
    %1925 = vmatprep.subr.mxu0 0.0
    %1926 = vmatpush1.msra.mxu0 0.0
    %1927 = vmatprep.subr.mxu0 0.0
    %1928 = vmatpush1.msra.mxu0 0.0
    %1929 = vmatprep.subr.mxu0 0.0
    %1930 = vmatpush1.msra.mxu0 0.0
    %1931 = vmatprep.subr.mxu0 0.0
    %1932 = vmatpush1.msra.mxu0 0.0
    %1933 = vmatprep.subr.mxu0 0.0
    %1934 = vmatpush1.msra.mxu0 0.0
    %1935 = vmatprep.subr.mxu0 0.0
    %1936 = vmatpush1.msra.mxu0 0.0
    %1937 = vmatprep.subr.mxu0 0.0
    %1938 = vmatpush1.msra.mxu0 0.0
    %1939 = vmatprep.subr.mxu0 0.0
    %1940 = vmatpush1.msra.mxu0 0.0
    %1941 = vmatprep.subr.mxu0 0.0
    %1942 = vmatpush1.msra.mxu0 0.0
    %1943 = vmatprep.subr.mxu0 0.0
    %1944 = vmatpush1.msra.mxu0 0.0
    %1945 = vmatprep.subr.mxu0 0.0
    %1946 = vmatpush1.msra.mxu0 0.0
    %1947 = vmatprep.subr.mxu0 0.0
    %1948 = vmatpush1.msra.mxu0 0.0
    %1949 = vmatprep.subr.mxu0 0.0
    %1950 = vmatpush1.msra.mxu0 0.0
    %1951 = vmatprep.subr.mxu0 0.0
    %1952 = vmatpush1.msra.mxu0 0.0
    %1953 = vmatprep.subr.mxu0 0.0
    %1954 = vmatpush1.msra.mxu0 0.0
    %1955 = vmatprep.subr.mxu0 0.0
    %1956 = vmatpush1.msra.mxu0 0.0
    %1957 = vmatprep.subr.mxu0 0.0
    %1958 = vmatpush1.msra.mxu0 0.0
    %1959 = vmatprep.subr.mxu0 0.0
    %1960 = vmatpush1.msra.mxu0 0.0
    %1961 = vmatprep.subr.mxu0 0.0
    %1962 = vmatpush1.msra.mxu0 0.0
    %1963 = vmatprep.subr.mxu0 0.0
    %1964 = vmatpush1.msra.mxu0 0.0
    %1965 = vmatprep.subr.mxu0 0.0
    %1966 = vmatpush1.msra.mxu0 0.0
    %1967 = vmatprep.subr.mxu0 0.0
    %1968 = vmatpush1.msra.mxu0 0.0
    %1969 = vmatprep.mubr.f32.mxu0 0.0
    %1970 = vmatmul.mubr.f32.gmra.mrb[0].mxu0 %v1903
    %v1971 = vpop.f32.mrb[0].mxu0
    %v1972 = vadd.f32 %v645, %v1971
    %v1973 = vpop.f32.mrb[0].mxu0
    %1974 = vdwg.mxu0
    %v1976 = vsel %vm250, %v1895, 0
    %1978 = vmatprep.subr.mxu0 0.0
    %1979 = vmatpush1.msra.mxu0 %v503
    %1980 = vmatprep.subr.mxu0 0.0
    %1981 = vmatpush1.msra.mxu0 %v504
    %1982 = vmatprep.subr.mxu0 0.0
    %1983 = vmatpush1.msra.mxu0 %v505
    %1984 = vmatprep.subr.mxu0 0.0
    %1985 = vmatpush1.msra.mxu0 %v506
    %1986 = vmatprep.subr.mxu0 0.0
    %1987 = vmatpush1.msra.mxu0 0.0
    %1988 = vmatprep.subr.mxu0 0.0
    %1989 = vmatpush1.msra.mxu0 0.0
    %1990 = vmatprep.subr.mxu0 0.0
    %1991 = vmatpush1.msra.mxu0 0.0
    %1992 = vmatprep.subr.mxu0 0.0
    %1993 = vmatpush1.msra.mxu0 0.0
    %1994 = vmatprep.subr.mxu0 0.0
    %1995 = vmatpush1.msra.mxu0 0.0
    %1996 = vmatprep.subr.mxu0 0.0
    %1997 = vmatpush1.msra.mxu0 0.0
    %1998 = vmatprep.subr.mxu0 0.0
    %1999 = vmatpush1.msra.mxu0 0.0
    %2000 = vmatprep.subr.mxu0 0.0
    %2001 = vmatpush1.msra.mxu0 0.0
    %2002 = vmatprep.subr.mxu0 0.0
    %2003 = vmatpush1.msra.mxu0 0.0
    %2004 = vmatprep.subr.mxu0 0.0
    %2005 = vmatpush1.msra.mxu0 0.0
    %2006 = vmatprep.subr.mxu0 0.0
    %2007 = vmatpush1.msra.mxu0 0.0
    %2008 = vmatprep.subr.mxu0 0.0
    %2009 = vmatpush1.msra.mxu0 0.0
    %2010 = vmatprep.subr.mxu0 0.0
    %2011 = vmatpush1.msra.mxu0 0.0
    %2012 = vmatprep.subr.mxu0 0.0
    %2013 = vmatpush1.msra.mxu0 0.0
    %2014 = vmatprep.subr.mxu0 0.0
    %2015 = vmatpush1.msra.mxu0 0.0
    %2016 = vmatprep.subr.mxu0 0.0
    %2017 = vmatpush1.msra.mxu0 0.0
    %2018 = vmatprep.subr.mxu0 0.0
    %2019 = vmatpush1.msra.mxu0 0.0
    %2020 = vmatprep.subr.mxu0 0.0
    %2021 = vmatpush1.msra.mxu0 0.0
    %2022 = vmatprep.subr.mxu0 0.0
    %2023 = vmatpush1.msra.mxu0 0.0
    %2024 = vmatprep.subr.mxu0 0.0
    %2025 = vmatpush1.msra.mxu0 0.0
    %2026 = vmatprep.subr.mxu0 0.0
    %2027 = vmatpush1.msra.mxu0 0.0
    %2028 = vmatprep.subr.mxu0 0.0
    %2029 = vmatpush1.msra.mxu0 0.0
    %2030 = vmatprep.subr.mxu0 0.0
    %2031 = vmatpush1.msra.mxu0 0.0
    %2032 = vmatprep.subr.mxu0 0.0
    %2033 = vmatpush1.msra.mxu0 0.0
    %2034 = vmatprep.subr.mxu0 0.0
    %2035 = vmatpush1.msra.mxu0 0.0
    %2036 = vmatprep.subr.mxu0 0.0
    %2037 = vmatpush1.msra.mxu0 0.0
    %2038 = vmatprep.subr.mxu0 0.0
    %2039 = vmatpush1.msra.mxu0 0.0
    %2040 = vmatprep.subr.mxu0 0.0
    %2041 = vmatpush1.msra.mxu0 0.0
    %2042 = vmatprep.mubr.f32.mxu0 0.0
    %2043 = vmatmul.mubr.f32.gmra.mrb[0].mxu0 %v1976
    %v2044 = vpop.f32.mrb[0].mxu0
    %v2045 = vadd.f32 %v724, %v2044
    %v2046 = vpop.f32.mrb[0].mxu0
    %2047 = vdwg.mxu0
    %v2049 = vsel %vm250, %v1899, 0
    %2051 = vmatprep.subr.mxu0 0.0
    %2052 = vmatpush1.msra.mxu0 %v503
    %2053 = vmatprep.subr.mxu0 0.0
    %2054 = vmatpush1.msra.mxu0 %v504
    %2055 = vmatprep.subr.mxu0 0.0
    %2056 = vmatpush1.msra.mxu0 %v505
    %2057 = vmatprep.subr.mxu0 0.0
    %2058 = vmatpush1.msra.mxu0 %v506
    %2059 = vmatprep.subr.mxu0 0.0
    %2060 = vmatpush1.msra.mxu0 0.0
    %2061 = vmatprep.subr.mxu0 0.0
    %2062 = vmatpush1.msra.mxu0 0.0
    %2063 = vmatprep.subr.mxu0 0.0
    %2064 = vmatpush1.msra.mxu0 0.0
    %2065 = vmatprep.subr.mxu0 0.0
    %2066 = vmatpush1.msra.mxu0 0.0
    %2067 = vmatprep.subr.mxu0 0.0
    %2068 = vmatpush1.msra.mxu0 0.0
    %2069 = vmatprep.subr.mxu0 0.0
    %2070 = vmatpush1.msra.mxu0 0.0
    %2071 = vmatprep.subr.mxu0 0.0
    %2072 = vmatpush1.msra.mxu0 0.0
    %2073 = vmatprep.subr.mxu0 0.0
    %2074 = vmatpush1.msra.mxu0 0.0
    %2075 = vmatprep.subr.mxu0 0.0
    %2076 = vmatpush1.msra.mxu0 0.0
    %2077 = vmatprep.subr.mxu0 0.0
    %2078 = vmatpush1.msra.mxu0 0.0
    %2079 = vmatprep.subr.mxu0 0.0
    %2080 = vmatpush1.msra.mxu0 0.0
    %2081 = vmatprep.subr.mxu0 0.0
    %2082 = vmatpush1.msra.mxu0 0.0
    %2083 = vmatprep.subr.mxu0 0.0
    %2084 = vmatpush1.msra.mxu0 0.0
    %2085 = vmatprep.subr.mxu0 0.0
    %2086 = vmatpush1.msra.mxu0 0.0
    %2087 = vmatprep.subr.mxu0 0.0
    %2088 = vmatpush1.msra.mxu0 0.0
    %2089 = vmatprep.subr.mxu0 0.0
    %2090 = vmatpush1.msra.mxu0 0.0
    %2091 = vmatprep.subr.mxu0 0.0
    %2092 = vmatpush1.msra.mxu0 0.0
    %2093 = vmatprep.subr.mxu0 0.0
    %2094 = vmatpush1.msra.mxu0 0.0
    %2095 = vmatprep.subr.mxu0 0.0
    %2096 = vmatpush1.msra.mxu0 0.0
    %2097 = vmatprep.subr.mxu0 0.0
    %2098 = vmatpush1.msra.mxu0 0.0
    %2099 = vmatprep.subr.mxu0 0.0
    %2100 = vmatpush1.msra.mxu0 0.0
    %2101 = vmatprep.subr.mxu0 0.0
    %2102 = vmatpush1.msra.mxu0 0.0
    %2103 = vmatprep.subr.mxu0 0.0
    %2104 = vmatpush1.msra.mxu0 0.0
    %2105 = vmatprep.subr.mxu0 0.0
    %2106 = vmatpush1.msra.mxu0 0.0
    %2107 = vmatprep.subr.mxu0 0.0
    %2108 = vmatpush1.msra.mxu0 0.0
    %2109 = vmatprep.subr.mxu0 0.0
    %2110 = vmatpush1.msra.mxu0 0.0
    %2111 = vmatprep.subr.mxu0 0.0
    %2112 = vmatpush1.msra.mxu0 0.0
    %2113 = vmatprep.subr.mxu0 0.0
    %2114 = vmatpush1.msra.mxu0 0.0
    %2115 = vmatprep.mubr.f32.mxu0 0.0
    %2116 = vmatmul.mubr.f32.gmra.mrb[0].mxu0 %v2049
    %v2117 = vpop.f32.mrb[0].mxu0
    %v2118 = vadd.f32 %v724, %v2117
    %v2119 = vpop.f32.mrb[0].mxu0
    %2120 = vdwg.mxu0
    %v2121 = vmul.f32 %v1972, %v2045
    %v2122 = vsel %vm873, %v2121, 0.0
    %2123 = vadd.xlane.f32.xlu0 %v2122
    %v2124 = vpop.xlane.xlu0 %2123
    %v2125 = vmul.f32 %v2124, 0.35355338
    %v2126 = vtanh.pop %v2125
    %v2127 = vmul.f32 %v2126, 10.0
    %v2128 = vmul.f32 %v1972, %v2118
    %v2129 = vsel %vm873, %v2128, 0.0
    %2130 = vadd.xlane.f32.xlu0 %v2129
    %v2131 = vpop.xlane.xlu0 %2130
    %v2132 = vmul.f32 %v2131, 0.35355338
    %v2133 = vtanh.pop %v2132
    %v2134 = vmul.f32 %v2133, 10.0
    %vm2135 = vcmp.gt.f32.partialorder %v2134, %v2127
    %v2136 = vmax.f32 %v2127, %v2134
    %v2137 = vsub.f32 %v2127, %v2136
    %v2138 = vmul.f32 %v2137, 1.442695
    %v2139 = vpow.pop %v2138
    %v2140 = vsub.f32 %v2134, %v2136
    %v2141 = vmul.f32 %v2140, 1.442695
    %v2142 = vpow.pop %v2141
    %v2143 = vsel %vm2135, %v2142, %v2139
    %v2144 = vadd.f32 %v2139, %v2142
    %v2145 = vrcp.pop %v2144
    %v2146 = vmul.f32 %v2143, %v2145
    %v2147 = vsel %vm2135, 1, 0
    %v2148 = vsel %vm2135, %v1888, %v1884
    %v2149 = vsel %vm2135, 0.0, %v1884
    %v2150 = vadd.f32 %v1841, %v2149
    %v2151 = vsel %vm2135, %v1888, 0.0
    %v2152 = vadd.f32 %v1843, %v2151
    %v2153 = vsub.f32 %v1844, %v2148
    %vm2154 = vcmp.eq.s32.totalorder %v509, 4
    %v2155 = vsel %vm2154, %v1880, %v1846
    %v2156 = vsel %vm2154, %v2146, %v1847
    %v2157 = vsel %vm2154, %v1871, %v1848
    %v2158 = vsel %vm2154, %v2147, %v1849
    %vm2159 = vcmp.gt.f32.partialorder %v1891, 0.5
    %v2160 = vsel %vm2159, -1e+30, %v922
    %v2161 = vsel %vm525, %v2160, -inf
    %2162 = vmax.xlane.f32.xlu0 %v2161
    %v2163 = vpop.xlane.xlu0 %2162
    %vm2164 = vcmp.ge.f32.partialorder %v2160, %v2163
    %v2165 = vsel %vm2164, %v509, 8
    %v2166 = vsel %vm525, %v2165, 2147483647
    %v2167 = vand.u32 %v2166, 65535
    %v2168 = vshra.s32 %v2166, 16
    %v2169 = vcvt.s32.f32 %v2167
    %v2170 = vcvt.s32.f32 %v2168
    %2171 = vmin.xlane.f32.xlu0 %v2170
    %v2172 = vpop.xlane.xlu0 %2171
    %vm2173 = vcmp.eq.f32.partialorder %v2170, %v2172
    %v2174 = vsel %vm2173, %v2169, inf
    %2175 = vmin.xlane.f32.xlu0 %v2174
    %v2176 = vpop.xlane.xlu0 %2175
    %v2177 = vcvt.f32.s32 %v2176
    %v2178 = vcvt.f32.s32 %v2172
    %v2179 = vshll.u32 %v2178, 16
    %v2180 = vadd.s32 %v2179, %v2177
    %vm2181 = vcmp.eq.s32.totalorder %v509, %v2180
    %v2182 = vsub.f32 %v2160, %v2163
    %v2183 = vmul.f32 %v2182, 1.442695
    %v2184 = vpow.pop %v2183
    %v2185 = vsel %vm525, %v2184, 0.0
    %2186 = vadd.xlane.f32.xlu0 %v2185
    %v2187 = vpop.xlane.xlu0 %2186
    %v2188 = vrcp.pop %v2187
    %v2189 = vmul.f32 1.0, %v2188
    %v2190 = vsel %vm2181, %v494, 0.0
    %v2191 = vsel %vm525, %v2190, 0.0
    %2192 = vadd.xlane.f32.xlu0 %v2191
    %v2193 = vpop.xlane.xlu0 %2192
    %v2194 = vsel %vm2181, %v495, 0.0
    %v2195 = vsel %vm525, %v2194, 0.0
    %2196 = vadd.xlane.f32.xlu0 %v2195
    %v2197 = vpop.xlane.xlu0 %2196
    %v2198 = vsel %vm2181, 1, 0
    %v2199 = vcvt.s32.f32 %v2198
    %v2200 = vmax.f32 %v1891, %v2199
    %v2201 = vmul.f32 %v2150, %v621
    %v2202 = vmul.f32 %v2193, %v626
    %v2203 = vadd.f32 %v2201, %v2202
    %v2204 = vadd.f32 %v2203, %v633
    %v2205 = vmul.f32 %v2152, %v621
    %v2206 = vmul.f32 %v2197, %v626
    %v2207 = vadd.f32 %v2205, %v2206
    %v2208 = vadd.f32 %v2207, %v633
    %v2209 = vadd.f32 %v2204, %v2208
    %v2210 = vmul.f32 %v2209, 0.5
    %v2212 = vsel %vm250, %v2210, 0
    %2214 = vmatprep.subr.mxu0 0.0
    %2215 = vmatpush1.msra.mxu0 %v498
    %2216 = vmatprep.subr.mxu0 0.0
    %2217 = vmatpush1.msra.mxu0 %v499
    %2218 = vmatprep.subr.mxu0 0.0
    %2219 = vmatpush1.msra.mxu0 %v500
    %2220 = vmatprep.subr.mxu0 0.0
    %2221 = vmatpush1.msra.mxu0 %v501
    %2222 = vmatprep.subr.mxu0 0.0
    %2223 = vmatpush1.msra.mxu0 0.0
    %2224 = vmatprep.subr.mxu0 0.0
    %2225 = vmatpush1.msra.mxu0 0.0
    %2226 = vmatprep.subr.mxu0 0.0
    %2227 = vmatpush1.msra.mxu0 0.0
    %2228 = vmatprep.subr.mxu0 0.0
    %2229 = vmatpush1.msra.mxu0 0.0
    %2230 = vmatprep.subr.mxu0 0.0
    %2231 = vmatpush1.msra.mxu0 0.0
    %2232 = vmatprep.subr.mxu0 0.0
    %2233 = vmatpush1.msra.mxu0 0.0
    %2234 = vmatprep.subr.mxu0 0.0
    %2235 = vmatpush1.msra.mxu0 0.0
    %2236 = vmatprep.subr.mxu0 0.0
    %2237 = vmatpush1.msra.mxu0 0.0
    %2238 = vmatprep.subr.mxu0 0.0
    %2239 = vmatpush1.msra.mxu0 0.0
    %2240 = vmatprep.subr.mxu0 0.0
    %2241 = vmatpush1.msra.mxu0 0.0
    %2242 = vmatprep.subr.mxu0 0.0
    %2243 = vmatpush1.msra.mxu0 0.0
    %2244 = vmatprep.subr.mxu0 0.0
    %2245 = vmatpush1.msra.mxu0 0.0
    %2246 = vmatprep.subr.mxu0 0.0
    %2247 = vmatpush1.msra.mxu0 0.0
    %2248 = vmatprep.subr.mxu0 0.0
    %2249 = vmatpush1.msra.mxu0 0.0
    %2250 = vmatprep.subr.mxu0 0.0
    %2251 = vmatpush1.msra.mxu0 0.0
    %2252 = vmatprep.subr.mxu0 0.0
    %2253 = vmatpush1.msra.mxu0 0.0
    %2254 = vmatprep.subr.mxu0 0.0
    %2255 = vmatpush1.msra.mxu0 0.0
    %2256 = vmatprep.subr.mxu0 0.0
    %2257 = vmatpush1.msra.mxu0 0.0
    %2258 = vmatprep.subr.mxu0 0.0
    %2259 = vmatpush1.msra.mxu0 0.0
    %2260 = vmatprep.subr.mxu0 0.0
    %2261 = vmatpush1.msra.mxu0 0.0
    %2262 = vmatprep.subr.mxu0 0.0
    %2263 = vmatpush1.msra.mxu0 0.0
    %2264 = vmatprep.subr.mxu0 0.0
    %2265 = vmatpush1.msra.mxu0 0.0
    %2266 = vmatprep.subr.mxu0 0.0
    %2267 = vmatpush1.msra.mxu0 0.0
    %2268 = vmatprep.subr.mxu0 0.0
    %2269 = vmatpush1.msra.mxu0 0.0
    %2270 = vmatprep.subr.mxu0 0.0
    %2271 = vmatpush1.msra.mxu0 0.0
    %2272 = vmatprep.subr.mxu0 0.0
    %2273 = vmatpush1.msra.mxu0 0.0
    %2274 = vmatprep.subr.mxu0 0.0
    %2275 = vmatpush1.msra.mxu0 0.0
    %2276 = vmatprep.subr.mxu0 0.0
    %2277 = vmatpush1.msra.mxu0 0.0
    %2278 = vmatprep.mubr.f32.mxu0 0.0
    %2279 = vmatmul.mubr.f32.gmra.mrb[0].mxu0 %v2212
    %v2280 = vpop.f32.mrb[0].mxu0
    %v2281 = vadd.f32 %v645, %v2280
    %v2282 = vpop.f32.mrb[0].mxu0
    %2283 = vdwg.mxu0
    %v2285 = vsel %vm250, %v2204, 0
    %2287 = vmatprep.subr.mxu0 0.0
    %2288 = vmatpush1.msra.mxu0 %v503
    %2289 = vmatprep.subr.mxu0 0.0
    %2290 = vmatpush1.msra.mxu0 %v504
    %2291 = vmatprep.subr.mxu0 0.0
    %2292 = vmatpush1.msra.mxu0 %v505
    %2293 = vmatprep.subr.mxu0 0.0
    %2294 = vmatpush1.msra.mxu0 %v506
    %2295 = vmatprep.subr.mxu0 0.0
    %2296 = vmatpush1.msra.mxu0 0.0
    %2297 = vmatprep.subr.mxu0 0.0
    %2298 = vmatpush1.msra.mxu0 0.0
    %2299 = vmatprep.subr.mxu0 0.0
    %2300 = vmatpush1.msra.mxu0 0.0
    %2301 = vmatprep.subr.mxu0 0.0
    %2302 = vmatpush1.msra.mxu0 0.0
    %2303 = vmatprep.subr.mxu0 0.0
    %2304 = vmatpush1.msra.mxu0 0.0
    %2305 = vmatprep.subr.mxu0 0.0
    %2306 = vmatpush1.msra.mxu0 0.0
    %2307 = vmatprep.subr.mxu0 0.0
    %2308 = vmatpush1.msra.mxu0 0.0
    %2309 = vmatprep.subr.mxu0 0.0
    %2310 = vmatpush1.msra.mxu0 0.0
    %2311 = vmatprep.subr.mxu0 0.0
    %2312 = vmatpush1.msra.mxu0 0.0
    %2313 = vmatprep.subr.mxu0 0.0
    %2314 = vmatpush1.msra.mxu0 0.0
    %2315 = vmatprep.subr.mxu0 0.0
    %2316 = vmatpush1.msra.mxu0 0.0
    %2317 = vmatprep.subr.mxu0 0.0
    %2318 = vmatpush1.msra.mxu0 0.0
    %2319 = vmatprep.subr.mxu0 0.0
    %2320 = vmatpush1.msra.mxu0 0.0
    %2321 = vmatprep.subr.mxu0 0.0
    %2322 = vmatpush1.msra.mxu0 0.0
    %2323 = vmatprep.subr.mxu0 0.0
    %2324 = vmatpush1.msra.mxu0 0.0
    %2325 = vmatprep.subr.mxu0 0.0
    %2326 = vmatpush1.msra.mxu0 0.0
    %2327 = vmatprep.subr.mxu0 0.0
    %2328 = vmatpush1.msra.mxu0 0.0
    %2329 = vmatprep.subr.mxu0 0.0
    %2330 = vmatpush1.msra.mxu0 0.0
    %2331 = vmatprep.subr.mxu0 0.0
    %2332 = vmatpush1.msra.mxu0 0.0
    %2333 = vmatprep.subr.mxu0 0.0
    %2334 = vmatpush1.msra.mxu0 0.0
    %2335 = vmatprep.subr.mxu0 0.0
    %2336 = vmatpush1.msra.mxu0 0.0
    %2337 = vmatprep.subr.mxu0 0.0
    %2338 = vmatpush1.msra.mxu0 0.0
    %2339 = vmatprep.subr.mxu0 0.0
    %2340 = vmatpush1.msra.mxu0 0.0
    %2341 = vmatprep.subr.mxu0 0.0
    %2342 = vmatpush1.msra.mxu0 0.0
    %2343 = vmatprep.subr.mxu0 0.0
    %2344 = vmatpush1.msra.mxu0 0.0
    %2345 = vmatprep.subr.mxu0 0.0
    %2346 = vmatpush1.msra.mxu0 0.0
    %2347 = vmatprep.subr.mxu0 0.0
    %2348 = vmatpush1.msra.mxu0 0.0
    %2349 = vmatprep.subr.mxu0 0.0
    %2350 = vmatpush1.msra.mxu0 0.0
    %2351 = vmatprep.mubr.f32.mxu0 0.0
    %2352 = vmatmul.mubr.f32.gmra.mrb[0].mxu0 %v2285
    %v2353 = vpop.f32.mrb[0].mxu0
    %v2354 = vadd.f32 %v724, %v2353
    %v2355 = vpop.f32.mrb[0].mxu0
    %2356 = vdwg.mxu0
    %v2358 = vsel %vm250, %v2208, 0
    %2360 = vmatprep.subr.mxu0 0.0
    %2361 = vmatpush1.msra.mxu0 %v503
    %2362 = vmatprep.subr.mxu0 0.0
    %2363 = vmatpush1.msra.mxu0 %v504
    %2364 = vmatprep.subr.mxu0 0.0
    %2365 = vmatpush1.msra.mxu0 %v505
    %2366 = vmatprep.subr.mxu0 0.0
    %2367 = vmatpush1.msra.mxu0 %v506
    %2368 = vmatprep.subr.mxu0 0.0
    %2369 = vmatpush1.msra.mxu0 0.0
    %2370 = vmatprep.subr.mxu0 0.0
    %2371 = vmatpush1.msra.mxu0 0.0
    %2372 = vmatprep.subr.mxu0 0.0
    %2373 = vmatpush1.msra.mxu0 0.0
    %2374 = vmatprep.subr.mxu0 0.0
    %2375 = vmatpush1.msra.mxu0 0.0
    %2376 = vmatprep.subr.mxu0 0.0
    %2377 = vmatpush1.msra.mxu0 0.0
    %2378 = vmatprep.subr.mxu0 0.0
    %2379 = vmatpush1.msra.mxu0 0.0
    %2380 = vmatprep.subr.mxu0 0.0
    %2381 = vmatpush1.msra.mxu0 0.0
    %2382 = vmatprep.subr.mxu0 0.0
    %2383 = vmatpush1.msra.mxu0 0.0
    %2384 = vmatprep.subr.mxu0 0.0
    %2385 = vmatpush1.msra.mxu0 0.0
    %2386 = vmatprep.subr.mxu0 0.0
    %2387 = vmatpush1.msra.mxu0 0.0
    %2388 = vmatprep.subr.mxu0 0.0
    %2389 = vmatpush1.msra.mxu0 0.0
    %2390 = vmatprep.subr.mxu0 0.0
    %2391 = vmatpush1.msra.mxu0 0.0
    %2392 = vmatprep.subr.mxu0 0.0
    %2393 = vmatpush1.msra.mxu0 0.0
    %2394 = vmatprep.subr.mxu0 0.0
    %2395 = vmatpush1.msra.mxu0 0.0
    %2396 = vmatprep.subr.mxu0 0.0
    %2397 = vmatpush1.msra.mxu0 0.0
    %2398 = vmatprep.subr.mxu0 0.0
    %2399 = vmatpush1.msra.mxu0 0.0
    %2400 = vmatprep.subr.mxu0 0.0
    %2401 = vmatpush1.msra.mxu0 0.0
    %2402 = vmatprep.subr.mxu0 0.0
    %2403 = vmatpush1.msra.mxu0 0.0
    %2404 = vmatprep.subr.mxu0 0.0
    %2405 = vmatpush1.msra.mxu0 0.0
    %2406 = vmatprep.subr.mxu0 0.0
    %2407 = vmatpush1.msra.mxu0 0.0
    %2408 = vmatprep.subr.mxu0 0.0
    %2409 = vmatpush1.msra.mxu0 0.0
    %2410 = vmatprep.subr.mxu0 0.0
    %2411 = vmatpush1.msra.mxu0 0.0
    %2412 = vmatprep.subr.mxu0 0.0
    %2413 = vmatpush1.msra.mxu0 0.0
    %2414 = vmatprep.subr.mxu0 0.0
    %2415 = vmatpush1.msra.mxu0 0.0
    %2416 = vmatprep.subr.mxu0 0.0
    %2417 = vmatpush1.msra.mxu0 0.0
    %2418 = vmatprep.subr.mxu0 0.0
    %2419 = vmatpush1.msra.mxu0 0.0
    %2420 = vmatprep.subr.mxu0 0.0
    %2421 = vmatpush1.msra.mxu0 0.0
    %2422 = vmatprep.subr.mxu0 0.0
    %2423 = vmatpush1.msra.mxu0 0.0
    %2424 = vmatprep.mubr.f32.mxu0 0.0
    %2425 = vmatmul.mubr.f32.gmra.mrb[0].mxu0 %v2358
    %v2426 = vpop.f32.mrb[0].mxu0
    %v2427 = vadd.f32 %v724, %v2426
    %v2428 = vpop.f32.mrb[0].mxu0
    %2429 = vdwg.mxu0
    %v2430 = vmul.f32 %v2281, %v2354
    %v2431 = vsel %vm873, %v2430, 0.0
    %2432 = vadd.xlane.f32.xlu0 %v2431
    %v2433 = vpop.xlane.xlu0 %2432
    %v2434 = vmul.f32 %v2433, 0.35355338
    %v2435 = vtanh.pop %v2434
    %v2436 = vmul.f32 %v2435, 10.0
    %v2437 = vmul.f32 %v2281, %v2427
    %v2438 = vsel %vm873, %v2437, 0.0
    %2439 = vadd.xlane.f32.xlu0 %v2438
    %v2440 = vpop.xlane.xlu0 %2439
    %v2441 = vmul.f32 %v2440, 0.35355338
    %v2442 = vtanh.pop %v2441
    %v2443 = vmul.f32 %v2442, 10.0
    %vm2444 = vcmp.gt.f32.partialorder %v2443, %v2436
    %v2445 = vmax.f32 %v2436, %v2443
    %v2446 = vsub.f32 %v2436, %v2445
    %v2447 = vmul.f32 %v2446, 1.442695
    %v2448 = vpow.pop %v2447
    %v2449 = vsub.f32 %v2443, %v2445
    %v2450 = vmul.f32 %v2449, 1.442695
    %v2451 = vpow.pop %v2450
    %v2452 = vsel %vm2444, %v2451, %v2448
    %v2453 = vadd.f32 %v2448, %v2451
    %v2454 = vrcp.pop %v2453
    %v2455 = vmul.f32 %v2452, %v2454
    %v2456 = vsel %vm2444, 1, 0
    %v2457 = vsel %vm2444, %v2197, %v2193
    %v2458 = vsel %vm2444, 0.0, %v2193
    %v2459 = vadd.f32 %v2150, %v2458
    %v2460 = vsel %vm2444, %v2197, 0.0
    %v2461 = vadd.f32 %v2152, %v2460
    %v2462 = vsub.f32 %v2153, %v2457
    %vm2463 = vcmp.eq.s32.totalorder %v509, 5
    %v2464 = vsel %vm2463, %v2189, %v2155
    %v2465 = vsel %vm2463, %v2455, %v2156
    %v2466 = vsel %vm2463, %v2180, %v2157
    %v2467 = vsel %vm2463, %v2456, %v2158
    %vm2468 = vcmp.gt.f32.partialorder %v2200, 0.5
    %v2469 = vsel %vm2468, -1e+30, %v922
    %v2470 = vsel %vm525, %v2469, -inf
    %2471 = vmax.xlane.f32.xlu0 %v2470
    %v2472 = vpop.xlane.xlu0 %2471
    %vm2473 = vcmp.ge.f32.partialorder %v2469, %v2472
    %v2474 = vsel %vm2473, %v509, 8
    %v2475 = vsel %vm525, %v2474, 2147483647
    %v2476 = vand.u32 %v2475, 65535
    %v2477 = vshra.s32 %v2475, 16
    %v2478 = vcvt.s32.f32 %v2476
    %v2479 = vcvt.s32.f32 %v2477
    %2480 = vmin.xlane.f32.xlu0 %v2479
    %v2481 = vpop.xlane.xlu0 %2480
    %vm2482 = vcmp.eq.f32.partialorder %v2479, %v2481
    %v2483 = vsel %vm2482, %v2478, inf
    %2484 = vmin.xlane.f32.xlu0 %v2483
    %v2485 = vpop.xlane.xlu0 %2484
    %v2486 = vcvt.f32.s32 %v2485
    %v2487 = vcvt.f32.s32 %v2481
    %v2488 = vshll.u32 %v2487, 16
    %v2489 = vadd.s32 %v2488, %v2486
    %vm2490 = vcmp.eq.s32.totalorder %v509, %v2489
    %v2491 = vsub.f32 %v2469, %v2472
    %v2492 = vmul.f32 %v2491, 1.442695
    %v2493 = vpow.pop %v2492
    %v2494 = vsel %vm525, %v2493, 0.0
    %2495 = vadd.xlane.f32.xlu0 %v2494
    %v2496 = vpop.xlane.xlu0 %2495
    %v2497 = vrcp.pop %v2496
    %v2498 = vmul.f32 1.0, %v2497
    %v2499 = vsel %vm2490, %v494, 0.0
    %v2500 = vsel %vm525, %v2499, 0.0
    %2501 = vadd.xlane.f32.xlu0 %v2500
    %v2502 = vpop.xlane.xlu0 %2501
    %v2503 = vsel %vm2490, %v495, 0.0
    %v2504 = vsel %vm525, %v2503, 0.0
    %2505 = vadd.xlane.f32.xlu0 %v2504
    %v2506 = vpop.xlane.xlu0 %2505
    %v2507 = vsel %vm2490, 1, 0
    %v2508 = vcvt.s32.f32 %v2507
    %v2509 = vmax.f32 %v2200, %v2508
    %v2510 = vmul.f32 %v2459, %v621
    %v2511 = vmul.f32 %v2502, %v626
    %v2512 = vadd.f32 %v2510, %v2511
    %v2513 = vadd.f32 %v2512, %v633
    %v2514 = vmul.f32 %v2461, %v621
    %v2515 = vmul.f32 %v2506, %v626
    %v2516 = vadd.f32 %v2514, %v2515
    %v2517 = vadd.f32 %v2516, %v633
    %v2518 = vadd.f32 %v2513, %v2517
    %v2519 = vmul.f32 %v2518, 0.5
    %v2521 = vsel %vm250, %v2519, 0
    %2523 = vmatprep.subr.mxu0 0.0
    %2524 = vmatpush1.msra.mxu0 %v498
    %2525 = vmatprep.subr.mxu0 0.0
    %2526 = vmatpush1.msra.mxu0 %v499
    %2527 = vmatprep.subr.mxu0 0.0
    %2528 = vmatpush1.msra.mxu0 %v500
    %2529 = vmatprep.subr.mxu0 0.0
    %2530 = vmatpush1.msra.mxu0 %v501
    %2531 = vmatprep.subr.mxu0 0.0
    %2532 = vmatpush1.msra.mxu0 0.0
    %2533 = vmatprep.subr.mxu0 0.0
    %2534 = vmatpush1.msra.mxu0 0.0
    %2535 = vmatprep.subr.mxu0 0.0
    %2536 = vmatpush1.msra.mxu0 0.0
    %2537 = vmatprep.subr.mxu0 0.0
    %2538 = vmatpush1.msra.mxu0 0.0
    %2539 = vmatprep.subr.mxu0 0.0
    %2540 = vmatpush1.msra.mxu0 0.0
    %2541 = vmatprep.subr.mxu0 0.0
    %2542 = vmatpush1.msra.mxu0 0.0
    %2543 = vmatprep.subr.mxu0 0.0
    %2544 = vmatpush1.msra.mxu0 0.0
    %2545 = vmatprep.subr.mxu0 0.0
    %2546 = vmatpush1.msra.mxu0 0.0
    %2547 = vmatprep.subr.mxu0 0.0
    %2548 = vmatpush1.msra.mxu0 0.0
    %2549 = vmatprep.subr.mxu0 0.0
    %2550 = vmatpush1.msra.mxu0 0.0
    %2551 = vmatprep.subr.mxu0 0.0
    %2552 = vmatpush1.msra.mxu0 0.0
    %2553 = vmatprep.subr.mxu0 0.0
    %2554 = vmatpush1.msra.mxu0 0.0
    %2555 = vmatprep.subr.mxu0 0.0
    %2556 = vmatpush1.msra.mxu0 0.0
    %2557 = vmatprep.subr.mxu0 0.0
    %2558 = vmatpush1.msra.mxu0 0.0
    %2559 = vmatprep.subr.mxu0 0.0
    %2560 = vmatpush1.msra.mxu0 0.0
    %2561 = vmatprep.subr.mxu0 0.0
    %2562 = vmatpush1.msra.mxu0 0.0
    %2563 = vmatprep.subr.mxu0 0.0
    %2564 = vmatpush1.msra.mxu0 0.0
    %2565 = vmatprep.subr.mxu0 0.0
    %2566 = vmatpush1.msra.mxu0 0.0
    %2567 = vmatprep.subr.mxu0 0.0
    %2568 = vmatpush1.msra.mxu0 0.0
    %2569 = vmatprep.subr.mxu0 0.0
    %2570 = vmatpush1.msra.mxu0 0.0
    %2571 = vmatprep.subr.mxu0 0.0
    %2572 = vmatpush1.msra.mxu0 0.0
    %2573 = vmatprep.subr.mxu0 0.0
    %2574 = vmatpush1.msra.mxu0 0.0
    %2575 = vmatprep.subr.mxu0 0.0
    %2576 = vmatpush1.msra.mxu0 0.0
    %2577 = vmatprep.subr.mxu0 0.0
    %2578 = vmatpush1.msra.mxu0 0.0
    %2579 = vmatprep.subr.mxu0 0.0
    %2580 = vmatpush1.msra.mxu0 0.0
    %2581 = vmatprep.subr.mxu0 0.0
    %2582 = vmatpush1.msra.mxu0 0.0
    %2583 = vmatprep.subr.mxu0 0.0
    %2584 = vmatpush1.msra.mxu0 0.0
    %2585 = vmatprep.subr.mxu0 0.0
    %2586 = vmatpush1.msra.mxu0 0.0
    %2587 = vmatprep.mubr.f32.mxu0 0.0
    %2588 = vmatmul.mubr.f32.gmra.mrb[0].mxu0 %v2521
    %v2589 = vpop.f32.mrb[0].mxu0
    %v2590 = vadd.f32 %v645, %v2589
    %v2591 = vpop.f32.mrb[0].mxu0
    %2592 = vdwg.mxu0
    %v2594 = vsel %vm250, %v2513, 0
    %2596 = vmatprep.subr.mxu0 0.0
    %2597 = vmatpush1.msra.mxu0 %v503
    %2598 = vmatprep.subr.mxu0 0.0
    %2599 = vmatpush1.msra.mxu0 %v504
    %2600 = vmatprep.subr.mxu0 0.0
    %2601 = vmatpush1.msra.mxu0 %v505
    %2602 = vmatprep.subr.mxu0 0.0
    %2603 = vmatpush1.msra.mxu0 %v506
    %2604 = vmatprep.subr.mxu0 0.0
    %2605 = vmatpush1.msra.mxu0 0.0
    %2606 = vmatprep.subr.mxu0 0.0
    %2607 = vmatpush1.msra.mxu0 0.0
    %2608 = vmatprep.subr.mxu0 0.0
    %2609 = vmatpush1.msra.mxu0 0.0
    %2610 = vmatprep.subr.mxu0 0.0
    %2611 = vmatpush1.msra.mxu0 0.0
    %2612 = vmatprep.subr.mxu0 0.0
    %2613 = vmatpush1.msra.mxu0 0.0
    %2614 = vmatprep.subr.mxu0 0.0
    %2615 = vmatpush1.msra.mxu0 0.0
    %2616 = vmatprep.subr.mxu0 0.0
    %2617 = vmatpush1.msra.mxu0 0.0
    %2618 = vmatprep.subr.mxu0 0.0
    %2619 = vmatpush1.msra.mxu0 0.0
    %2620 = vmatprep.subr.mxu0 0.0
    %2621 = vmatpush1.msra.mxu0 0.0
    %2622 = vmatprep.subr.mxu0 0.0
    %2623 = vmatpush1.msra.mxu0 0.0
    %2624 = vmatprep.subr.mxu0 0.0
    %2625 = vmatpush1.msra.mxu0 0.0
    %2626 = vmatprep.subr.mxu0 0.0
    %2627 = vmatpush1.msra.mxu0 0.0
    %2628 = vmatprep.subr.mxu0 0.0
    %2629 = vmatpush1.msra.mxu0 0.0
    %2630 = vmatprep.subr.mxu0 0.0
    %2631 = vmatpush1.msra.mxu0 0.0
    %2632 = vmatprep.subr.mxu0 0.0
    %2633 = vmatpush1.msra.mxu0 0.0
    %2634 = vmatprep.subr.mxu0 0.0
    %2635 = vmatpush1.msra.mxu0 0.0
    %2636 = vmatprep.subr.mxu0 0.0
    %2637 = vmatpush1.msra.mxu0 0.0
    %2638 = vmatprep.subr.mxu0 0.0
    %2639 = vmatpush1.msra.mxu0 0.0
    %2640 = vmatprep.subr.mxu0 0.0
    %2641 = vmatpush1.msra.mxu0 0.0
    %2642 = vmatprep.subr.mxu0 0.0
    %2643 = vmatpush1.msra.mxu0 0.0
    %2644 = vmatprep.subr.mxu0 0.0
    %2645 = vmatpush1.msra.mxu0 0.0
    %2646 = vmatprep.subr.mxu0 0.0
    %2647 = vmatpush1.msra.mxu0 0.0
    %2648 = vmatprep.subr.mxu0 0.0
    %2649 = vmatpush1.msra.mxu0 0.0
    %2650 = vmatprep.subr.mxu0 0.0
    %2651 = vmatpush1.msra.mxu0 0.0
    %2652 = vmatprep.subr.mxu0 0.0
    %2653 = vmatpush1.msra.mxu0 0.0
    %2654 = vmatprep.subr.mxu0 0.0
    %2655 = vmatpush1.msra.mxu0 0.0
    %2656 = vmatprep.subr.mxu0 0.0
    %2657 = vmatpush1.msra.mxu0 0.0
    %2658 = vmatprep.subr.mxu0 0.0
    %2659 = vmatpush1.msra.mxu0 0.0
    %2660 = vmatprep.mubr.f32.mxu0 0.0
    %2661 = vmatmul.mubr.f32.gmra.mrb[0].mxu0 %v2594
    %v2662 = vpop.f32.mrb[0].mxu0
    %v2663 = vadd.f32 %v724, %v2662
    %v2664 = vpop.f32.mrb[0].mxu0
    %2665 = vdwg.mxu0
    %v2667 = vsel %vm250, %v2517, 0
    %2669 = vmatprep.subr.mxu0 0.0
    %2670 = vmatpush1.msra.mxu0 %v503
    %2671 = vmatprep.subr.mxu0 0.0
    %2672 = vmatpush1.msra.mxu0 %v504
    %2673 = vmatprep.subr.mxu0 0.0
    %2674 = vmatpush1.msra.mxu0 %v505
    %2675 = vmatprep.subr.mxu0 0.0
    %2676 = vmatpush1.msra.mxu0 %v506
    %2677 = vmatprep.subr.mxu0 0.0
    %2678 = vmatpush1.msra.mxu0 0.0
    %2679 = vmatprep.subr.mxu0 0.0
    %2680 = vmatpush1.msra.mxu0 0.0
    %2681 = vmatprep.subr.mxu0 0.0
    %2682 = vmatpush1.msra.mxu0 0.0
    %2683 = vmatprep.subr.mxu0 0.0
    %2684 = vmatpush1.msra.mxu0 0.0
    %2685 = vmatprep.subr.mxu0 0.0
    %2686 = vmatpush1.msra.mxu0 0.0
    %2687 = vmatprep.subr.mxu0 0.0
    %2688 = vmatpush1.msra.mxu0 0.0
    %2689 = vmatprep.subr.mxu0 0.0
    %2690 = vmatpush1.msra.mxu0 0.0
    %2691 = vmatprep.subr.mxu0 0.0
    %2692 = vmatpush1.msra.mxu0 0.0
    %2693 = vmatprep.subr.mxu0 0.0
    %2694 = vmatpush1.msra.mxu0 0.0
    %2695 = vmatprep.subr.mxu0 0.0
    %2696 = vmatpush1.msra.mxu0 0.0
    %2697 = vmatprep.subr.mxu0 0.0
    %2698 = vmatpush1.msra.mxu0 0.0
    %2699 = vmatprep.subr.mxu0 0.0
    %2700 = vmatpush1.msra.mxu0 0.0
    %2701 = vmatprep.subr.mxu0 0.0
    %2702 = vmatpush1.msra.mxu0 0.0
    %2703 = vmatprep.subr.mxu0 0.0
    %2704 = vmatpush1.msra.mxu0 0.0
    %2705 = vmatprep.subr.mxu0 0.0
    %2706 = vmatpush1.msra.mxu0 0.0
    %2707 = vmatprep.subr.mxu0 0.0
    %2708 = vmatpush1.msra.mxu0 0.0
    %2709 = vmatprep.subr.mxu0 0.0
    %2710 = vmatpush1.msra.mxu0 0.0
    %2711 = vmatprep.subr.mxu0 0.0
    %2712 = vmatpush1.msra.mxu0 0.0
    %2713 = vmatprep.subr.mxu0 0.0
    %2714 = vmatpush1.msra.mxu0 0.0
    %2715 = vmatprep.subr.mxu0 0.0
    %2716 = vmatpush1.msra.mxu0 0.0
    %2717 = vmatprep.subr.mxu0 0.0
    %2718 = vmatpush1.msra.mxu0 0.0
    %2719 = vmatprep.subr.mxu0 0.0
    %2720 = vmatpush1.msra.mxu0 0.0
    %2721 = vmatprep.subr.mxu0 0.0
    %2722 = vmatpush1.msra.mxu0 0.0
    %2723 = vmatprep.subr.mxu0 0.0
    %2724 = vmatpush1.msra.mxu0 0.0
    %2725 = vmatprep.subr.mxu0 0.0
    %2726 = vmatpush1.msra.mxu0 0.0
    %2727 = vmatprep.subr.mxu0 0.0
    %2728 = vmatpush1.msra.mxu0 0.0
    %2729 = vmatprep.subr.mxu0 0.0
    %2730 = vmatpush1.msra.mxu0 0.0
    %2731 = vmatprep.subr.mxu0 0.0
    %2732 = vmatpush1.msra.mxu0 0.0
    %2733 = vmatprep.mubr.f32.mxu0 0.0
    %2734 = vmatmul.mubr.f32.gmra.mrb[0].mxu0 %v2667
    %v2735 = vpop.f32.mrb[0].mxu0
    %v2736 = vadd.f32 %v724, %v2735
    %v2737 = vpop.f32.mrb[0].mxu0
    %2738 = vdwg.mxu0
    %v2739 = vmul.f32 %v2590, %v2663
    %v2740 = vsel %vm873, %v2739, 0.0
    %2741 = vadd.xlane.f32.xlu0 %v2740
    %v2742 = vpop.xlane.xlu0 %2741
    %v2743 = vmul.f32 %v2742, 0.35355338
    %v2744 = vtanh.pop %v2743
    %v2745 = vmul.f32 %v2744, 10.0
    %v2746 = vmul.f32 %v2590, %v2736
    %v2747 = vsel %vm873, %v2746, 0.0
    %2748 = vadd.xlane.f32.xlu0 %v2747
    %v2749 = vpop.xlane.xlu0 %2748
    %v2750 = vmul.f32 %v2749, 0.35355338
    %v2751 = vtanh.pop %v2750
    %v2752 = vmul.f32 %v2751, 10.0
    %vm2753 = vcmp.gt.f32.partialorder %v2752, %v2745
    %v2754 = vmax.f32 %v2745, %v2752
    %v2755 = vsub.f32 %v2745, %v2754
    %v2756 = vmul.f32 %v2755, 1.442695
    %v2757 = vpow.pop %v2756
    %v2758 = vsub.f32 %v2752, %v2754
    %v2759 = vmul.f32 %v2758, 1.442695
    %v2760 = vpow.pop %v2759
    %v2761 = vsel %vm2753, %v2760, %v2757
    %v2762 = vadd.f32 %v2757, %v2760
    %v2763 = vrcp.pop %v2762
    %v2764 = vmul.f32 %v2761, %v2763
    %v2765 = vsel %vm2753, 1, 0
    %v2766 = vsel %vm2753, %v2506, %v2502
    %v2767 = vsel %vm2753, 0.0, %v2502
    %v2768 = vadd.f32 %v2459, %v2767
    %v2769 = vsel %vm2753, %v2506, 0.0
    %v2770 = vadd.f32 %v2461, %v2769
    %v2771 = vsub.f32 %v2462, %v2766
    %vm2772 = vcmp.eq.s32.totalorder %v509, 6
    %v2773 = vsel %vm2772, %v2498, %v2464
    %v2774 = vsel %vm2772, %v2764, %v2465
    %v2775 = vsel %vm2772, %v2489, %v2466
    %v2776 = vsel %vm2772, %v2765, %v2467
    %vm2777 = vcmp.gt.f32.partialorder %v2509, 0.5
    %v2778 = vsel %vm2777, -1e+30, %v922
    %v2779 = vsel %vm525, %v2778, -inf
    %2780 = vmax.xlane.f32.xlu0 %v2779
    %v2781 = vpop.xlane.xlu0 %2780
    %vm2782 = vcmp.ge.f32.partialorder %v2778, %v2781
    %v2783 = vsel %vm2782, %v509, 8
    %v2784 = vsel %vm525, %v2783, 2147483647
    %v2785 = vand.u32 %v2784, 65535
    %v2786 = vshra.s32 %v2784, 16
    %v2787 = vcvt.s32.f32 %v2785
    %v2788 = vcvt.s32.f32 %v2786
    %2789 = vmin.xlane.f32.xlu0 %v2788
    %v2790 = vpop.xlane.xlu0 %2789
    %vm2791 = vcmp.eq.f32.partialorder %v2788, %v2790
    %v2792 = vsel %vm2791, %v2787, inf
    %2793 = vmin.xlane.f32.xlu0 %v2792
    %v2794 = vpop.xlane.xlu0 %2793
    %v2795 = vcvt.f32.s32 %v2794
    %v2796 = vcvt.f32.s32 %v2790
    %v2797 = vshll.u32 %v2796, 16
    %v2798 = vadd.s32 %v2797, %v2795
    %vm2799 = vcmp.eq.s32.totalorder %v509, %v2798
    %v2800 = vsub.f32 %v2778, %v2781
    %v2801 = vmul.f32 %v2800, 1.442695
    %v2802 = vpow.pop %v2801
    %v2803 = vsel %vm525, %v2802, 0.0
    %2804 = vadd.xlane.f32.xlu0 %v2803
    %v2805 = vpop.xlane.xlu0 %2804
    %v2806 = vrcp.pop %v2805
    %v2807 = vmul.f32 1.0, %v2806
    %v2808 = vsel %vm2799, %v494, 0.0
    %v2809 = vsel %vm525, %v2808, 0.0
    %2810 = vadd.xlane.f32.xlu0 %v2809
    %v2811 = vpop.xlane.xlu0 %2810
    %v2812 = vsel %vm2799, %v495, 0.0
    %v2813 = vsel %vm525, %v2812, 0.0
    %2814 = vadd.xlane.f32.xlu0 %v2813
    %v2815 = vpop.xlane.xlu0 %2814
    %v2816 = vmul.f32 %v2768, %v621
    %v2817 = vmul.f32 %v2811, %v626
    %v2818 = vadd.f32 %v2816, %v2817
    %v2819 = vadd.f32 %v2818, %v633
    %v2820 = vmul.f32 %v2770, %v621
    %v2821 = vmul.f32 %v2815, %v626
    %v2822 = vadd.f32 %v2820, %v2821
    %v2823 = vadd.f32 %v2822, %v633
    %v2824 = vadd.f32 %v2819, %v2823
    %v2825 = vmul.f32 %v2824, 0.5
    %v2827 = vsel %vm250, %v2825, 0
    %2829 = vmatprep.subr.mxu0 0.0
    %2830 = vmatpush1.msra.mxu0 %v498
    %2831 = vmatprep.subr.mxu0 0.0
    %2832 = vmatpush1.msra.mxu0 %v499
    %2833 = vmatprep.subr.mxu0 0.0
    %2834 = vmatpush1.msra.mxu0 %v500
    %2835 = vmatprep.subr.mxu0 0.0
    %2836 = vmatpush1.msra.mxu0 %v501
    %2837 = vmatprep.subr.mxu0 0.0
    %2838 = vmatpush1.msra.mxu0 0.0
    %2839 = vmatprep.subr.mxu0 0.0
    %2840 = vmatpush1.msra.mxu0 0.0
    %2841 = vmatprep.subr.mxu0 0.0
    %2842 = vmatpush1.msra.mxu0 0.0
    %2843 = vmatprep.subr.mxu0 0.0
    %2844 = vmatpush1.msra.mxu0 0.0
    %2845 = vmatprep.subr.mxu0 0.0
    %2846 = vmatpush1.msra.mxu0 0.0
    %2847 = vmatprep.subr.mxu0 0.0
    %2848 = vmatpush1.msra.mxu0 0.0
    %2849 = vmatprep.subr.mxu0 0.0
    %2850 = vmatpush1.msra.mxu0 0.0
    %2851 = vmatprep.subr.mxu0 0.0
    %2852 = vmatpush1.msra.mxu0 0.0
    %2853 = vmatprep.subr.mxu0 0.0
    %2854 = vmatpush1.msra.mxu0 0.0
    %2855 = vmatprep.subr.mxu0 0.0
    %2856 = vmatpush1.msra.mxu0 0.0
    %2857 = vmatprep.subr.mxu0 0.0
    %2858 = vmatpush1.msra.mxu0 0.0
    %2859 = vmatprep.subr.mxu0 0.0
    %2860 = vmatpush1.msra.mxu0 0.0
    %2861 = vmatprep.subr.mxu0 0.0
    %2862 = vmatpush1.msra.mxu0 0.0
    %2863 = vmatprep.subr.mxu0 0.0
    %2864 = vmatpush1.msra.mxu0 0.0
    %2865 = vmatprep.subr.mxu0 0.0
    %2866 = vmatpush1.msra.mxu0 0.0
    %2867 = vmatprep.subr.mxu0 0.0
    %2868 = vmatpush1.msra.mxu0 0.0
    %2869 = vmatprep.subr.mxu0 0.0
    %2870 = vmatpush1.msra.mxu0 0.0
    %2871 = vmatprep.subr.mxu0 0.0
    %2872 = vmatpush1.msra.mxu0 0.0
    %2873 = vmatprep.subr.mxu0 0.0
    %2874 = vmatpush1.msra.mxu0 0.0
    %2875 = vmatprep.subr.mxu0 0.0
    %2876 = vmatpush1.msra.mxu0 0.0
    %2877 = vmatprep.subr.mxu0 0.0
    %2878 = vmatpush1.msra.mxu0 0.0
    %2879 = vmatprep.subr.mxu0 0.0
    %2880 = vmatpush1.msra.mxu0 0.0
    %2881 = vmatprep.subr.mxu0 0.0
    %2882 = vmatpush1.msra.mxu0 0.0
    %2883 = vmatprep.subr.mxu0 0.0
    %2884 = vmatpush1.msra.mxu0 0.0
    %2885 = vmatprep.subr.mxu0 0.0
    %2886 = vmatpush1.msra.mxu0 0.0
    %2887 = vmatprep.subr.mxu0 0.0
    %2888 = vmatpush1.msra.mxu0 0.0
    %2889 = vmatprep.subr.mxu0 0.0
    %2890 = vmatpush1.msra.mxu0 0.0
    %2891 = vmatprep.subr.mxu0 0.0
    %2892 = vmatpush1.msra.mxu0 0.0
    %2893 = vmatprep.mubr.f32.mxu0 0.0
    %2894 = vmatmul.mubr.f32.gmra.mrb[0].mxu0 %v2827
    %v2895 = vpop.f32.mrb[0].mxu0
    %v2896 = vadd.f32 %v645, %v2895
    %v2897 = vpop.f32.mrb[0].mxu0
    %2898 = vdwg.mxu0
    %v2900 = vsel %vm250, %v2819, 0
    %2902 = vmatprep.subr.mxu0 0.0
    %2903 = vmatpush1.msra.mxu0 %v503
    %2904 = vmatprep.subr.mxu0 0.0
    %2905 = vmatpush1.msra.mxu0 %v504
    %2906 = vmatprep.subr.mxu0 0.0
    %2907 = vmatpush1.msra.mxu0 %v505
    %2908 = vmatprep.subr.mxu0 0.0
    %2909 = vmatpush1.msra.mxu0 %v506
    %2910 = vmatprep.subr.mxu0 0.0
    %2911 = vmatpush1.msra.mxu0 0.0
    %2912 = vmatprep.subr.mxu0 0.0
    %2913 = vmatpush1.msra.mxu0 0.0
    %2914 = vmatprep.subr.mxu0 0.0
    %2915 = vmatpush1.msra.mxu0 0.0
    %2916 = vmatprep.subr.mxu0 0.0
    %2917 = vmatpush1.msra.mxu0 0.0
    %2918 = vmatprep.subr.mxu0 0.0
    %2919 = vmatpush1.msra.mxu0 0.0
    %2920 = vmatprep.subr.mxu0 0.0
    %2921 = vmatpush1.msra.mxu0 0.0
    %2922 = vmatprep.subr.mxu0 0.0
    %2923 = vmatpush1.msra.mxu0 0.0
    %2924 = vmatprep.subr.mxu0 0.0
    %2925 = vmatpush1.msra.mxu0 0.0
    %2926 = vmatprep.subr.mxu0 0.0
    %2927 = vmatpush1.msra.mxu0 0.0
    %2928 = vmatprep.subr.mxu0 0.0
    %2929 = vmatpush1.msra.mxu0 0.0
    %2930 = vmatprep.subr.mxu0 0.0
    %2931 = vmatpush1.msra.mxu0 0.0
    %2932 = vmatprep.subr.mxu0 0.0
    %2933 = vmatpush1.msra.mxu0 0.0
    %2934 = vmatprep.subr.mxu0 0.0
    %2935 = vmatpush1.msra.mxu0 0.0
    %2936 = vmatprep.subr.mxu0 0.0
    %2937 = vmatpush1.msra.mxu0 0.0
    %2938 = vmatprep.subr.mxu0 0.0
    %2939 = vmatpush1.msra.mxu0 0.0
    %2940 = vmatprep.subr.mxu0 0.0
    %2941 = vmatpush1.msra.mxu0 0.0
    %2942 = vmatprep.subr.mxu0 0.0
    %2943 = vmatpush1.msra.mxu0 0.0
    %2944 = vmatprep.subr.mxu0 0.0
    %2945 = vmatpush1.msra.mxu0 0.0
    %2946 = vmatprep.subr.mxu0 0.0
    %2947 = vmatpush1.msra.mxu0 0.0
    %2948 = vmatprep.subr.mxu0 0.0
    %2949 = vmatpush1.msra.mxu0 0.0
    %2950 = vmatprep.subr.mxu0 0.0
    %2951 = vmatpush1.msra.mxu0 0.0
    %2952 = vmatprep.subr.mxu0 0.0
    %2953 = vmatpush1.msra.mxu0 0.0
    %2954 = vmatprep.subr.mxu0 0.0
    %2955 = vmatpush1.msra.mxu0 0.0
    %2956 = vmatprep.subr.mxu0 0.0
    %2957 = vmatpush1.msra.mxu0 0.0
    %2958 = vmatprep.subr.mxu0 0.0
    %2959 = vmatpush1.msra.mxu0 0.0
    %2960 = vmatprep.subr.mxu0 0.0
    %2961 = vmatpush1.msra.mxu0 0.0
    %2962 = vmatprep.subr.mxu0 0.0
    %2963 = vmatpush1.msra.mxu0 0.0
    %2964 = vmatprep.subr.mxu0 0.0
    %2965 = vmatpush1.msra.mxu0 0.0
    %2966 = vmatprep.mubr.f32.mxu0 0.0
    %2967 = vmatmul.mubr.f32.gmra.mrb[0].mxu0 %v2900
    %v2968 = vpop.f32.mrb[0].mxu0
    %v2969 = vadd.f32 %v724, %v2968
    %v2970 = vpop.f32.mrb[0].mxu0
    %2971 = vdwg.mxu0
    %v2973 = vsel %vm250, %v2823, 0
    %2975 = vmatprep.subr.mxu0 0.0
    %2976 = vmatpush1.msra.mxu0 %v503
    %2977 = vmatprep.subr.mxu0 0.0
    %2978 = vmatpush1.msra.mxu0 %v504
    %2979 = vmatprep.subr.mxu0 0.0
    %2980 = vmatpush1.msra.mxu0 %v505
    %2981 = vmatprep.subr.mxu0 0.0
    %2982 = vmatpush1.msra.mxu0 %v506
    %2983 = vmatprep.subr.mxu0 0.0
    %2984 = vmatpush1.msra.mxu0 0.0
    %2985 = vmatprep.subr.mxu0 0.0
    %2986 = vmatpush1.msra.mxu0 0.0
    %2987 = vmatprep.subr.mxu0 0.0
    %2988 = vmatpush1.msra.mxu0 0.0
    %2989 = vmatprep.subr.mxu0 0.0
    %2990 = vmatpush1.msra.mxu0 0.0
    %2991 = vmatprep.subr.mxu0 0.0
    %2992 = vmatpush1.msra.mxu0 0.0
    %2993 = vmatprep.subr.mxu0 0.0
    %2994 = vmatpush1.msra.mxu0 0.0
    %2995 = vmatprep.subr.mxu0 0.0
    %2996 = vmatpush1.msra.mxu0 0.0
    %2997 = vmatprep.subr.mxu0 0.0
    %2998 = vmatpush1.msra.mxu0 0.0
    %2999 = vmatprep.subr.mxu0 0.0
    %3000 = vmatpush1.msra.mxu0 0.0
    %3001 = vmatprep.subr.mxu0 0.0
    %3002 = vmatpush1.msra.mxu0 0.0
    %3003 = vmatprep.subr.mxu0 0.0
    %3004 = vmatpush1.msra.mxu0 0.0
    %3005 = vmatprep.subr.mxu0 0.0
    %3006 = vmatpush1.msra.mxu0 0.0
    %3007 = vmatprep.subr.mxu0 0.0
    %3008 = vmatpush1.msra.mxu0 0.0
    %3009 = vmatprep.subr.mxu0 0.0
    %3010 = vmatpush1.msra.mxu0 0.0
    %3011 = vmatprep.subr.mxu0 0.0
    %3012 = vmatpush1.msra.mxu0 0.0
    %3013 = vmatprep.subr.mxu0 0.0
    %3014 = vmatpush1.msra.mxu0 0.0
    %3015 = vmatprep.subr.mxu0 0.0
    %3016 = vmatpush1.msra.mxu0 0.0
    %3017 = vmatprep.subr.mxu0 0.0
    %3018 = vmatpush1.msra.mxu0 0.0
    %3019 = vmatprep.subr.mxu0 0.0
    %3020 = vmatpush1.msra.mxu0 0.0
    %3021 = vmatprep.subr.mxu0 0.0
    %3022 = vmatpush1.msra.mxu0 0.0
    %3023 = vmatprep.subr.mxu0 0.0
    %3024 = vmatpush1.msra.mxu0 0.0
    %3025 = vmatprep.subr.mxu0 0.0
    %3026 = vmatpush1.msra.mxu0 0.0
    %3027 = vmatprep.subr.mxu0 0.0
    %3028 = vmatpush1.msra.mxu0 0.0
    %3029 = vmatprep.subr.mxu0 0.0
    %3030 = vmatpush1.msra.mxu0 0.0
    %3031 = vmatprep.subr.mxu0 0.0
    %3032 = vmatpush1.msra.mxu0 0.0
    %3033 = vmatprep.subr.mxu0 0.0
    %3034 = vmatpush1.msra.mxu0 0.0
    %3035 = vmatprep.subr.mxu0 0.0
    %3036 = vmatpush1.msra.mxu0 0.0
    %3037 = vmatprep.subr.mxu0 0.0
    %3038 = vmatpush1.msra.mxu0 0.0
    %3039 = vmatprep.mubr.f32.mxu0 0.0
    %3040 = vmatmul.mubr.f32.gmra.mrb[0].mxu0 %v2973
    %v3041 = vpop.f32.mrb[0].mxu0
    %v3042 = vadd.f32 %v724, %v3041
    %v3043 = vpop.f32.mrb[0].mxu0
    %3044 = vdwg.mxu0
    %v3045 = vmul.f32 %v2896, %v2969
    %v3046 = vsel %vm873, %v3045, 0.0
    %3047 = vadd.xlane.f32.xlu0 %v3046
    %v3048 = vpop.xlane.xlu0 %3047
    %v3049 = vmul.f32 %v3048, 0.35355338
    %v3050 = vtanh.pop %v3049
    %v3051 = vmul.f32 %v3050, 10.0
    %v3052 = vmul.f32 %v2896, %v3042
    %v3053 = vsel %vm873, %v3052, 0.0
    %3054 = vadd.xlane.f32.xlu0 %v3053
    %v3055 = vpop.xlane.xlu0 %3054
    %v3056 = vmul.f32 %v3055, 0.35355338
    %v3057 = vtanh.pop %v3056
    %v3058 = vmul.f32 %v3057, 10.0
    %vm3059 = vcmp.gt.f32.partialorder %v3058, %v3051
    %v3060 = vmax.f32 %v3051, %v3058
    %v3061 = vsub.f32 %v3051, %v3060
    %v3062 = vmul.f32 %v3061, 1.442695
    %v3063 = vpow.pop %v3062
    %v3064 = vsub.f32 %v3058, %v3060
    %v3065 = vmul.f32 %v3064, 1.442695
    %v3066 = vpow.pop %v3065
    %v3067 = vsel %vm3059, %v3066, %v3063
    %v3068 = vadd.f32 %v3063, %v3066
    %v3069 = vrcp.pop %v3068
    %v3070 = vmul.f32 %v3067, %v3069
    %v3071 = vsel %vm3059, 1, 0
    %v3072 = vsel %vm3059, %v2815, %v2811
    %v3073 = vsub.f32 %v2771, %v3072
    %vm3074 = vcmp.eq.s32.totalorder %v509, 7
    %v3075 = vsel %vm3074, %v2807, %v2773
    %v3076 = vsel %vm3074, %v3070, %v2774
    %v3077 = vsel %vm3074, %v2798, %v2775
    %v3078 = vsel %vm3074, %v3071, %v2776
    %3079 = vst.msk [vmem:[#allocation19] sm:$0x3] %vm525, %v3075
    %3081 = vrot.lane.b32.xlu0 %v3076, 8
    %v3082 = vpop.permute.xlu0 %3081
    %vm3084 = vcmask 123968
    %3085 = vst.msk [vmem:[#allocation19] sm:$0x3] %vm3084, %v3082
    %v3086 = vadd.f32 %v3073, 0.0
    %vm3087 = vcmask 189568
    %3088 = vst.msk [vmem:[#allocation19] sm:$0x3] %vm3087, %v3086
    %3089 = vst.msk [vmem:[#allocation20] sm:$0x3] %vm525, %v3077
    %3090 = vrot.lane.b32.xlu0 %v3078, 8
    %v3091 = vpop.permute.xlu0 %3090
    %3092 = vst.msk [vmem:[#allocation20] sm:$0x3] %vm3084, %v3091
    // Predicated region
    $region102: #{tpu_custom_call.1} parent=1 // pred_check
      _
    $region103: #{tpu_custom_call.1} parent=1 // pred_check_branch
      %3094 = sbr.rel (0) target = $region105
    $region104: #{tpu_custom_call.1} parent=1 // pred_region
      %s3096 = ssub.s32 32, 32
      %3097 = vsyncadd [#allocation4], %s3096
      %s3099 = sshll.u32 [#allocation19], 4
      %s3100 = int_to_ptr.vmem [resolvable:$true] %s3099
      %3102 = dma.vmem_to_hbm [thread:$0]  %s3100, 32, %s15, [#allocation4]
    $region105: #{tpu_custom_call.1} parent=1 // pred_fallthru
      _
    // Predicated region
    $region106: #{tpu_custom_call.1} parent=1 // pred_check
      _
    $region107: #{tpu_custom_call.1} parent=1 // pred_check_branch
      %3104 = sbr.rel (0) target = $region109
    $region108: #{tpu_custom_call.1} parent=1 // pred_region
      %s3106 = ssub.s32 32, 32
      %3107 = vsyncadd [#allocation21], %s3106
      %s3109 = sshll.u32 [#allocation20], 4
      %s3110 = int_to_ptr.vmem [resolvable:$true] %s3109
      %3112 = dma.vmem_to_hbm [thread:$0]  %s3110, 32, %s16, [#allocation21]
    $region109: #{tpu_custom_call.1} parent=1 // pred_fallthru
      _
    // Predicated region
    $region110: #{tpu_custom_call.1} parent=1 // pred_check
      _
    $region111: #{tpu_custom_call.1} parent=1 // pred_check_branch
      %3114 = sbr.rel (0) target = $region113
    $region112: #{tpu_custom_call.1} parent=1 // pred_region
      %3115 = dma.done [#allocation4], 32
    $region113: #{tpu_custom_call.1} parent=1 // pred_fallthru
      _
    // Predicated region
    $region114: #{tpu_custom_call.1} parent=1 // pred_check
      _
    $region115: #{tpu_custom_call.1} parent=1 // pred_check_branch
      %3117 = sbr.rel (0) target = $region117
    $region116: #{tpu_custom_call.1} parent=1 // pred_region
      %3118 = dma.done [#allocation21], 32
    $region117: #{tpu_custom_call.1} parent=1 // pred_fallthru
      _
    %3119 = vsyncpa [#allocation3], 1
    %3120 = vsyncpa [#allocation6], 1
    %3121 = vsyncpa [#allocation9], 1
    %3122 = vsyncpa [#allocation12], 1
    %3123 = vsyncpa [#allocation15], 1
    %3124 = vsyncpa [#allocation18], 1
    %3125 = vsyncpa [#allocation4], 1
    %3126 = vsyncpa [#allocation21], 1

</llo_original>
